<compile_context>
chip_gen: v7x
topology: tpu7x:2x2x1
jax: 0.10.0
libtpu: 0.0.40
codegen_flags: <defaults>
</compile_context>

<pallas_src>
import functools

import numpy as np
import jax
import jax.numpy as jnp
from jax import lax
from jax.experimental import pallas as pl
from jax.experimental.pallas import tpu as pltpu

BN_EPS = 1e-5
HALO = 16                        # halo rows per (batch, l-tile); only <=2 are ever used
VMEM_LIMIT = 48 * 1024 * 1024    # leaves headroom inside v7x's 64 MiB physical VMEM


def _round_up(x, m):
    return (x + m - 1) // m * m


def _pick_tile(l_out, c_in_pad, c_pad, n_phase):
    """Largest L-tile (multiple of 128) whose double-buffered blocks stay <= ~12 MiB."""
    def blk_bytes(t):
        return 2 * n_phase * t * c_in_pad * 2 + 2 * t * c_pad * 4
    tl = 2048
    while tl > 128 and blk_bytes(tl) > 12 * 1024 * 1024:
        tl //= 2
    return max(128, min(tl, _round_up(l_out, 128)))


def _conv_tile(x_ref, halo_ref, w_ref, taps):
    """3-tap conv for one (TL, C_pad) output tile; bf16 MXU inputs, f32 accumulation."""
    mains = {}
    acc = None
    for k, (p, q) in enumerate(taps):
        if p not in mains:
            mains[p] = x_ref[0, p]                          # (TL, C_in_pad) bf16
        a = mains[p]
        if q:                                               # shifted tap: borrow q halo rows
            h = halo_ref[0, 0, p * HALO:p * HALO + q, :]    # (q, C_in_pad)
            a = jnp.concatenate([a[q:, :], h], axis=0)      # (TL, C_in_pad)
        d = jnp.dot(a, w_ref[k], preferred_element_type=jnp.float32)
        acc = d if acc is None else acc + d
    return acc                                              # (TL, C_pad) f32


def _stats_kernel(x_ref, halo_ref, w_ref, sum_ref, sq_ref, *, taps, tl, l_out, n_l):
    """Phase 1: recompute-free per-tile channel sums / sums-of-squares."""
    y = _conv_tile(x_ref, halo_ref, w_ref, taps)
    sum_ref[0, 0] = jnp.sum(y, axis=0, keepdims=True)
    sq_ref[0, 0] = jnp.sum(y * y, axis=0, keepdims=True)

    rem = l_out % tl
    if rem:
        # Only the last L-tile contains invalid (padded) tail rows; mask them
        # out of the statistics there and nowhere else.
        @pl.when(pl.program_id(1) == n_l - 1)
        def _():
            valid = lax.broadcasted_iota(jnp.int32, (tl, 1), 0) < rem
            ym = jnp.where(valid, y, 0.0)
            sum_ref[0, 0] = jnp.sum(ym, axis=0, keepdims=True)
            sq_ref[0, 0] = jnp.sum(ym * ym, axis=0, keepdims=True)


def _apply_kernel(x_ref, halo_ref, w_ref, scale_ref, shift_ref, out_ref, *, taps):
    """Phase 2: recompute conv, apply folded BN affine, write NCL output directly."""
    y = _conv_tile(x_ref, halo_ref, w_ref, taps)            # (TL, C_pad) f32
    y = y * scale_ref[...] + shift_ref[...]
    out_ref[0] = y.T                                        # (C_pad, TL): lane-dense NCL store


@functools.partial(jax.jit, static_argnames=("stride",))
def basic_block_forward(x, conv_w, conv_b, bn_gamma, bn_beta, *, stride):
    """x: (N, C_in, L) f32  ->  (N, C_out, L_out) f32 (PyTorch NCL layout)."""
    # A per-channel conv bias cancels exactly under training-mode BatchNorm
    # (mean shifts by b, variance unchanged), so it is dropped from the kernels.
    del conv_b
    N, C_in, L = x.shape
    C_out, c_in_w, ksize = conv_w.shape
    assert c_in_w == C_in and ksize == 3
    s = int(stride)

    L_out = (L + 2 - 3) // s + 1
    C_in_pad = _round_up(C_in, 128)      # lane-dense slab, MXU-friendly contraction dim
    C_pad = _round_up(C_out, 128)
    P = min(s, 3)                        # stride phases actually touched by a 3-tap kernel
    taps = tuple((k % s, k // s) for k in range(3))   # tap k -> (phase, row shift)

    TL = _pick_tile(L_out, C_in_pad, C_pad, P)
    n_l = (L_out + TL - 1) // TL
    L_out_pad = n_l * TL

    # ---- prologue (one cheap XLA layout pass over x): NCL -> stride-phase NLC slab ----
    T = (L + 2 + s - 1) // s             # rows per phase covering the conv-padded input
    T_pad = L_out_pad + HALO
    assert T <= T_pad
    x_nlc = jnp.transpose(x, (0, 2, 1))                                   # (N, L, C_in)
    x_p = jnp.pad(x_nlc, ((0, 0), (1, T * s - L - 1), (0, 0)))            # conv pad + phase fill
    x_ph = x_p.reshape(N, T, s, C_in).transpose(0, 2, 1, 3)[:, :P]        # (N, P, T, C_in)
    x_ph = jnp.pad(x_ph, ((0, 0), (0, 0), (0, T_pad - T), (0, C_in_pad - C_in)))
    x_ph = x_ph.astype(jnp.bfloat16)                                      # (N, P, T_pad, C_in_pad)

    # Tiny per-tile halo (first HALO rows just past each L-tile) so shifted taps never
    # need overlapping BlockSpec windows.
    halo_rows = (jnp.arange(n_l)[:, None] + 1) * TL + jnp.arange(HALO)[None, :]
    halo = jnp.transpose(x_ph[:, :, halo_rows, :], (0, 2, 1, 3, 4))       # (N, n_l, P, HALO, C)
    halo = halo.reshape(N, n_l, P * HALO, C_in_pad)

    w_taps = jnp.transpose(conv_w, (2, 1, 0))                             # (3, C_in, C_out)
    w_taps = jnp.pad(w_taps, ((0, 0), (0, C_in_pad - C_in), (0, C_pad - C_out)))
    w_taps = w_taps.astype(jnp.bfloat16)
    gamma = jnp.pad(bn_gamma.astype(jnp.float32), (0, C_pad - C_out)).reshape(1, C_pad)
    beta = jnp.pad(bn_beta.astype(jnp.float32), (0, C_pad - C_out)).reshape(1, C_pad)

    x_spec = pl.BlockSpec((1, P, TL, C_in_pad), lambda n, li: (n, 0, li, 0))
    halo_spec = pl.BlockSpec((1, 1, P * HALO, C_in_pad), lambda n, li: (n, li, 0, 0))
    w_spec = pl.BlockSpec((3, C_in_pad, C_pad), lambda n, li: (0, 0, 0))
    vec_spec = pl.BlockSpec((1, C_pad), lambda n, li: (0, 0))
    stat_spec = pl.BlockSpec((1, 1, 1, C_pad), lambda n, li: (n, li, 0, 0))

    # ---- phase 1: conv + per-tile channel stats (reads x once, writes only tiny partials) ----
    part_sum, part_sq = pl.pallas_call(
        functools.partial(_stats_kernel, taps=taps, tl=TL, l_out=L_out, n_l=n_l),
        grid=(N, n_l),
        in_specs=[x_spec, halo_spec, w_spec],
        out_specs=(stat_spec, stat_spec),
        out_shape=(
            jax.ShapeDtypeStruct((N, n_l, 1, C_pad), jnp.float32),
            jax.ShapeDtypeStruct((N, n_l, 1, C_pad), jnp.float32),
        ),
        compiler_params=pltpu.CompilerParams(
            dimension_semantics=("parallel", "parallel"),
            vmem_limit_bytes=VMEM_LIMIT),
    )(x_ph, halo, w_taps)

    # ---- tiny glue: fold batch statistics into one scale/shift per channel ----
    # TODO(synk): switch to a shifted/Welford accumulation if |mean| >> std at large M.
    m_total = float(N * L_out)
    mean = (jnp.sum(part_sum, axis=(0, 1, 2)) / m_total).reshape(1, C_pad)
    var = jnp.maximum(
        (jnp.sum(part_sq, axis=(0, 1, 2)) / m_total).reshape(1, C_pad) - mean * mean, 0.0)
    inv_std = lax.rsqrt(var + BN_EPS)        # biased var: PyTorch BN training normalization
    scale = gamma * inv_std
    shift = beta - mean * scale

    # ---- phase 2: recompute conv, apply BN affine, write NCL output directly ----
    out_pad = pl.pallas_call(
        functools.partial(_apply_kernel, taps=taps),
        grid=(N, n_l),
        in_specs=[x_spec, halo_spec, w_spec, vec_spec, vec_spec],
        out_specs=pl.BlockSpec((1, C_pad, TL), lambda n, li: (n, 0, li)),
        out_shape=jax.ShapeDtypeStruct((N, C_pad, L_out_pad), jnp.float32),
        compiler_params=pltpu.CompilerParams(
            dimension_semantics=("parallel", "parallel"),
            vmem_limit_bytes=VMEM_LIMIT),
    )(x_ph, halo, w_taps, scale, shift)

    # ---- plain-JAX glue: crop padding (already NCL) ----
    return out_pad[:, :C_out, :L_out]


def _reference(x, conv_w, conv_b, bn_gamma, bn_beta, *, stride):
    y = lax.conv_general_dilated(
        x, conv_w, window_strides=(stride,), padding=((1, 1),),
        dimension_numbers=("NCH", "OIH", "NCH"))
    y = y + conv_b[None, :, None]
    mean = y.mean(axis=(0, 2), keepdims=True)
    var = y.var(axis=(0, 2), keepdims=True)   # biased var, matches BN training normalization
    return (y - mean) / jnp.sqrt(var + BN_EPS) * bn_gamma[None, :, None] + bn_beta[None, :, None]


if __name__ == "__main__":
    # BasicBlock(inplanes=4, outplanes=8, stride=2) on x of shape (2, 4, 16)
    N, C_in, L = 2, 4, 16
    C_out, stride = 8, 2

    key = jax.random.PRNGKey(0)
    kx, kw, kb = jax.random.split(key, 3)

    x = jax.random.normal(kx, (N, C_in, L), dtype=jnp.float32)

    # Deterministic init mimicking PyTorch Conv1d default (U(-sqrt(k), sqrt(k)), k = 1/(C_in*3))
    bound = 1.0 / np.sqrt(C_in * 3)
    conv_w = jax.random.uniform(kw, (C_out, C_in, 3), minval=-bound, maxval=bound, dtype=jnp.float32)
    conv_b = jax.random.uniform(kb, (C_out,), minval=-bound, maxval=bound, dtype=jnp.float32)
    # BatchNorm1d defaults: gamma=1, beta=0
    bn_gamma = jnp.ones((C_out,), dtype=jnp.float32)
    bn_beta = jnp.zeros((C_out,), dtype=jnp.float32)

    out = basic_block_forward(x, conv_w, conv_b, bn_gamma, bn_beta, stride=stride)
    out = jax.block_until_ready(out)

    ref = _reference(x, conv_w, conv_b, bn_gamma, bn_beta, stride=stride)
    # Tolerance accounts for bf16 MXU inputs (f32 accumulation) vs the full-f32 reference.
    np.testing.assert_allclose(np.asarray(out), np.asarray(ref), atol=3e-2, rtol=2e-2)

    print("KERNEL_OK")
</pallas_src>

<mosaic_0001>
module attributes {stable_mosaic.version = 11 : i64} {
  func.func @_stats_kernel(%arg0: i32, %arg1: i32, %arg2: memref<1x2x128x128xbf16, #tpu.memory_space<vmem>>, %arg3: memref<1x1x32x128xbf16, #tpu.memory_space<vmem>>, %arg4: memref<3x128x128xbf16, #tpu.memory_space<vmem>>, %arg5: memref<1x1x1x128xf32, #tpu.memory_space<vmem>>, %arg6: memref<1x1x1x128xf32, #tpu.memory_space<vmem>>) attributes {dimension_semantics = [#tpu.dimension_semantics<parallel>, #tpu.dimension_semantics<parallel>], iteration_bounds = array<i64: 2, 1>, scalar_prefetch = 0 : i64, scratch_operands = 0 : i64, tpu.core_type = #tpu.core_type<tc>, window_params = [{transform_indices = @transform_0, window_bounds = array<i64: 1, 2, 128, 128>}, {transform_indices = @transform_1, window_bounds = array<i64: 1, 1, 32, 128>}, {pipeline_mode = #tpu.pipeline_mode<synchronous>, transform_indices = @transform_2, window_bounds = array<i64: 3, 128, 128>}, {transform_indices = @transform_3, window_bounds = array<i64: 1, 1, 1, 128>}, {transform_indices = @transform_4, window_bounds = array<i64: 1, 1, 1, 128>}]} {
    %c0 = arith.constant 0 : index
    %c0_0 = arith.constant 0 : index
    %c0_1 = arith.constant 0 : index
    %c0_2 = arith.constant 0 : index
    %0 = vector.load %arg2[%c0, %c0_0, %c0_1, %c0_2] : memref<1x2x128x128xbf16, #tpu.memory_space<vmem>>, vector<1x1x128x128xbf16>
    %1 = vector.shape_cast %0 : vector<1x1x128x128xbf16> to vector<128x128xbf16>
    %c0_3 = arith.constant 0 : index
    %c0_4 = arith.constant 0 : index
    %c0_5 = arith.constant 0 : index
    %2 = vector.load %arg4[%c0_3, %c0_4, %c0_5] : memref<3x128x128xbf16, #tpu.memory_space<vmem>>, vector<1x128x128xbf16>
    %3 = vector.shape_cast %2 : vector<1x128x128xbf16> to vector<128x128xbf16>
    %cst = arith.constant dense<0.000000e+00> : vector<128x128xf32>
    %4 = tpu.matmul %1, %3, %cst {dimension_numbers = #tpu.dot_dimension_numbers<[1], [0], [0], [1], [0, 0, 1, 1], [], []>} : vector<128x128xbf16>, vector<128x128xbf16>, vector<128x128xf32> -> vector<128x128xf32>
    %c0_6 = arith.constant 0 : index
    %c1 = arith.constant 1 : index
    %c0_7 = arith.constant 0 : index
    %c0_8 = arith.constant 0 : index
    %5 = vector.load %arg2[%c0_6, %c1, %c0_7, %c0_8] : memref<1x2x128x128xbf16, #tpu.memory_space<vmem>>, vector<1x1x128x128xbf16>
    %6 = vector.shape_cast %5 : vector<1x1x128x128xbf16> to vector<128x128xbf16>
    %c1_9 = arith.constant 1 : index
    %c0_10 = arith.constant 0 : index
    %c0_11 = arith.constant 0 : index
    %7 = vector.load %arg4[%c1_9, %c0_10, %c0_11] : memref<3x128x128xbf16, #tpu.memory_space<vmem>>, vector<1x128x128xbf16>
    %8 = vector.shape_cast %7 : vector<1x128x128xbf16> to vector<128x128xbf16>
    %cst_12 = arith.constant dense<0.000000e+00> : vector<128x128xf32>
    %9 = tpu.matmul %6, %8, %cst_12 {dimension_numbers = #tpu.dot_dimension_numbers<[1], [0], [0], [1], [0, 0, 1, 1], [], []>} : vector<128x128xbf16>, vector<128x128xbf16>, vector<128x128xf32> -> vector<128x128xf32>
    %10 = arith.addf %4, %9 : vector<128x128xf32>
    %c0_13 = arith.constant 0 : index
    %c0_14 = arith.constant 0 : index
    %c0_15 = arith.constant 0 : index
    %c0_16 = arith.constant 0 : index
    %11 = vector.load %arg3[%c0_13, %c0_14, %c0_15, %c0_16] : memref<1x1x32x128xbf16, #tpu.memory_space<vmem>>, vector<1x1x1x128xbf16>
    %12 = vector.shape_cast %11 : vector<1x1x1x128xbf16> to vector<1x128xbf16>
    %13 = vector.extract_strided_slice %1 {offsets = [1, 0], sizes = [127, 128], strides = [1, 1]} : vector<128x128xbf16> to vector<127x128xbf16>
    %14 = tpu.concatenate %13, %12 in 0 : vector<127x128xbf16>, vector<1x128xbf16> -> vector<128x128xbf16>
    %c2 = arith.constant 2 : index
    %c0_17 = arith.constant 0 : index
    %c0_18 = arith.constant 0 : index
    %15 = vector.load %arg4[%c2, %c0_17, %c0_18] : memref<3x128x128xbf16, #tpu.memory_space<vmem>>, vector<1x128x128xbf16>
    %16 = vector.shape_cast %15 : vector<1x128x128xbf16> to vector<128x128xbf16>
    %cst_19 = arith.constant dense<0.000000e+00> : vector<128x128xf32>
    %17 = tpu.matmul %14, %16, %cst_19 {dimension_numbers = #tpu.dot_dimension_numbers<[1], [0], [0], [1], [0, 0, 1, 1], [], []>} : vector<128x128xbf16>, vector<128x128xbf16>, vector<128x128xf32> -> vector<128x128xf32>
    %18 = arith.addf %10, %17 : vector<128x128xf32>
    %cst_20 = arith.constant dense<0.000000e+00> : vector<128xf32>
    %19 = vector.multi_reduction <add>, %18, %cst_20 [0] : vector<128x128xf32> to vector<128xf32>
    %20 = vector.shape_cast %19 : vector<128xf32> to vector<1x128xf32>
    %c0_21 = arith.constant 0 : index
    %c0_22 = arith.constant 0 : index
    %c0_23 = arith.constant 0 : index
    %c0_24 = arith.constant 0 : index
    %21 = vector.load %arg5[%c0_21, %c0_22, %c0_23, %c0_24] : memref<1x1x1x128xf32, #tpu.memory_space<vmem>>, vector<1x1x1x128xf32>
    %22 = vector.shape_cast %21 : vector<1x1x1x128xf32> to vector<1x128xf32>
    %23 = vector.shape_cast %20 : vector<1x128xf32> to vector<1x1x1x128xf32>
    tpu.vector_store %arg5[%c0_21, %c0_22, %c0_23, %c0_24], %23 {strides = array<i32>} : memref<1x1x1x128xf32, #tpu.memory_space<vmem>>, vector<1x1x1x128xf32>,
    %24 = arith.mulf %18, %18 : vector<128x128xf32>
    %cst_25 = arith.constant dense<0.000000e+00> : vector<128xf32>
    %25 = vector.multi_reduction <add>, %24, %cst_25 [0] : vector<128x128xf32> to vector<128xf32>
    %26 = vector.shape_cast %25 : vector<128xf32> to vector<1x128xf32>
    %c0_26 = arith.constant 0 : index
    %c0_27 = arith.constant 0 : index
    %c0_28 = arith.constant 0 : index
    %c0_29 = arith.constant 0 : index
    %27 = vector.load %arg6[%c0_26, %c0_27, %c0_28, %c0_29] : memref<1x1x1x128xf32, #tpu.memory_space<vmem>>, vector<1x1x1x128xf32>
    %28 = vector.shape_cast %27 : vector<1x1x1x128xf32> to vector<1x128xf32>
    %29 = vector.shape_cast %26 : vector<1x128xf32> to vector<1x1x1x128xf32>
    tpu.vector_store %arg6[%c0_26, %c0_27, %c0_28, %c0_29], %29 {strides = array<i32>} : memref<1x1x1x128xf32, #tpu.memory_space<vmem>>, vector<1x1x1x128xf32>,
    %c0_i32 = arith.constant 0 : i32
    %30 = arith.cmpi eq, %arg1, %c0_i32 : i32
    %31 = arith.extui %30 : i1 to i32
    %c0_i32_30 = arith.constant 0 : i32
    %32 = arith.cmpi ne, %31, %c0_i32_30 : i32
    scf.if %32 {
      %33 = tpu.iota {dimensions = array<i32: 0>} : vector<128x1xi32>
      %c8_i32 = arith.constant 8 : i32
      %34 = vector.broadcast %c8_i32 : i32 to vector<128x1xi32>
      %35 = arith.cmpi slt, %33, %34 : vector<128x1xi32>
      %cst_31 = arith.constant 0.000000e+00 : f32
      %36 = vector.shape_cast %35 : vector<128x1xi1> to vector<128x1xi1>
      %37 = vector.broadcast %36 : vector<128x1xi1> to vector<128x128xi1>
      %38 = vector.broadcast %cst_31 : f32 to vector<128x128xf32>
      %39 = arith.select %37, %18, %38 : vector<128x128xi1>, vector<128x128xf32>
      %cst_32 = arith.constant dense<0.000000e+00> : vector<128xf32>
      %40 = vector.multi_reduction <add>, %39, %cst_32 [0] : vector<128x128xf32> to vector<128xf32>
      %41 = vector.shape_cast %40 : vector<128xf32> to vector<1x128xf32>
      %c0_33 = arith.constant 0 : index
      %c0_34 = arith.constant 0 : index
      %c0_35 = arith.constant 0 : index
      %c0_36 = arith.constant 0 : index
      %42 = vector.load %arg5[%c0_33, %c0_34, %c0_35, %c0_36] : memref<1x1x1x128xf32, #tpu.memory_space<vmem>>, vector<1x1x1x128xf32>
      %43 = vector.shape_cast %42 : vector<1x1x1x128xf32> to vector<1x128xf32>
      %44 = vector.shape_cast %41 : vector<1x128xf32> to vector<1x1x1x128xf32>
      tpu.vector_store %arg5[%c0_33, %c0_34, %c0_35, %c0_36], %44 {strides = array<i32>} : memref<1x1x1x128xf32, #tpu.memory_space<vmem>>, vector<1x1x1x128xf32>,
      %45 = arith.mulf %39, %39 : vector<128x128xf32>
      %cst_37 = arith.constant dense<0.000000e+00> : vector<128xf32>
      %46 = vector.multi_reduction <add>, %45, %cst_37 [0] : vector<128x128xf32> to vector<128xf32>
      %47 = vector.shape_cast %46 : vector<128xf32> to vector<1x128xf32>
      %c0_38 = arith.constant 0 : index
      %c0_39 = arith.constant 0 : index
      %c0_40 = arith.constant 0 : index
      %c0_41 = arith.constant 0 : index
      %48 = vector.load %arg6[%c0_38, %c0_39, %c0_40, %c0_41] : memref<1x1x1x128xf32, #tpu.memory_space<vmem>>, vector<1x1x1x128xf32>
      %49 = vector.shape_cast %48 : vector<1x1x1x128xf32> to vector<1x128xf32>
      %50 = vector.shape_cast %47 : vector<1x128xf32> to vector<1x1x1x128xf32>
      tpu.vector_store %arg6[%c0_38, %c0_39, %c0_40, %c0_41], %50 {strides = array<i32>} : memref<1x1x1x128xf32, #tpu.memory_space<vmem>>, vector<1x1x1x128xf32>,
    } else {
    }
    return
  }
  func.func @transform_0(%arg0: i32, %arg1: i32) -> (i32, i32, i32, i32) {
    %c0_i32 = arith.constant 0 : i32
    %c0_i32_0 = arith.constant 0 : i32
    %c0_i32_1 = arith.constant 0 : i32
    return %arg0, %c0_i32, %arg1, %c0_i32_0 : i32, i32, i32, i32
  }
  func.func @transform_1(%arg0: i32, %arg1: i32) -> (i32, i32, i32, i32) {
    %c0_i32 = arith.constant 0 : i32
    %c0_i32_0 = arith.constant 0 : i32
    %c0_i32_1 = arith.constant 0 : i32
    return %arg0, %arg1, %c0_i32, %c0_i32_0 : i32, i32, i32, i32
  }
  func.func @transform_2(%arg0: i32, %arg1: i32) -> (i32, i32, i32) {
    %c0_i32 = arith.constant 0 : i32
    %c0_i32_0 = arith.constant 0 : i32
    %c0_i32_1 = arith.constant 0 : i32
    %c0_i32_2 = arith.constant 0 : i32
    return %c0_i32, %c0_i32_0, %c0_i32_1 : i32, i32, i32
  }
  func.func @transform_3(%arg0: i32, %arg1: i32) -> (i32, i32, i32, i32) {
    %c0_i32 = arith.constant 0 : i32
    %c0_i32_0 = arith.constant 0 : i32
    %c0_i32_1 = arith.constant 0 : i32
    return %arg0, %arg1, %c0_i32, %c0_i32_0 : i32, i32, i32, i32
  }
  func.func @transform_4(%arg0: i32, %arg1: i32) -> (i32, i32, i32, i32) {
    %c0_i32 = arith.constant 0 : i32
    %c0_i32_0 = arith.constant 0 : i32
    %c0_i32_1 = arith.constant 0 : i32
    return %arg0, %arg1, %c0_i32, %c0_i32_0 : i32, i32, i32, i32
  }
}

module attributes {stable_mosaic.version = 11 : i64} {
  func.func @_apply_kernel(%arg0: i32, %arg1: i32, %arg2: memref<1x2x128x128xbf16, #tpu.memory_space<vmem>>, %arg3: memref<1x1x32x128xbf16, #tpu.memory_space<vmem>>, %arg4: memref<3x128x128xbf16, #tpu.memory_space<vmem>>, %arg5: memref<1x128xf32, #tpu.memory_space<vmem>>, %arg6: memref<1x128xf32, #tpu.memory_space<vmem>>, %arg7: memref<1x128x128xf32, #tpu.memory_space<vmem>>) attributes {dimension_semantics = [#tpu.dimension_semantics<parallel>, #tpu.dimension_semantics<parallel>], iteration_bounds = array<i64: 2, 1>, scalar_prefetch = 0 : i64, scratch_operands = 0 : i64, tpu.core_type = #tpu.core_type<tc>, window_params = [{transform_indices = @transform_0, window_bounds = array<i64: 1, 2, 128, 128>}, {transform_indices = @transform_1, window_bounds = array<i64: 1, 1, 32, 128>}, {pipeline_mode = #tpu.pipeline_mode<synchronous>, transform_indices = @transform_2, window_bounds = array<i64: 3, 128, 128>}, {pipeline_mode = #tpu.pipeline_mode<synchronous>, transform_indices = @transform_3, window_bounds = array<i64: 1, 128>}, {pipeline_mode = #tpu.pipeline_mode<synchronous>, transform_indices = @transform_4, window_bounds = array<i64: 1, 128>}, {transform_indices = @transform_5, window_bounds = array<i64: 1, 128, 128>}]} {
    %c0 = arith.constant 0 : index
    %c0_0 = arith.constant 0 : index
    %c0_1 = arith.constant 0 : index
    %c0_2 = arith.constant 0 : index
    %0 = vector.load %arg2[%c0, %c0_0, %c0_1, %c0_2] : memref<1x2x128x128xbf16, #tpu.memory_space<vmem>>, vector<1x1x128x128xbf16>
    %1 = vector.shape_cast %0 : vector<1x1x128x128xbf16> to vector<128x128xbf16>
    %c0_3 = arith.constant 0 : index
    %c0_4 = arith.constant 0 : index
    %c0_5 = arith.constant 0 : index
    %2 = vector.load %arg4[%c0_3, %c0_4, %c0_5] : memref<3x128x128xbf16, #tpu.memory_space<vmem>>, vector<1x128x128xbf16>
    %3 = vector.shape_cast %2 : vector<1x128x128xbf16> to vector<128x128xbf16>
    %cst = arith.constant dense<0.000000e+00> : vector<128x128xf32>
    %4 = tpu.matmul %1, %3, %cst {dimension_numbers = #tpu.dot_dimension_numbers<[1], [0], [0], [1], [0, 0, 1, 1], [], []>} : vector<128x128xbf16>, vector<128x128xbf16>, vector<128x128xf32> -> vector<128x128xf32>
    %c0_6 = arith.constant 0 : index
    %c1 = arith.constant 1 : index
    %c0_7 = arith.constant 0 : index
    %c0_8 = arith.constant 0 : index
    %5 = vector.load %arg2[%c0_6, %c1, %c0_7, %c0_8] : memref<1x2x128x128xbf16, #tpu.memory_space<vmem>>, vector<1x1x128x128xbf16>
    %6 = vector.shape_cast %5 : vector<1x1x128x128xbf16> to vector<128x128xbf16>
    %c1_9 = arith.constant 1 : index
    %c0_10 = arith.constant 0 : index
    %c0_11 = arith.constant 0 : index
    %7 = vector.load %arg4[%c1_9, %c0_10, %c0_11] : memref<3x128x128xbf16, #tpu.memory_space<vmem>>, vector<1x128x128xbf16>
    %8 = vector.shape_cast %7 : vector<1x128x128xbf16> to vector<128x128xbf16>
    %cst_12 = arith.constant dense<0.000000e+00> : vector<128x128xf32>
    %9 = tpu.matmul %6, %8, %cst_12 {dimension_numbers = #tpu.dot_dimension_numbers<[1], [0], [0], [1], [0, 0, 1, 1], [], []>} : vector<128x128xbf16>, vector<128x128xbf16>, vector<128x128xf32> -> vector<128x128xf32>
    %10 = arith.addf %4, %9 : vector<128x128xf32>
    %c0_13 = arith.constant 0 : index
    %c0_14 = arith.constant 0 : index
    %c0_15 = arith.constant 0 : index
    %c0_16 = arith.constant 0 : index
    %11 = vector.load %arg3[%c0_13, %c0_14, %c0_15, %c0_16] : memref<1x1x32x128xbf16, #tpu.memory_space<vmem>>, vector<1x1x1x128xbf16>
    %12 = vector.shape_cast %11 : vector<1x1x1x128xbf16> to vector<1x128xbf16>
    %13 = vector.extract_strided_slice %1 {offsets = [1, 0], sizes = [127, 128], strides = [1, 1]} : vector<128x128xbf16> to vector<127x128xbf16>
    %14 = tpu.concatenate %13, %12 in 0 : vector<127x128xbf16>, vector<1x128xbf16> -> vector<128x128xbf16>
    %c2 = arith.constant 2 : index
    %c0_17 = arith.constant 0 : index
    %c0_18 = arith.constant 0 : index
    %15 = vector.load %arg4[%c2, %c0_17, %c0_18] : memref<3x128x128xbf16, #tpu.memory_space<vmem>>, vector<1x128x128xbf16>
    %16 = vector.shape_cast %15 : vector<1x128x128xbf16> to vector<128x128xbf16>
    %cst_19 = arith.constant dense<0.000000e+00> : vector<128x128xf32>
    %17 = tpu.matmul %14, %16, %cst_19 {dimension_numbers = #tpu.dot_dimension_numbers<[1], [0], [0], [1], [0, 0, 1, 1], [], []>} : vector<128x128xbf16>, vector<128x128xbf16>, vector<128x128xf32> -> vector<128x128xf32>
    %18 = arith.addf %10, %17 : vector<128x128xf32>
    %c0_20 = arith.constant 0 : index
    %c0_21 = arith.constant 0 : index
    %19 = vector.load %arg5[%c0_20, %c0_21] : memref<1x128xf32, #tpu.memory_space<vmem>>, vector<1x128xf32>
    %20 = vector.broadcast %19 : vector<1x128xf32> to vector<128x128xf32>
    %21 = arith.mulf %18, %20 : vector<128x128xf32>
    %c0_22 = arith.constant 0 : index
    %c0_23 = arith.constant 0 : index
    %22 = vector.load %arg6[%c0_22, %c0_23] : memref<1x128xf32, #tpu.memory_space<vmem>>, vector<1x128xf32>
    %23 = vector.broadcast %22 : vector<1x128xf32> to vector<128x128xf32>
    %24 = arith.addf %21, %23 : vector<128x128xf32>
    %25 = tpu.transpose %24, [1, 0] : vector<128x128xf32> -> vector<128x128xf32>
    %c0_24 = arith.constant 0 : index
    %c0_25 = arith.constant 0 : index
    %c0_26 = arith.constant 0 : index
    %26 = vector.load %arg7[%c0_24, %c0_25, %c0_26] : memref<1x128x128xf32, #tpu.memory_space<vmem>>, vector<1x128x128xf32>
    %27 = vector.shape_cast %26 : vector<1x128x128xf32> to vector<128x128xf32>
    %28 = vector.shape_cast %25 : vector<128x128xf32> to vector<1x128x128xf32>
    tpu.vector_store %arg7[%c0_24, %c0_25, %c0_26], %28 {strides = array<i32>} : memref<1x128x128xf32, #tpu.memory_space<vmem>>, vector<1x128x128xf32>,
    return
  }
  func.func @transform_0(%arg0: i32, %arg1: i32) -> (i32, i32, i32, i32) {
    %c0_i32 = arith.constant 0 : i32
    %c0_i32_0 = arith.constant 0 : i32
    %c0_i32_1 = arith.constant 0 : i32
    return %arg0, %c0_i32, %arg1, %c0_i32_0 : i32, i32, i32, i32
  }
  func.func @transform_1(%arg0: i32, %arg1: i32) -> (i32, i32, i32, i32) {
    %c0_i32 = arith.constant 0 : i32
    %c0_i32_0 = arith.constant 0 : i32
    %c0_i32_1 = arith.constant 0 : i32
    return %arg0, %arg1, %c0_i32, %c0_i32_0 : i32, i32, i32, i32
  }
  func.func @transform_2(%arg0: i32, %arg1: i32) -> (i32, i32, i32) {
    %c0_i32 = arith.constant 0 : i32
    %c0_i32_0 = arith.constant 0 : i32
    %c0_i32_1 = arith.constant 0 : i32
    %c0_i32_2 = arith.constant 0 : i32
    return %c0_i32, %c0_i32_0, %c0_i32_1 : i32, i32, i32
  }
  func.func @transform_3(%arg0: i32, %arg1: i32) -> (i32, i32) {
    %c0_i32 = arith.constant 0 : i32
    %c0_i32_0 = arith.constant 0 : i32
    %c0_i32_1 = arith.constant 0 : i32
    return %c0_i32, %c0_i32_0 : i32, i32
  }
  func.func @transform_4(%arg0: i32, %arg1: i32) -> (i32, i32) {
    %c0_i32 = arith.constant 0 : i32
    %c0_i32_0 = arith.constant 0 : i32
    %c0_i32_1 = arith.constant 0 : i32
    return %c0_i32, %c0_i32_0 : i32, i32
  }
  func.func @transform_5(%arg0: i32, %arg1: i32) -> (i32, i32, i32) {
    %c0_i32 = arith.constant 0 : i32
    %c0_i32_0 = arith.constant 0 : i32
    return %arg0, %c0_i32, %arg1 : i32, i32, i32
  }
}

</mosaic_0001>

<llo_original>
// kernel: basic_block_forward.3
$region0: #{basic_block_forward.3}
  #allocation0 [shape = 'u32[]', space=smem, size = 0x4, offset = 0x4, fixed_abs, tag = 'smem constant byte address 0x4 - core index']
  #allocation1 [shape = 'u32[144,128]{1,0:T(1,128)}', space=vmem, size = 0x12000, scoped, tag = 'internal scratch']
  %s0 = inlined_call_operand.vmem [shape: bf16[2,2,144,128], index: 0, kind: input, shape index: {}]
  %s1 = inlined_call_operand.vmem [shape: bf16[2,1,32,128], index: 1, kind: input, shape index: {}]
  %s2 = inlined_call_operand.vmem [shape: bf16[3,128,128], index: 2, kind: input, shape index: {}]
  %s3 = inlined_call_operand.vmem [shape: f32[1,128], index: 3, kind: input, shape index: {}]
  %s4 = inlined_call_operand.vmem [shape: f32[1,128], index: 4, kind: input, shape index: {}]
  %s5 = inlined_call_operand.vmem [shape: f32[2,128,128], index: 5, kind: output, shape index: {}]
  %s6 = sld [smem:[#allocation0]]
  $region115: #{basic_block_forward.3} parent=0
    _
  %s8 = ssub.s32 1, %s6
  %s9 = scalar_select 0, %s8, %s6
  $region1: #{basic_block_forward.3} parent=0
    #allocation2 [shape = 'u8[131072]{0}', space=vmem, size = 0x20000, scoped, tag = 'input window, operand 0']
    loop: start=0, step=1, limit=4
    $region2: #{basic_block_forward.3} parent=1 // loop_pre_header
      _
    $region3: #{basic_block_forward.3} parent=1 // loop_header
      %s11 = sphi 0, %s15
      %p12 = scmp.ge.s32.totalorder %s11, 4
      %s18 = sphi 0, %s30
      %s19 = sphi 0, %s26
      %s20 = sphi 0, %s18
      %s21 = sphi 0, %s19
      %s22 = sphi 0, %s20
      %s23 = sphi 0, %s21
      %s35 = sphi 0, %s37
      %s38 = sphi 0, %s35
      %s39 = sphi 0, %s38
      %s55 = sphi 0, %s39
      %s63 = sphi 0, %s65
      %s66 = sphi 0, %s63
      %s67 = sphi 0, %s66
      %s83 = sphi 0, %s67
      %s87 = sphi 0, %s87
      %s89 = sphi 0, %s87
      %s90 = sphi 0, %s89
      %s104 = sphi 0, %s90
      %s108 = sphi 0, %s108
      %s110 = sphi 0, %s108
      %s111 = sphi 0, %s110
      %s125 = sphi 0, %s111
      %s129 = sphi 0, %s129
      %s131 = sphi 0, %s129
      %s132 = sphi 0, %s131
      %s146 = sphi 0, %s132
      %s154 = sphi 0, %s156
      %s157 = sphi 0, %s154
      %s158 = sphi 0, %s157
      %s174 = sphi 0, %s158
    $region4: #{basic_block_forward.3} parent=1 // loop_header_branch
      %14 = sbr.rel (%p12) target = $region8
    $region5: #{basic_block_forward.3} parent=1 // loop_body
      %s16 = ssub.s32 %s11, 1
      %s17 = ssub.s32 %s11, 2
      %s24 = sadd.s32 1, %s19
      %p25 = scmp.ge.s32.totalorder %s24, 1
      %s26 = scalar_select %p25, 0, %s24
      %s27 = sadd.s32 1, %s18
      %s28 = scalar_select %p25, %s27, %s18
      %p29 = scmp.ge.s32.totalorder %s28, 2
      %s30 = scalar_select %p29, 0, %s28
      %s31 = ssub.s32 %s18, %s30
      %s32 = ssub.s32 %s19, %s26
      %s33 = sor.u32 %s31, %s32
      %p34 = scmp.eq.s32.totalorder %s33, 0
      %s36 = sadd.s32 %s35, 1
      %s37 = scalar_select %p34, %s35, %s36
      %p40 = pneg %p34
      %p41 = scmp.eq.s32.totalorder %s11, 1
      %p42 = por %p40, %p41
      %p43 = scmp.ne.s32.totalorder %s35, %s38
      %p44 = scmp.eq.s32.totalorder %s11, 0
      %p45 = por %p43, %p44
      %p46 = scmp.ne.s32.totalorder %s35, %s38
      %p47 = scmp.eq.s32.totalorder %s16, 1
      %p48 = por %p46, %p47
      %p49 = scmp.ne.s32.totalorder %s38, %s39
      %p50 = scmp.eq.s32.totalorder %s16, 0
      %p51 = por %p49, %p50
      %p52 = scmp.ne.s32.totalorder %s38, %s39
      %p53 = scmp.eq.s32.totalorder %s17, 1
      %p54 = por %p52, %p53
      %p56 = scmp.ne.s32.totalorder %s39, %s55
      %p57 = scmp.eq.s32.totalorder %s17, 0
      %p58 = por %p56, %p57
      %s59 = ssub.s32 %s18, %s30
      %s60 = ssub.s32 %s19, %s26
      %s61 = sor.u32 %s59, %s60
      %p62 = scmp.eq.s32.totalorder %s61, 0
      %s64 = sadd.s32 %s63, 1
      %s65 = scalar_select %p62, %s63, %s64
      %p68 = pneg %p62
      %p69 = scmp.eq.s32.totalorder %s11, 1
      %p70 = por %p68, %p69
      %p71 = scmp.ne.s32.totalorder %s63, %s66
      %p72 = scmp.eq.s32.totalorder %s11, 0
      %p73 = por %p71, %p72
      %p74 = scmp.ne.s32.totalorder %s63, %s66
      %p75 = scmp.eq.s32.totalorder %s16, 1
      %p76 = por %p74, %p75
      %p77 = scmp.ne.s32.totalorder %s66, %s67
      %p78 = scmp.eq.s32.totalorder %s16, 0
      %p79 = por %p77, %p78
      %p80 = scmp.ne.s32.totalorder %s66, %s67
      %p81 = scmp.eq.s32.totalorder %s17, 1
      %p82 = por %p80, %p81
      %p84 = scmp.ne.s32.totalorder %s67, %s83
      %p85 = scmp.eq.s32.totalorder %s17, 0
      %p86 = por %p84, %p85
      %s88 = sadd.s32 %s87, 1
      %p91 = scmp.eq.s32.totalorder %s11, 1
      %p92 = scmp.ne.s32.totalorder %s87, %s89
      %p93 = scmp.eq.s32.totalorder %s11, 0
      %p94 = por %p92, %p93
      %p95 = scmp.ne.s32.totalorder %s87, %s89
      %p96 = scmp.eq.s32.totalorder %s16, 1
      %p97 = por %p95, %p96
      %p98 = scmp.ne.s32.totalorder %s89, %s90
      %p99 = scmp.eq.s32.totalorder %s16, 0
      %p100 = por %p98, %p99
      %p101 = scmp.ne.s32.totalorder %s89, %s90
      %p102 = scmp.eq.s32.totalorder %s17, 1
      %p103 = por %p101, %p102
      %p105 = scmp.ne.s32.totalorder %s90, %s104
      %p106 = scmp.eq.s32.totalorder %s17, 0
      %p107 = por %p105, %p106
      %s109 = sadd.s32 %s108, 1
      %p112 = scmp.eq.s32.totalorder %s11, 1
      %p113 = scmp.ne.s32.totalorder %s108, %s110
      %p114 = scmp.eq.s32.totalorder %s11, 0
      %p115 = por %p113, %p114
      %p116 = scmp.ne.s32.totalorder %s108, %s110
      %p117 = scmp.eq.s32.totalorder %s16, 1
      %p118 = por %p116, %p117
      %p119 = scmp.ne.s32.totalorder %s110, %s111
      %p120 = scmp.eq.s32.totalorder %s16, 0
      %p121 = por %p119, %p120
      %p122 = scmp.ne.s32.totalorder %s110, %s111
      %p123 = scmp.eq.s32.totalorder %s17, 1
      %p124 = por %p122, %p123
      %p126 = scmp.ne.s32.totalorder %s111, %s125
      %p127 = scmp.eq.s32.totalorder %s17, 0
      %p128 = por %p126, %p127
      %s130 = sadd.s32 %s129, 1
      %p133 = scmp.eq.s32.totalorder %s11, 1
      %p134 = scmp.ne.s32.totalorder %s129, %s131
      %p135 = scmp.eq.s32.totalorder %s11, 0
      %p136 = por %p134, %p135
      %p137 = scmp.ne.s32.totalorder %s129, %s131
      %p138 = scmp.eq.s32.totalorder %s16, 1
      %p139 = por %p137, %p138
      %p140 = scmp.ne.s32.totalorder %s131, %s132
      %p141 = scmp.eq.s32.totalorder %s16, 0
      %p142 = por %p140, %p141
      %p143 = scmp.ne.s32.totalorder %s131, %s132
      %p144 = scmp.eq.s32.totalorder %s17, 1
      %p145 = por %p143, %p144
      %p147 = scmp.ne.s32.totalorder %s132, %s146
      %p148 = scmp.eq.s32.totalorder %s17, 0
      %p149 = por %p147, %p148
      %s150 = ssub.s32 %s18, %s30
      %s151 = ssub.s32 %s19, %s26
      %s152 = sor.u32 %s150, %s151
      %p153 = scmp.eq.s32.totalorder %s152, 0
      %s155 = sadd.s32 %s154, 1
      %s156 = scalar_select %p153, %s154, %s155
      %p159 = pneg %p153
      %p160 = scmp.eq.s32.totalorder %s11, 1
      %p161 = por %p159, %p160
      %p162 = scmp.ne.s32.totalorder %s154, %s157
      %p163 = scmp.eq.s32.totalorder %s11, 0
      %p164 = por %p162, %p163
      %p165 = scmp.ne.s32.totalorder %s154, %s157
      %p166 = scmp.eq.s32.totalorder %s16, 1
      %p167 = por %p165, %p166
      %p168 = scmp.ne.s32.totalorder %s157, %s158
      %p169 = scmp.eq.s32.totalorder %s16, 0
      %p170 = por %p168, %p169
      %p171 = scmp.ne.s32.totalorder %s157, %s158
      %p172 = scmp.eq.s32.totalorder %s17, 1
      %p173 = por %p171, %p172
      %p175 = scmp.ne.s32.totalorder %s158, %s174
      %p176 = scmp.eq.s32.totalorder %s17, 0
      %p177 = por %p175, %p176
      %p178 = scmp.le.s32.totalorder 1, %s11
      %p179 = scmp.lt.s32.totalorder %s11, 3
      %p180 = pnand %p178, %p179
      %p181 = pneg %p180
      // Predicated region
      $region9: #{basic_block_forward.3} parent=5 // pred_check
        _
      $region10: #{basic_block_forward.3} parent=5 // pred_check_branch
        %183 = sbr.rel (%p180) target = $region12
      $region11: #{basic_block_forward.3} parent=5 // pred_region
        %s184 = ssub.s32 %s11, 1
        // Predicated region
        $region13: #{basic_block_forward.3} parent=11 // pred_check
          %p185 = pneg %p100
        $region14: #{basic_block_forward.3} parent=11 // pred_check_branch
          %187 = sbr.rel (%p185) target = $region16
        $region15: #{basic_block_forward.3} parent=11 // pred_region
          _
        $region16: #{basic_block_forward.3} parent=11 // pred_fallthru
          _
        // Predicated region
        $region17: #{basic_block_forward.3} parent=11 // pred_check
          %p188 = pneg %p121
        $region18: #{basic_block_forward.3} parent=11 // pred_check_branch
          %190 = sbr.rel (%p188) target = $region20
        $region19: #{basic_block_forward.3} parent=11 // pred_region
          _
        $region20: #{basic_block_forward.3} parent=11 // pred_fallthru
          _
        // Predicated region
        $region21: #{basic_block_forward.3} parent=11 // pred_check
          %p191 = pneg %p142
        $region22: #{basic_block_forward.3} parent=11 // pred_check_branch
          %193 = sbr.rel (%p191) target = $region24
        $region23: #{basic_block_forward.3} parent=11 // pred_region
          _
        $region24: #{basic_block_forward.3} parent=11 // pred_fallthru
          _
      $region12: #{basic_block_forward.3} parent=5 // pred_fallthru
        _
      %p194 = scmp.lt.s32.totalorder %s11, 2
      // Predicated region
      $region25: #{basic_block_forward.3} parent=5 // pred_check
        %p195 = pneg %p194
      $region26: #{basic_block_forward.3} parent=5 // pred_check_branch
        %197 = sbr.rel (%p195) target = $region28
      $region27: #{basic_block_forward.3} parent=5 // pred_region
        // Predicated region
        $region29: #{basic_block_forward.3} parent=27 // pred_check
          %p198 = pneg %p45
        $region30: #{basic_block_forward.3} parent=27 // pred_check_branch
          %200 = sbr.rel (%p198) target = $region32
        $region31: #{basic_block_forward.3} parent=27 // pred_region
          %s201 = sand.u32 %s35, 1
          %s202 = sand.u32 %s35, 1
          %s203 = smul.addr %s202, 128
          %s204 = scalar_lea.vmem [#allocation2], %s203
          %s205 = smul.u32 16, %s19
          %s206 = ssub.s32 18, %s205
          %p207 = scmp.lt.s32.totalorder %s206, 16
          %s208 = scalar_select %p207, %s206, 16
          %s209 = smul.u32 128, %s208
          %p210 = scmp.ne.s32.totalorder 0, %s209
          %s211 = smul.addr %s18, 36
          %s212 = sadd.s32 %s205, %s211
          %s213 = smul.addr %s212, 4
          %s214 = scalar_lea.vmem %s0, %s213
          // Predicated region
          $region33: #{basic_block_forward.3} parent=31 // pred_check
            %p215 = pneg %p210
          $region34: #{basic_block_forward.3} parent=31 // pred_check_branch
            %217 = sbr.rel (%p215) target = $region36
          $region35: #{basic_block_forward.3} parent=31 // pred_region
            // Predicated region
            $region37: #{basic_block_forward.3} parent=35 // pred_check
              _
            $region38: #{basic_block_forward.3} parent=35 // pred_check_branch
              %219 = sbr.rel target = $region40
            $region39: #{basic_block_forward.3} parent=35 // pred_region
              // Predicated region
              $region59: #{basic_block_forward.3} parent=39 // pred_check
                _
              $region60: #{basic_block_forward.3} parent=39 // pred_check_branch
                %332 = sbr.rel (0) target = $region62
              $region61: #{basic_block_forward.3} parent=39 // pred_region
                %s333 = sshrl.u32 %s208, 4
                // While loop
                $region63: #{basic_block_forward.3} parent=61 // loop_pre_header
                  _
                $region64: #{basic_block_forward.3} parent=61 // loop_header
                  %s335 = sphi 0, %s337
                  %p336 = scmp.ge.s32.totalorder %s335, %s333
                  %s340 = sphi 0, %s345
                  %s341 = sphi %s214, %s348
                  %s342 = sphi %s204, %s349
                $region65: #{basic_block_forward.3} parent=61 // loop_header_branch
                  %339 = sbr.rel (%p336) target = $region69
                $region66: #{basic_block_forward.3} parent=61 // loop_body
                  %s343 = sadd.s32 1, %s340
                  %p344 = scmp.ge.s32.totalorder %s343, %s333
                  %s345 = scalar_select %p344, 0, %s343
                  %s346 = smul.u32 %s345, 64
                  %s347 = smul.u32 %s345, 64
                  %s348 = scalar_lea.vmem %s214, %s346
                  %s349 = scalar_lea.vmem %s204, %s347 [#allocation2]
                $region67: #{basic_block_forward.3} parent=61 // loop_footer
                  %s337 = sadd.s32 %s335, 1
                $region68: #{basic_block_forward.3} parent=61 // loop_footer_branch
                  %334 = sbr.rel target = $region64
                $region69: #{basic_block_forward.3} parent=61 // loop_exit
                  _
                %s350 = sshrl.u32 %s208, 4
                %s351 = sand.u32 %s208, 15
                %s352 = smul.u32 %s350, 16
                %s353 = smul.u32 4, %s352
                %s354 = scalar_lea.vmem %s214, %s353
                %s355 = smul.u32 4, %s352
                %s356 = scalar_lea.vmem %s204, %s355 [#allocation2]
                // While loop
                $region70: #{basic_block_forward.3} parent=61 // loop_pre_header
                  _
                $region71: #{basic_block_forward.3} parent=61 // loop_header
                  %s358 = sphi 0, %s360
                  %p359 = scmp.ge.s32.totalorder %s358, %s351
                  %s363 = sphi 0, %s368
                  %s364 = sphi %s354, %s371
                  %s365 = sphi %s356, %s372
                $region72: #{basic_block_forward.3} parent=61 // loop_header_branch
                  %362 = sbr.rel (%p359) target = $region76
                $region73: #{basic_block_forward.3} parent=61 // loop_body
                  %s366 = sadd.s32 1, %s363
                  %p367 = scmp.ge.s32.totalorder %s366, %s351
                  %s368 = scalar_select %p367, 0, %s366
                  %s369 = smul.u32 %s368, 4
                  %s370 = smul.u32 %s368, 4
                  %s371 = scalar_lea.vmem %s354, %s369
                  %s372 = scalar_lea.vmem %s356, %s370 [#allocation2]
                $region74: #{basic_block_forward.3} parent=61 // loop_footer
                  %s360 = sadd.s32 %s358, 1
                $region75: #{basic_block_forward.3} parent=61 // loop_footer_branch
                  %357 = sbr.rel target = $region71
                $region76: #{basic_block_forward.3} parent=61 // loop_exit
                  _
                %s374 = sshrl.u32 %s208, 4
                // While loop
                $region77: #{basic_block_forward.3} parent=61 // loop_pre_header
                  _
                $region78: #{basic_block_forward.3} parent=61 // loop_header
                  %s376 = sphi 0, %s378
                  %p377 = scmp.ge.s32.totalorder %s376, %s374
                  %s381 = sphi 0, %s450
                  %s382 = sphi %s214, %s453
                  %s383 = sphi %s204, %s454
                $region79: #{basic_block_forward.3} parent=61 // loop_header_branch
                  %380 = sbr.rel (%p377) target = $region83
                $region80: #{basic_block_forward.3} parent=61 // loop_body
                  %v384 = vld [vmem:[%s382] sm:$0xf]
                  %385 = vst [vmem:[%s383] sm:$0xf] %v384
                  %v386 = vld [vmem:[%s382 + $0x4] sm:$0xf]
                  %387 = vst [vmem:[%s383 + $0x4] sm:$0xf] %v386
                  %v388 = vld [vmem:[%s382 + $0x8] sm:$0xf]
                  %389 = vst [vmem:[%s383 + $0x8] sm:$0xf] %v388
                  %v390 = vld [vmem:[%s382 + $0xc] sm:$0xf]
                  %391 = vst [vmem:[%s383 + $0xc] sm:$0xf] %v390
                  %v392 = vld [vmem:[%s382 + $0x10] sm:$0xf]
                  %393 = vst [vmem:[%s383 + $0x10] sm:$0xf] %v392
                  %v394 = vld [vmem:[%s382 + $0x14] sm:$0xf]
                  %395 = vst [vmem:[%s383 + $0x14] sm:$0xf] %v394
                  %v396 = vld [vmem:[%s382 + $0x18] sm:$0xf]
                  %397 = vst [vmem:[%s383 + $0x18] sm:$0xf] %v396
                  %v398 = vld [vmem:[%s382 + $0x1c] sm:$0xf]
                  %399 = vst [vmem:[%s383 + $0x1c] sm:$0xf] %v398
                  %v400 = vld [vmem:[%s382 + $0x20] sm:$0xf]
                  %401 = vst [vmem:[%s383 + $0x20] sm:$0xf] %v400
                  %v402 = vld [vmem:[%s382 + $0x24] sm:$0xf]
                  %403 = vst [vmem:[%s383 + $0x24] sm:$0xf] %v402
                  %v404 = vld [vmem:[%s382 + $0x28] sm:$0xf]
                  %405 = vst [vmem:[%s383 + $0x28] sm:$0xf] %v404
                  %v406 = vld [vmem:[%s382 + $0x2c] sm:$0xf]
                  %407 = vst [vmem:[%s383 + $0x2c] sm:$0xf] %v406
                  %v408 = vld [vmem:[%s382 + $0x30] sm:$0xf]
                  %409 = vst [vmem:[%s383 + $0x30] sm:$0xf] %v408
                  %v410 = vld [vmem:[%s382 + $0x34] sm:$0xf]
                  %411 = vst [vmem:[%s383 + $0x34] sm:$0xf] %v410
                  %v412 = vld [vmem:[%s382 + $0x38] sm:$0xf]
                  %413 = vst [vmem:[%s383 + $0x38] sm:$0xf] %v412
                  %v414 = vld [vmem:[%s382 + $0x3c] sm:$0xf]
                  %415 = vst [vmem:[%s383 + $0x3c] sm:$0xf] %v414
                  %v416 = vld [vmem:[%s382 + $0x48] sm:$0xf]
                  %417 = vst [vmem:[%s383 + $0x40] sm:$0xf] %v416
                  %v418 = vld [vmem:[%s382 + $0x4c] sm:$0xf]
                  %419 = vst [vmem:[%s383 + $0x44] sm:$0xf] %v418
                  %v420 = vld [vmem:[%s382 + $0x50] sm:$0xf]
                  %421 = vst [vmem:[%s383 + $0x48] sm:$0xf] %v420
                  %v422 = vld [vmem:[%s382 + $0x54] sm:$0xf]
                  %423 = vst [vmem:[%s383 + $0x4c] sm:$0xf] %v422
                  %v424 = vld [vmem:[%s382 + $0x58] sm:$0xf]
                  %425 = vst [vmem:[%s383 + $0x50] sm:$0xf] %v424
                  %v426 = vld [vmem:[%s382 + $0x5c] sm:$0xf]
                  %427 = vst [vmem:[%s383 + $0x54] sm:$0xf] %v426
                  %v428 = vld [vmem:[%s382 + $0x60] sm:$0xf]
                  %429 = vst [vmem:[%s383 + $0x58] sm:$0xf] %v428
                  %v430 = vld [vmem:[%s382 + $0x64] sm:$0xf]
                  %431 = vst [vmem:[%s383 + $0x5c] sm:$0xf] %v430
                  %v432 = vld [vmem:[%s382 + $0x68] sm:$0xf]
                  %433 = vst [vmem:[%s383 + $0x60] sm:$0xf] %v432
                  %v434 = vld [vmem:[%s382 + $0x6c] sm:$0xf]
                  %435 = vst [vmem:[%s383 + $0x64] sm:$0xf] %v434
                  %v436 = vld [vmem:[%s382 + $0x70] sm:$0xf]
                  %437 = vst [vmem:[%s383 + $0x68] sm:$0xf] %v436
                  %v438 = vld [vmem:[%s382 + $0x74] sm:$0xf]
                  %439 = vst [vmem:[%s383 + $0x6c] sm:$0xf] %v438
                  %v440 = vld [vmem:[%s382 + $0x78] sm:$0xf]
                  %441 = vst [vmem:[%s383 + $0x70] sm:$0xf] %v440
                  %v442 = vld [vmem:[%s382 + $0x7c] sm:$0xf]
                  %443 = vst [vmem:[%s383 + $0x74] sm:$0xf] %v442
                  %v444 = vld [vmem:[%s382 + $0x80] sm:$0xf]
                  %445 = vst [vmem:[%s383 + $0x78] sm:$0xf] %v444
                  %v446 = vld [vmem:[%s382 + $0x84] sm:$0xf]
                  %447 = vst [vmem:[%s383 + $0x7c] sm:$0xf] %v446
                  %s448 = sadd.s32 1, %s381
                  %p449 = scmp.ge.s32.totalorder %s448, %s374
                  %s450 = scalar_select %p449, 0, %s448
                  %s451 = smul.u32 %s450, 64
                  %s452 = smul.u32 %s450, 64
                  %s453 = scalar_lea.vmem %s214, %s451
                  %s454 = scalar_lea.vmem %s204, %s452 [#allocation2]
                $region81: #{basic_block_forward.3} parent=61 // loop_footer
                  %s378 = sadd.s32 %s376, 1
                $region82: #{basic_block_forward.3} parent=61 // loop_footer_branch
                  %375 = sbr.rel target = $region78
                $region83: #{basic_block_forward.3} parent=61 // loop_exit
                  _
                %s455 = sshrl.u32 %s208, 4
                %s456 = sand.u32 %s208, 15
                %s457 = smul.u32 %s455, 16
                %s458 = smul.u32 4, %s457
                %s459 = scalar_lea.vmem %s214, %s458
                %s460 = smul.u32 4, %s457
                %s461 = scalar_lea.vmem %s204, %s460 [#allocation2]
                // While loop
                $region84: #{basic_block_forward.3} parent=61 // loop_pre_header
                  _
                $region85: #{basic_block_forward.3} parent=61 // loop_header
                  %s463 = sphi 0, %s465
                  %p464 = scmp.ge.s32.totalorder %s463, %s456
                  %s468 = sphi 0, %s477
                  %s469 = sphi %s459, %s480
                  %s470 = sphi %s461, %s481
                $region86: #{basic_block_forward.3} parent=61 // loop_header_branch
                  %467 = sbr.rel (%p464) target = $region90
                $region87: #{basic_block_forward.3} parent=61 // loop_body
                  %v471 = vld [vmem:[%s469] sm:$0xf]
                  %472 = vst [vmem:[%s470] sm:$0xf] %v471
                  %v473 = vld [vmem:[%s469 + $0x48] sm:$0xf]
                  %474 = vst [vmem:[%s470 + $0x40] sm:$0xf] %v473
                  %s475 = sadd.s32 1, %s468
                  %p476 = scmp.ge.s32.totalorder %s475, %s456
                  %s477 = scalar_select %p476, 0, %s475
                  %s478 = smul.u32 %s477, 4
                  %s479 = smul.u32 %s477, 4
                  %s480 = scalar_lea.vmem %s459, %s478
                  %s481 = scalar_lea.vmem %s461, %s479 [#allocation2]
                $region88: #{basic_block_forward.3} parent=61 // loop_footer
                  %s465 = sadd.s32 %s463, 1
                $region89: #{basic_block_forward.3} parent=61 // loop_footer_branch
                  %462 = sbr.rel target = $region85
                $region90: #{basic_block_forward.3} parent=61 // loop_exit
                  _
              $region62: #{basic_block_forward.3} parent=39 // pred_fallthru
                _
            $region40: #{basic_block_forward.3} parent=35 // pred_fallthru
              _
            // Predicated region
            $region41: #{basic_block_forward.3} parent=35 // pred_check
              _
            $region42: #{basic_block_forward.3} parent=35 // pred_check_branch
              %221 = sbr.rel (0) target = $region44
            $region43: #{basic_block_forward.3} parent=35 // pred_region
              %s223 = sshrl.u32 %s208, 4
              // While loop
              $region45: #{basic_block_forward.3} parent=43 // loop_pre_header
                _
              $region46: #{basic_block_forward.3} parent=43 // loop_header
                %s225 = sphi 0, %s227
                %p226 = scmp.ge.s32.totalorder %s225, %s223
                %s230 = sphi 0, %s299
                %s231 = sphi %s214, %s302
                %s232 = sphi %s204, %s303
              $region47: #{basic_block_forward.3} parent=43 // loop_header_branch
                %229 = sbr.rel (%p226) target = $region51
              $region48: #{basic_block_forward.3} parent=43 // loop_body
                %v233 = vld [vmem:[%s231] sm:$0xf]
                %234 = vst [vmem:[%s232] sm:$0xf] %v233
                %v235 = vld [vmem:[%s231 + $0x4] sm:$0xf]
                %236 = vst [vmem:[%s232 + $0x4] sm:$0xf] %v235
                %v237 = vld [vmem:[%s231 + $0x8] sm:$0xf]
                %238 = vst [vmem:[%s232 + $0x8] sm:$0xf] %v237
                %v239 = vld [vmem:[%s231 + $0xc] sm:$0xf]
                %240 = vst [vmem:[%s232 + $0xc] sm:$0xf] %v239
                %v241 = vld [vmem:[%s231 + $0x10] sm:$0xf]
                %242 = vst [vmem:[%s232 + $0x10] sm:$0xf] %v241
                %v243 = vld [vmem:[%s231 + $0x14] sm:$0xf]
                %244 = vst [vmem:[%s232 + $0x14] sm:$0xf] %v243
                %v245 = vld [vmem:[%s231 + $0x18] sm:$0xf]
                %246 = vst [vmem:[%s232 + $0x18] sm:$0xf] %v245
                %v247 = vld [vmem:[%s231 + $0x1c] sm:$0xf]
                %248 = vst [vmem:[%s232 + $0x1c] sm:$0xf] %v247
                %v249 = vld [vmem:[%s231 + $0x20] sm:$0xf]
                %250 = vst [vmem:[%s232 + $0x20] sm:$0xf] %v249
                %v251 = vld [vmem:[%s231 + $0x24] sm:$0xf]
                %252 = vst [vmem:[%s232 + $0x24] sm:$0xf] %v251
                %v253 = vld [vmem:[%s231 + $0x28] sm:$0xf]
                %254 = vst [vmem:[%s232 + $0x28] sm:$0xf] %v253
                %v255 = vld [vmem:[%s231 + $0x2c] sm:$0xf]
                %256 = vst [vmem:[%s232 + $0x2c] sm:$0xf] %v255
                %v257 = vld [vmem:[%s231 + $0x30] sm:$0xf]
                %258 = vst [vmem:[%s232 + $0x30] sm:$0xf] %v257
                %v259 = vld [vmem:[%s231 + $0x34] sm:$0xf]
                %260 = vst [vmem:[%s232 + $0x34] sm:$0xf] %v259
                %v261 = vld [vmem:[%s231 + $0x38] sm:$0xf]
                %262 = vst [vmem:[%s232 + $0x38] sm:$0xf] %v261
                %v263 = vld [vmem:[%s231 + $0x3c] sm:$0xf]
                %264 = vst [vmem:[%s232 + $0x3c] sm:$0xf] %v263
                %v265 = vld [vmem:[%s231 + $0x48] sm:$0xf]
                %266 = vst [vmem:[%s232 + $0x40] sm:$0xf] %v265
                %v267 = vld [vmem:[%s231 + $0x4c] sm:$0xf]
                %268 = vst [vmem:[%s232 + $0x44] sm:$0xf] %v267
                %v269 = vld [vmem:[%s231 + $0x50] sm:$0xf]
                %270 = vst [vmem:[%s232 + $0x48] sm:$0xf] %v269
                %v271 = vld [vmem:[%s231 + $0x54] sm:$0xf]
                %272 = vst [vmem:[%s232 + $0x4c] sm:$0xf] %v271
                %v273 = vld [vmem:[%s231 + $0x58] sm:$0xf]
                %274 = vst [vmem:[%s232 + $0x50] sm:$0xf] %v273
                %v275 = vld [vmem:[%s231 + $0x5c] sm:$0xf]
                %276 = vst [vmem:[%s232 + $0x54] sm:$0xf] %v275
                %v277 = vld [vmem:[%s231 + $0x60] sm:$0xf]
                %278 = vst [vmem:[%s232 + $0x58] sm:$0xf] %v277
                %v279 = vld [vmem:[%s231 + $0x64] sm:$0xf]
                %280 = vst [vmem:[%s232 + $0x5c] sm:$0xf] %v279
                %v281 = vld [vmem:[%s231 + $0x68] sm:$0xf]
                %282 = vst [vmem:[%s232 + $0x60] sm:$0xf] %v281
                %v283 = vld [vmem:[%s231 + $0x6c] sm:$0xf]
                %284 = vst [vmem:[%s232 + $0x64] sm:$0xf] %v283
                %v285 = vld [vmem:[%s231 + $0x70] sm:$0xf]
                %286 = vst [vmem:[%s232 + $0x68] sm:$0xf] %v285
                %v287 = vld [vmem:[%s231 + $0x74] sm:$0xf]
                %288 = vst [vmem:[%s232 + $0x6c] sm:$0xf] %v287
                %v289 = vld [vmem:[%s231 + $0x78] sm:$0xf]
                %290 = vst [vmem:[%s232 + $0x70] sm:$0xf] %v289
                %v291 = vld [vmem:[%s231 + $0x7c] sm:$0xf]
                %292 = vst [vmem:[%s232 + $0x74] sm:$0xf] %v291
                %v293 = vld [vmem:[%s231 + $0x80] sm:$0xf]
                %294 = vst [vmem:[%s232 + $0x78] sm:$0xf] %v293
                %v295 = vld [vmem:[%s231 + $0x84] sm:$0xf]
                %296 = vst [vmem:[%s232 + $0x7c] sm:$0xf] %v295
                %s297 = sadd.s32 1, %s230
                %p298 = scmp.ge.s32.totalorder %s297, %s223
                %s299 = scalar_select %p298, 0, %s297
                %s300 = smul.u32 %s299, 64
                %s301 = smul.u32 %s299, 64
                %s302 = scalar_lea.vmem %s214, %s300
                %s303 = scalar_lea.vmem %s204, %s301 [#allocation2]
              $region49: #{basic_block_forward.3} parent=43 // loop_footer
                %s227 = sadd.s32 %s225, 1
              $region50: #{basic_block_forward.3} parent=43 // loop_footer_branch
                %224 = sbr.rel target = $region46
              $region51: #{basic_block_forward.3} parent=43 // loop_exit
                _
              %s304 = sshrl.u32 %s208, 4
              %s305 = sand.u32 %s208, 15
              %s306 = smul.u32 %s304, 16
              %s307 = smul.u32 4, %s306
              %s308 = scalar_lea.vmem %s214, %s307
              %s309 = smul.u32 4, %s306
              %s310 = scalar_lea.vmem %s204, %s309 [#allocation2]
              // While loop
              $region52: #{basic_block_forward.3} parent=43 // loop_pre_header
                _
              $region53: #{basic_block_forward.3} parent=43 // loop_header
                %s312 = sphi 0, %s314
                %p313 = scmp.ge.s32.totalorder %s312, %s305
                %s317 = sphi 0, %s326
                %s318 = sphi %s308, %s329
                %s319 = sphi %s310, %s330
              $region54: #{basic_block_forward.3} parent=43 // loop_header_branch
                %316 = sbr.rel (%p313) target = $region58
              $region55: #{basic_block_forward.3} parent=43 // loop_body
                %v320 = vld [vmem:[%s318] sm:$0xf]
                %321 = vst [vmem:[%s319] sm:$0xf] %v320
                %v322 = vld [vmem:[%s318 + $0x48] sm:$0xf]
                %323 = vst [vmem:[%s319 + $0x40] sm:$0xf] %v322
                %s324 = sadd.s32 1, %s317
                %p325 = scmp.ge.s32.totalorder %s324, %s305
                %s326 = scalar_select %p325, 0, %s324
                %s327 = smul.u32 %s326, 4
                %s328 = smul.u32 %s326, 4
                %s329 = scalar_lea.vmem %s308, %s327
                %s330 = scalar_lea.vmem %s310, %s328 [#allocation2]
              $region56: #{basic_block_forward.3} parent=43 // loop_footer
                %s314 = sadd.s32 %s312, 1
              $region57: #{basic_block_forward.3} parent=43 // loop_footer_branch
                %311 = sbr.rel target = $region53
              $region58: #{basic_block_forward.3} parent=43 // loop_exit
                _
            $region44: #{basic_block_forward.3} parent=35 // pred_fallthru
              _
          $region36: #{basic_block_forward.3} parent=31 // pred_fallthru
            _
          %482 = vnop
        $region32: #{basic_block_forward.3} parent=27 // pred_fallthru
          _
        // Predicated region
        $region91: #{basic_block_forward.3} parent=27 // pred_check
          %p483 = pneg %p73
        $region92: #{basic_block_forward.3} parent=27 // pred_check_branch
          %485 = sbr.rel (%p483) target = $region94
        $region93: #{basic_block_forward.3} parent=27 // pred_region
          %p486 = scmp.lt.s32.totalorder %s18, 1
          %s487 = scalar_select %p486, %s18, 1
          %p488 = scmp.lt.s32.totalorder %s19, 0
          %s489 = scalar_select %p488, %s19, 0
          %s490 = smul.addr %s489, 4
          %s491 = smul.addr %s487, 4
          %s492 = sadd.s32 %s490, %s491
          %s493 = smul.addr %s492, 4
          %s494 = scalar_lea.vmem %s1, %s493
        $region94: #{basic_block_forward.3} parent=27 // pred_fallthru
          _
      $region28: #{basic_block_forward.3} parent=5 // pred_fallthru
        _
      %p495 = scmp.le.s32.totalorder 1, %s11
      %p496 = scmp.lt.s32.totalorder %s11, 3
      %p497 = pnand %p495, %p496
      %p498 = pneg %p497
      // Predicated region
      $region95: #{basic_block_forward.3} parent=5 // pred_check
        _
      $region96: #{basic_block_forward.3} parent=5 // pred_check_branch
        %500 = sbr.rel (%p497) target = $region98
      $region97: #{basic_block_forward.3} parent=5 // pred_region
        %s501 = ssub.s32 %s11, 1
        %s502 = sand.u32 %s38, 1
        %s503 = sand.u32 %s38, 1
        %s504 = smul.addr %s503, 128
        %s505 = scalar_lea.vmem [#allocation2], %s504
        // Predicated region
        $region99: #{basic_block_forward.3} parent=97 // pred_check
          %p506 = pneg %p51
        $region100: #{basic_block_forward.3} parent=97 // pred_check_branch
          %508 = sbr.rel (%p506) target = $region102
        $region101: #{basic_block_forward.3} parent=97 // pred_region
          _
        $region102: #{basic_block_forward.3} parent=97 // pred_fallthru
          _
        %s509 = sand.u32 %s38, 1
        %s510 = sand.u32 %s38, 1
        %s511 = smul.addr %s510, 128
        %s512 = scalar_lea.vmem [#allocation2], %s511
        %p513 = pneg %p51
        %p514 = pneg %p48
        %p515 = scmp.lt.s32.totalorder %s20, 1
        %s516 = scalar_select %p515, %s20, 1
        %p517 = scmp.lt.s32.totalorder %s21, 0
        %s518 = scalar_select %p517, %s21, 0
        %s519 = smul.addr %s518, 4
        %s520 = smul.addr %s516, 4
        %s521 = sadd.s32 %s519, %s520
        %s522 = smul.addr %s521, 4
        %s523 = scalar_lea.vmem %s1, %s522
        %p524 = pneg %p79
        %p525 = pneg %p76
        %p526 = pneg %p100
        %p527 = pneg %p97
        %p528 = pneg %p121
        %p529 = pneg %p118
        %p530 = pneg %p142
        %p531 = pneg %p139
        %p532 = pneg %p170
        %p533 = pneg %p167
        %p534 = scmp.lt.s32.totalorder %s20, 1
        %s535 = scalar_select %p534, %s20, 1
        %p536 = scmp.lt.s32.totalorder %s21, 0
        %s537 = scalar_select %p536, %s21, 0
        %s538 = smul.addr %s535, 16
        %s539 = sadd.s32 %s537, %s538
        %s540 = smul.addr %s539, 8
        %s541 = scalar_lea.vmem %s5, %s540
        %s542 = smul.u32 16, %s21
        %s543 = ssub.s32 18, %s542
        %p544 = scmp.lt.s32.totalorder %s543, 16
        %s545 = scalar_select %p544, %s543, 16
        %s546 = smul.u32 128, %s545
        %p547 = scmp.lt.s32.totalorder %s20, 1
        %s548 = scalar_select %p547, %s20, 1
        %p549 = scmp.lt.s32.totalorder %s21, 0
        %s550 = scalar_select %p549, %s21, 0
        %s551 = smul.addr %s550, 4
        %s552 = smul.addr %s548, 4
        %s553 = sadd.s32 %s551, %s552
        %s554 = smul.addr %s553, 4
        %s555 = scalar_lea.vmem %s1, %s554
        %p556 = scmp.lt.s32.totalorder %s20, 1
        %s557 = scalar_select %p556, %s20, 1
        %p558 = scmp.lt.s32.totalorder %s21, 0
        %s559 = scalar_select %p558, %s21, 0
        %s560 = smul.addr %s557, 16
        %s561 = sadd.s32 %s559, %s560
        %s562 = smul.addr %s561, 8
        %s563 = scalar_lea.vmem %s5, %s562
        %v565 = vld [vmem:[%s505] sm:$0xf]
        %v566 = vld [vmem:[%s505 + $0x4] sm:$0xf]
        %v567 = vld [vmem:[%s505 + $0x8] sm:$0xf]
        %v568 = vld [vmem:[%s505 + $0xc] sm:$0xf]
        %v569 = vld [vmem:[%s505 + $0x10] sm:$0xf]
        %v570 = vld [vmem:[%s505 + $0x14] sm:$0xf]
        %v571 = vld [vmem:[%s505 + $0x18] sm:$0xf]
        %v572 = vld [vmem:[%s505 + $0x1c] sm:$0xf]
        %v573 = vld [vmem:[%s505 + $0x20] sm:$0xf]
        %v574 = vld [vmem:[%s505 + $0x24] sm:$0xf]
        %v575 = vld [vmem:[%s505 + $0x28] sm:$0xf]
        %v576 = vld [vmem:[%s505 + $0x2c] sm:$0xf]
        %v577 = vld [vmem:[%s505 + $0x30] sm:$0xf]
        %v578 = vld [vmem:[%s505 + $0x34] sm:$0xf]
        %v579 = vld [vmem:[%s505 + $0x38] sm:$0xf]
        %v580 = vld [vmem:[%s505 + $0x3c] sm:$0xf]
        %v581 = vld [vmem:[%s2] sm:$0xf]
        %v582 = vld [vmem:[%s2 + $0x4] sm:$0xf]
        %v583 = vld [vmem:[%s2 + $0x8] sm:$0xf]
        %v584 = vld [vmem:[%s2 + $0xc] sm:$0xf]
        %v585 = vld [vmem:[%s2 + $0x10] sm:$0xf]
        %v586 = vld [vmem:[%s2 + $0x14] sm:$0xf]
        %v587 = vld [vmem:[%s2 + $0x18] sm:$0xf]
        %v588 = vld [vmem:[%s2 + $0x1c] sm:$0xf]
        %v589 = vld [vmem:[%s2 + $0x20] sm:$0xf]
        %v590 = vld [vmem:[%s2 + $0x24] sm:$0xf]
        %v591 = vld [vmem:[%s2 + $0x28] sm:$0xf]
        %v592 = vld [vmem:[%s2 + $0x2c] sm:$0xf]
        %v593 = vld [vmem:[%s2 + $0x30] sm:$0xf]
        %v594 = vld [vmem:[%s2 + $0x34] sm:$0xf]
        %v595 = vld [vmem:[%s2 + $0x38] sm:$0xf]
        %v596 = vld [vmem:[%s2 + $0x3c] sm:$0xf]
        %s597 = scalar_lea.vmem %s505, 64 [#allocation2]
        %v598 = vld [vmem:[%s597] sm:$0xf]
        %v599 = vld [vmem:[%s597 + $0x4] sm:$0xf]
        %v600 = vld [vmem:[%s597 + $0x8] sm:$0xf]
        %v601 = vld [vmem:[%s597 + $0xc] sm:$0xf]
        %v602 = vld [vmem:[%s597 + $0x10] sm:$0xf]
        %v603 = vld [vmem:[%s597 + $0x14] sm:$0xf]
        %v604 = vld [vmem:[%s597 + $0x18] sm:$0xf]
        %v605 = vld [vmem:[%s597 + $0x1c] sm:$0xf]
        %v606 = vld [vmem:[%s597 + $0x20] sm:$0xf]
        %v607 = vld [vmem:[%s597 + $0x24] sm:$0xf]
        %v608 = vld [vmem:[%s597 + $0x28] sm:$0xf]
        %v609 = vld [vmem:[%s597 + $0x2c] sm:$0xf]
        %v610 = vld [vmem:[%s597 + $0x30] sm:$0xf]
        %v611 = vld [vmem:[%s597 + $0x34] sm:$0xf]
        %v612 = vld [vmem:[%s597 + $0x38] sm:$0xf]
        %v613 = vld [vmem:[%s597 + $0x3c] sm:$0xf]
        %s614 = scalar_lea.vmem %s2, 64
        %v615 = vld [vmem:[%s614] sm:$0xf]
        %v616 = vld [vmem:[%s614 + $0x4] sm:$0xf]
        %v617 = vld [vmem:[%s614 + $0x8] sm:$0xf]
        %v618 = vld [vmem:[%s614 + $0xc] sm:$0xf]
        %v619 = vld [vmem:[%s614 + $0x10] sm:$0xf]
        %v620 = vld [vmem:[%s614 + $0x14] sm:$0xf]
        %v621 = vld [vmem:[%s614 + $0x18] sm:$0xf]
        %v622 = vld [vmem:[%s614 + $0x1c] sm:$0xf]
        %v623 = vld [vmem:[%s614 + $0x20] sm:$0xf]
        %v624 = vld [vmem:[%s614 + $0x24] sm:$0xf]
        %v625 = vld [vmem:[%s614 + $0x28] sm:$0xf]
        %v626 = vld [vmem:[%s614 + $0x2c] sm:$0xf]
        %v627 = vld [vmem:[%s614 + $0x30] sm:$0xf]
        %v628 = vld [vmem:[%s614 + $0x34] sm:$0xf]
        %v629 = vld [vmem:[%s614 + $0x38] sm:$0xf]
        %v630 = vld [vmem:[%s614 + $0x3c] sm:$0xf]
        %v647 = vunpack.c.l.b16 %v598
        %v648 = vunpack.c.l.b16 %v599
        %v649 = vunpack.c.l.b16 %v600
        %v650 = vunpack.c.l.b16 %v601
        %v651 = vunpack.c.l.b16 %v602
        %v652 = vunpack.c.l.b16 %v603
        %v653 = vunpack.c.l.b16 %v604
        %v654 = vunpack.c.l.b16 %v605
        %v655 = vunpack.c.l.b16 %v606
        %v656 = vunpack.c.l.b16 %v607
        %v657 = vunpack.c.l.b16 %v608
        %v658 = vunpack.c.l.b16 %v609
        %v659 = vunpack.c.l.b16 %v610
        %v660 = vunpack.c.l.b16 %v611
        %v661 = vunpack.c.l.b16 %v612
        %v662 = vunpack.c.l.b16 %v613
        %v663 = vpack.c.b16 %v648, %v647
        %v664 = vpack.c.b16 %v650, %v649
        %v665 = vpack.c.b16 %v652, %v651
        %v666 = vpack.c.b16 %v654, %v653
        %v667 = vpack.c.b16 %v656, %v655
        %v668 = vpack.c.b16 %v658, %v657
        %v669 = vpack.c.b16 %v660, %v659
        %v670 = vpack.c.b16 %v662, %v661
        %v695 = vunpack.c.l.b16 %v615
        %v696 = vunpack.c.l.b16 %v616
        %v697 = vunpack.c.l.b16 %v617
        %v698 = vunpack.c.l.b16 %v618
        %v699 = vunpack.c.l.b16 %v619
        %v700 = vunpack.c.l.b16 %v620
        %v701 = vunpack.c.l.b16 %v621
        %v702 = vunpack.c.l.b16 %v622
        %v703 = vunpack.c.l.b16 %v623
        %v704 = vunpack.c.l.b16 %v624
        %v705 = vunpack.c.l.b16 %v625
        %v706 = vunpack.c.l.b16 %v626
        %v707 = vunpack.c.l.b16 %v627
        %v708 = vunpack.c.l.b16 %v628
        %v709 = vunpack.c.l.b16 %v629
        %v710 = vunpack.c.l.b16 %v630
        %v711 = vpack.c.b16 %v696, %v695
        %v712 = vpack.c.b16 %v698, %v697
        %v713 = vpack.c.b16 %v700, %v699
        %v714 = vpack.c.b16 %v702, %v701
        %v715 = vpack.c.b16 %v704, %v703
        %v716 = vpack.c.b16 %v706, %v705
        %v717 = vpack.c.b16 %v708, %v707
        %v718 = vpack.c.b16 %v710, %v709
        %727 = vmatprep.subr.bf16.mxu0 0
        %728 = vmatpush1.bf16.msra.mxu0 %v711
        %729 = vmatprep.subr.bf16.mxu0 0
        %730 = vmatpush1.bf16.msra.mxu0 %v712
        %731 = vmatprep.subr.bf16.mxu0 0
        %732 = vmatpush1.bf16.msra.mxu0 %v713
        %733 = vmatprep.subr.bf16.mxu0 0
        %734 = vmatpush1.bf16.msra.mxu0 %v714
        %735 = vmatprep.subr.bf16.mxu0 0
        %736 = vmatpush1.bf16.msra.mxu0 %v715
        %737 = vmatprep.subr.bf16.mxu0 0
        %738 = vmatpush1.bf16.msra.mxu0 %v716
        %739 = vmatprep.subr.bf16.mxu0 0
        %740 = vmatpush1.bf16.msra.mxu0 %v717
        %741 = vmatprep.subr.bf16.mxu0 0
        %742 = vmatpush1.bf16.msra.mxu0 %v718
        %743 = vmatprep.subr.bf16.mxu0 0
        %744 = vmatpush1.bf16.msra.mxu0 0
        %745 = vmatprep.subr.bf16.mxu0 0
        %746 = vmatpush1.bf16.msra.mxu0 0
        %747 = vmatprep.subr.bf16.mxu0 0
        %748 = vmatpush1.bf16.msra.mxu0 0
        %749 = vmatprep.subr.bf16.mxu0 0
        %750 = vmatpush1.bf16.msra.mxu0 0
        %751 = vmatprep.subr.bf16.mxu0 0
        %752 = vmatpush1.bf16.msra.mxu0 0
        %753 = vmatprep.subr.bf16.mxu0 0
        %754 = vmatpush1.bf16.msra.mxu0 0
        %755 = vmatprep.subr.bf16.mxu0 0
        %756 = vmatpush1.bf16.msra.mxu0 0
        %757 = vmatprep.subr.bf16.mxu0 0
        %758 = vmatpush1.bf16.msra.mxu0 0
        %759 = vmatprep.mubr.bf16.mxu0 0
        %760 = vmatmul.mubr.bf16.gmra.mrb[0].mxu0 %v663
        %v761 = vpop.f32.mrb[0].mxu0
        %v762 = vadd.f32 0.0, %v761
        %v763 = vpop.f32.mrb[0].mxu0
        %v764 = vpop.f32.mrb[0].mxu0
        %v765 = vadd.f32 0.0, %v764
        %v766 = vpop.f32.mrb[0].mxu0
        %767 = vmatprep.mubr.bf16.mxu0 0
        %768 = vmatmul.mubr.bf16.gmra.mrb[0].mxu0 %v664
        %v769 = vpop.f32.mrb[0].mxu0
        %v770 = vadd.f32 0.0, %v769
        %v771 = vpop.f32.mrb[0].mxu0
        %v772 = vpop.f32.mrb[0].mxu0
        %v773 = vadd.f32 0.0, %v772
        %v774 = vpop.f32.mrb[0].mxu0
        %775 = vmatprep.mubr.bf16.mxu0 0
        %776 = vmatmul.mubr.bf16.gmra.mrb[0].mxu0 %v665
        %v777 = vpop.f32.mrb[0].mxu0
        %v778 = vadd.f32 0.0, %v777
        %v779 = vpop.f32.mrb[0].mxu0
        %v780 = vpop.f32.mrb[0].mxu0
        %v781 = vadd.f32 0.0, %v780
        %v782 = vpop.f32.mrb[0].mxu0
        %783 = vmatprep.mubr.bf16.mxu0 0
        %784 = vmatmul.mubr.bf16.gmra.mrb[0].mxu0 %v666
        %v785 = vpop.f32.mrb[0].mxu0
        %v786 = vadd.f32 0.0, %v785
        %v787 = vpop.f32.mrb[0].mxu0
        %v788 = vpop.f32.mrb[0].mxu0
        %v789 = vadd.f32 0.0, %v788
        %v790 = vpop.f32.mrb[0].mxu0
        %791 = vmatprep.mubr.bf16.mxu0 0
        %792 = vmatmul.mubr.bf16.gmra.mrb[0].mxu0 %v667
        %v793 = vpop.f32.mrb[0].mxu0
        %v794 = vadd.f32 0.0, %v793
        %v795 = vpop.f32.mrb[0].mxu0
        %v796 = vpop.f32.mrb[0].mxu0
        %v797 = vadd.f32 0.0, %v796
        %v798 = vpop.f32.mrb[0].mxu0
        %799 = vmatprep.mubr.bf16.mxu0 0
        %800 = vmatmul.mubr.bf16.gmra.mrb[0].mxu0 %v668
        %v801 = vpop.f32.mrb[0].mxu0
        %v802 = vadd.f32 0.0, %v801
        %v803 = vpop.f32.mrb[0].mxu0
        %v804 = vpop.f32.mrb[0].mxu0
        %v805 = vadd.f32 0.0, %v804
        %v806 = vpop.f32.mrb[0].mxu0
        %807 = vmatprep.mubr.bf16.mxu0 0
        %808 = vmatmul.mubr.bf16.gmra.mrb[0].mxu0 %v669
        %v809 = vpop.f32.mrb[0].mxu0
        %v810 = vadd.f32 0.0, %v809
        %v811 = vpop.f32.mrb[0].mxu0
        %v812 = vpop.f32.mrb[0].mxu0
        %v813 = vadd.f32 0.0, %v812
        %v814 = vpop.f32.mrb[0].mxu0
        %815 = vmatprep.mubr.bf16.mxu0 0
        %816 = vmatmul.mubr.bf16.gmra.mrb[0].mxu0 %v670
        %v817 = vpop.f32.mrb[0].mxu0
        %v818 = vadd.f32 0.0, %v817
        %v819 = vpop.f32.mrb[0].mxu0
        %v820 = vpop.f32.mrb[0].mxu0
        %v821 = vadd.f32 0.0, %v820
        %v822 = vpop.f32.mrb[0].mxu0
        %823 = vdwg.mxu0
        %v840 = vunpack.c.l.b16 %v565
        %v841 = vunpack.c.l.b16 %v566
        %v842 = vunpack.c.l.b16 %v567
        %v843 = vunpack.c.l.b16 %v568
        %v844 = vunpack.c.l.b16 %v569
        %v845 = vunpack.c.l.b16 %v570
        %v846 = vunpack.c.l.b16 %v571
        %v847 = vunpack.c.l.b16 %v572
        %v848 = vunpack.c.l.b16 %v573
        %v849 = vunpack.c.l.b16 %v574
        %v850 = vunpack.c.l.b16 %v575
        %v851 = vunpack.c.l.b16 %v576
        %v852 = vunpack.c.l.b16 %v577
        %v853 = vunpack.c.l.b16 %v578
        %v854 = vunpack.c.l.b16 %v579
        %v855 = vunpack.c.l.b16 %v580
        %v856 = vpack.c.b16 %v841, %v840
        %v857 = vpack.c.b16 %v843, %v842
        %v858 = vpack.c.b16 %v845, %v844
        %v859 = vpack.c.b16 %v847, %v846
        %v860 = vpack.c.b16 %v849, %v848
        %v861 = vpack.c.b16 %v851, %v850
        %v862 = vpack.c.b16 %v853, %v852
        %v863 = vpack.c.b16 %v855, %v854
        %v888 = vunpack.c.l.b16 %v581
        %v889 = vunpack.c.l.b16 %v582
        %v890 = vunpack.c.l.b16 %v583
        %v891 = vunpack.c.l.b16 %v584
        %v892 = vunpack.c.l.b16 %v585
        %v893 = vunpack.c.l.b16 %v586
        %v894 = vunpack.c.l.b16 %v587
        %v895 = vunpack.c.l.b16 %v588
        %v896 = vunpack.c.l.b16 %v589
        %v897 = vunpack.c.l.b16 %v590
        %v898 = vunpack.c.l.b16 %v591
        %v899 = vunpack.c.l.b16 %v592
        %v900 = vunpack.c.l.b16 %v593
        %v901 = vunpack.c.l.b16 %v594
        %v902 = vunpack.c.l.b16 %v595
        %v903 = vunpack.c.l.b16 %v596
        %v904 = vpack.c.b16 %v889, %v888
        %v905 = vpack.c.b16 %v891, %v890
        %v906 = vpack.c.b16 %v893, %v892
        %v907 = vpack.c.b16 %v895, %v894
        %v908 = vpack.c.b16 %v897, %v896
        %v909 = vpack.c.b16 %v899, %v898
        %v910 = vpack.c.b16 %v901, %v900
        %v911 = vpack.c.b16 %v903, %v902
        %920 = vmatprep.subr.bf16.mxu0 0
        %921 = vmatpush1.bf16.msra.mxu0 %v904
        %922 = vmatprep.subr.bf16.mxu0 0
        %923 = vmatpush1.bf16.msra.mxu0 %v905
        %924 = vmatprep.subr.bf16.mxu0 0
        %925 = vmatpush1.bf16.msra.mxu0 %v906
        %926 = vmatprep.subr.bf16.mxu0 0
        %927 = vmatpush1.bf16.msra.mxu0 %v907
        %928 = vmatprep.subr.bf16.mxu0 0
        %929 = vmatpush1.bf16.msra.mxu0 %v908
        %930 = vmatprep.subr.bf16.mxu0 0
        %931 = vmatpush1.bf16.msra.mxu0 %v909
        %932 = vmatprep.subr.bf16.mxu0 0
        %933 = vmatpush1.bf16.msra.mxu0 %v910
        %934 = vmatprep.subr.bf16.mxu0 0
        %935 = vmatpush1.bf16.msra.mxu0 %v911
        %936 = vmatprep.subr.bf16.mxu0 0
        %937 = vmatpush1.bf16.msra.mxu0 0
        %938 = vmatprep.subr.bf16.mxu0 0
        %939 = vmatpush1.bf16.msra.mxu0 0
        %940 = vmatprep.subr.bf16.mxu0 0
        %941 = vmatpush1.bf16.msra.mxu0 0
        %942 = vmatprep.subr.bf16.mxu0 0
        %943 = vmatpush1.bf16.msra.mxu0 0
        %944 = vmatprep.subr.bf16.mxu0 0
        %945 = vmatpush1.bf16.msra.mxu0 0
        %946 = vmatprep.subr.bf16.mxu0 0
        %947 = vmatpush1.bf16.msra.mxu0 0
        %948 = vmatprep.subr.bf16.mxu0 0
        %949 = vmatpush1.bf16.msra.mxu0 0
        %950 = vmatprep.subr.bf16.mxu0 0
        %951 = vmatpush1.bf16.msra.mxu0 0
        %952 = vmatprep.mubr.bf16.mxu0 0
        %953 = vmatmul.mubr.bf16.gmra.mrb[0].mxu0 %v856
        %v954 = vpop.f32.mrb[0].mxu0
        %v955 = vadd.f32 %v762, %v954
        %v956 = vpop.f32.mrb[0].mxu0
        %v957 = vpop.f32.mrb[0].mxu0
        %v958 = vadd.f32 %v765, %v957
        %v959 = vpop.f32.mrb[0].mxu0
        %960 = vmatprep.mubr.bf16.mxu0 0
        %961 = vmatmul.mubr.bf16.gmra.mrb[0].mxu0 %v857
        %v962 = vpop.f32.mrb[0].mxu0
        %v963 = vadd.f32 %v770, %v962
        %v964 = vpop.f32.mrb[0].mxu0
        %v965 = vpop.f32.mrb[0].mxu0
        %v966 = vadd.f32 %v773, %v965
        %v967 = vpop.f32.mrb[0].mxu0
        %968 = vmatprep.mubr.bf16.mxu0 0
        %969 = vmatmul.mubr.bf16.gmra.mrb[0].mxu0 %v858
        %v970 = vpop.f32.mrb[0].mxu0
        %v971 = vadd.f32 %v778, %v970
        %v972 = vpop.f32.mrb[0].mxu0
        %v973 = vpop.f32.mrb[0].mxu0
        %v974 = vadd.f32 %v781, %v973
        %v975 = vpop.f32.mrb[0].mxu0
        %976 = vmatprep.mubr.bf16.mxu0 0
        %977 = vmatmul.mubr.bf16.gmra.mrb[0].mxu0 %v859
        %v978 = vpop.f32.mrb[0].mxu0
        %v979 = vadd.f32 %v786, %v978
        %v980 = vpop.f32.mrb[0].mxu0
        %v981 = vpop.f32.mrb[0].mxu0
        %v982 = vadd.f32 %v789, %v981
        %v983 = vpop.f32.mrb[0].mxu0
        %984 = vmatprep.mubr.bf16.mxu0 0
        %985 = vmatmul.mubr.bf16.gmra.mrb[0].mxu0 %v860
        %v986 = vpop.f32.mrb[0].mxu0
        %v987 = vadd.f32 %v794, %v986
        %v988 = vpop.f32.mrb[0].mxu0
        %v989 = vpop.f32.mrb[0].mxu0
        %v990 = vadd.f32 %v797, %v989
        %v991 = vpop.f32.mrb[0].mxu0
        %992 = vmatprep.mubr.bf16.mxu0 0
        %993 = vmatmul.mubr.bf16.gmra.mrb[0].mxu0 %v861
        %v994 = vpop.f32.mrb[0].mxu0
        %v995 = vadd.f32 %v802, %v994
        %v996 = vpop.f32.mrb[0].mxu0
        %v997 = vpop.f32.mrb[0].mxu0
        %v998 = vadd.f32 %v805, %v997
        %v999 = vpop.f32.mrb[0].mxu0
        %1000 = vmatprep.mubr.bf16.mxu0 0
        %1001 = vmatmul.mubr.bf16.gmra.mrb[0].mxu0 %v862
        %v1002 = vpop.f32.mrb[0].mxu0
        %v1003 = vadd.f32 %v810, %v1002
        %v1004 = vpop.f32.mrb[0].mxu0
        %v1005 = vpop.f32.mrb[0].mxu0
        %v1006 = vadd.f32 %v813, %v1005
        %v1007 = vpop.f32.mrb[0].mxu0
        %1008 = vmatprep.mubr.bf16.mxu0 0
        %1009 = vmatmul.mubr.bf16.gmra.mrb[0].mxu0 %v863
        %v1010 = vpop.f32.mrb[0].mxu0
        %v1011 = vadd.f32 %v818, %v1010
        %v1012 = vpop.f32.mrb[0].mxu0
        %v1013 = vpop.f32.mrb[0].mxu0
        %v1014 = vadd.f32 %v821, %v1013
        %v1015 = vpop.f32.mrb[0].mxu0
        %1016 = vdwg.mxu0
        %v1017 = vld [vmem:[%s555] sm:$0x1]
        %vm1018 = vsmask.f32 7424
        %v1020 = vshrl.u32 %v856, 16
        %v1022 = vshll.u32 %v856, 16
        %v1024 = vrot.slane %v1022, 1
        %v1025 = vor.u32 %v1020, %v1024
        %v1027 = vshll.u32 %v857, 16
        %v1029 = vrot.slane %v1027, 1
        %v1030 = vsel %vm1018, %v1025, %v1029
        %v1031 = vshrl.u32 %v857, 16
        %v1033 = vor.u32 %v1031, %v1029
        %v1035 = vshll.u32 %v858, 16
        %v1037 = vrot.slane %v1035, 1
        %v1038 = vsel %vm1018, %v1033, %v1037
        %v1039 = vshrl.u32 %v858, 16
        %v1041 = vor.u32 %v1039, %v1037
        %v1043 = vshll.u32 %v859, 16
        %v1045 = vrot.slane %v1043, 1
        %v1046 = vsel %vm1018, %v1041, %v1045
        %v1047 = vshrl.u32 %v859, 16
        %v1049 = vor.u32 %v1047, %v1045
        %v1051 = vshll.u32 %v860, 16
        %v1053 = vrot.slane %v1051, 1
        %v1054 = vsel %vm1018, %v1049, %v1053
        %v1055 = vshrl.u32 %v860, 16
        %v1057 = vor.u32 %v1055, %v1053
        %v1059 = vshll.u32 %v861, 16
        %v1061 = vrot.slane %v1059, 1
        %v1062 = vsel %vm1018, %v1057, %v1061
        %v1063 = vshrl.u32 %v861, 16
        %v1065 = vor.u32 %v1063, %v1061
        %v1067 = vshll.u32 %v862, 16
        %v1069 = vrot.slane %v1067, 1
        %v1070 = vsel %vm1018, %v1065, %v1069
        %v1071 = vshrl.u32 %v862, 16
        %v1073 = vor.u32 %v1071, %v1069
        %v1075 = vshll.u32 %v863, 16
        %v1077 = vrot.slane %v1075, 1
        %v1078 = vsel %vm1018, %v1073, %v1077
        %v1079 = vshrl.u32 %v863, 16
        %v1081 = vor.u32 %v1079, %v1077
        %v1091 = vunpack.c.l.b16 %v1017
        %v1092 = vpack.c.b16 %v1091, %v1091
        %v1094 = vshll.u32 %v1092, 16
        %v1096 = vrot.slane %v1094, 1
        %vm1098 = vcmask 1047552
        %vm1099 = vmand %vm1098, %vm1018
        %v1100 = vsel %vm1099, %v1081, %v1096
        %s1101 = scalar_lea.vmem %s2, 128
        %v1102 = vld [vmem:[%s1101] sm:$0xf]
        %v1103 = vld [vmem:[%s1101 + $0x4] sm:$0xf]
        %v1104 = vld [vmem:[%s1101 + $0x8] sm:$0xf]
        %v1105 = vld [vmem:[%s1101 + $0xc] sm:$0xf]
        %v1106 = vld [vmem:[%s1101 + $0x10] sm:$0xf]
        %v1107 = vld [vmem:[%s1101 + $0x14] sm:$0xf]
        %v1108 = vld [vmem:[%s1101 + $0x18] sm:$0xf]
        %v1109 = vld [vmem:[%s1101 + $0x1c] sm:$0xf]
        %v1110 = vld [vmem:[%s1101 + $0x20] sm:$0xf]
        %v1111 = vld [vmem:[%s1101 + $0x24] sm:$0xf]
        %v1112 = vld [vmem:[%s1101 + $0x28] sm:$0xf]
        %v1113 = vld [vmem:[%s1101 + $0x2c] sm:$0xf]
        %v1114 = vld [vmem:[%s1101 + $0x30] sm:$0xf]
        %v1115 = vld [vmem:[%s1101 + $0x34] sm:$0xf]
        %v1116 = vld [vmem:[%s1101 + $0x38] sm:$0xf]
        %v1117 = vld [vmem:[%s1101 + $0x3c] sm:$0xf]
        %v1134 = vunpack.c.l.b16 %v1102
        %v1135 = vunpack.c.l.b16 %v1103
        %v1136 = vunpack.c.l.b16 %v1104
        %v1137 = vunpack.c.l.b16 %v1105
        %v1138 = vunpack.c.l.b16 %v1106
        %v1139 = vunpack.c.l.b16 %v1107
        %v1140 = vunpack.c.l.b16 %v1108
        %v1141 = vunpack.c.l.b16 %v1109
        %v1142 = vunpack.c.l.b16 %v1110
        %v1143 = vunpack.c.l.b16 %v1111
        %v1144 = vunpack.c.l.b16 %v1112
        %v1145 = vunpack.c.l.b16 %v1113
        %v1146 = vunpack.c.l.b16 %v1114
        %v1147 = vunpack.c.l.b16 %v1115
        %v1148 = vunpack.c.l.b16 %v1116
        %v1149 = vunpack.c.l.b16 %v1117
        %v1150 = vpack.c.b16 %v1135, %v1134
        %v1151 = vpack.c.b16 %v1137, %v1136
        %v1152 = vpack.c.b16 %v1139, %v1138
        %v1153 = vpack.c.b16 %v1141, %v1140
        %v1154 = vpack.c.b16 %v1143, %v1142
        %v1155 = vpack.c.b16 %v1145, %v1144
        %v1156 = vpack.c.b16 %v1147, %v1146
        %v1157 = vpack.c.b16 %v1149, %v1148
        %1166 = vmatprep.subr.bf16.mxu0 0
        %1167 = vmatpush1.bf16.msra.mxu0 %v1150
        %1168 = vmatprep.subr.bf16.mxu0 0
        %1169 = vmatpush1.bf16.msra.mxu0 %v1151
        %1170 = vmatprep.subr.bf16.mxu0 0
        %1171 = vmatpush1.bf16.msra.mxu0 %v1152
        %1172 = vmatprep.subr.bf16.mxu0 0
        %1173 = vmatpush1.bf16.msra.mxu0 %v1153
        %1174 = vmatprep.subr.bf16.mxu0 0
        %1175 = vmatpush1.bf16.msra.mxu0 %v1154
        %1176 = vmatprep.subr.bf16.mxu0 0
        %1177 = vmatpush1.bf16.msra.mxu0 %v1155
        %1178 = vmatprep.subr.bf16.mxu0 0
        %1179 = vmatpush1.bf16.msra.mxu0 %v1156
        %1180 = vmatprep.subr.bf16.mxu0 0
        %1181 = vmatpush1.bf16.msra.mxu0 %v1157
        %1182 = vmatprep.subr.bf16.mxu0 0
        %1183 = vmatpush1.bf16.msra.mxu0 0
        %1184 = vmatprep.subr.bf16.mxu0 0
        %1185 = vmatpush1.bf16.msra.mxu0 0
        %1186 = vmatprep.subr.bf16.mxu0 0
        %1187 = vmatpush1.bf16.msra.mxu0 0
        %1188 = vmatprep.subr.bf16.mxu0 0
        %1189 = vmatpush1.bf16.msra.mxu0 0
        %1190 = vmatprep.subr.bf16.mxu0 0
        %1191 = vmatpush1.bf16.msra.mxu0 0
        %1192 = vmatprep.subr.bf16.mxu0 0
        %1193 = vmatpush1.bf16.msra.mxu0 0
        %1194 = vmatprep.subr.bf16.mxu0 0
        %1195 = vmatpush1.bf16.msra.mxu0 0
        %1196 = vmatprep.subr.bf16.mxu0 0
        %1197 = vmatpush1.bf16.msra.mxu0 0
        %1198 = vmatprep.mubr.bf16.mxu0 0
        %1199 = vmatmul.mubr.bf16.gmra.mrb[0].mxu0 %v1030
        %v1200 = vpop.f32.mrb[0].mxu0
        %v1201 = vadd.f32 0.0, %v1200
        %v1202 = vpop.f32.mrb[0].mxu0
        %v1203 = vpop.f32.mrb[0].mxu0
        %v1204 = vadd.f32 0.0, %v1203
        %v1205 = vpop.f32.mrb[0].mxu0
        %1206 = vmatprep.mubr.bf16.mxu0 0
        %1207 = vmatmul.mubr.bf16.gmra.mrb[0].mxu0 %v1038
        %v1208 = vpop.f32.mrb[0].mxu0
        %v1209 = vadd.f32 0.0, %v1208
        %v1210 = vpop.f32.mrb[0].mxu0
        %v1211 = vpop.f32.mrb[0].mxu0
        %v1212 = vadd.f32 0.0, %v1211
        %v1213 = vpop.f32.mrb[0].mxu0
        %1214 = vmatprep.mubr.bf16.mxu0 0
        %1215 = vmatmul.mubr.bf16.gmra.mrb[0].mxu0 %v1046
        %v1216 = vpop.f32.mrb[0].mxu0
        %v1217 = vadd.f32 0.0, %v1216
        %v1218 = vpop.f32.mrb[0].mxu0
        %v1219 = vpop.f32.mrb[0].mxu0
        %v1220 = vadd.f32 0.0, %v1219
        %v1221 = vpop.f32.mrb[0].mxu0
        %1222 = vmatprep.mubr.bf16.mxu0 0
        %1223 = vmatmul.mubr.bf16.gmra.mrb[0].mxu0 %v1054
        %v1224 = vpop.f32.mrb[0].mxu0
        %v1225 = vadd.f32 0.0, %v1224
        %v1226 = vpop.f32.mrb[0].mxu0
        %v1227 = vpop.f32.mrb[0].mxu0
        %v1228 = vadd.f32 0.0, %v1227
        %v1229 = vpop.f32.mrb[0].mxu0
        %1230 = vmatprep.mubr.bf16.mxu0 0
        %1231 = vmatmul.mubr.bf16.gmra.mrb[0].mxu0 %v1062
        %v1232 = vpop.f32.mrb[0].mxu0
        %v1233 = vadd.f32 0.0, %v1232
        %v1234 = vpop.f32.mrb[0].mxu0
        %v1235 = vpop.f32.mrb[0].mxu0
        %v1236 = vadd.f32 0.0, %v1235
        %v1237 = vpop.f32.mrb[0].mxu0
        %1238 = vmatprep.mubr.bf16.mxu0 0
        %1239 = vmatmul.mubr.bf16.gmra.mrb[0].mxu0 %v1070
        %v1240 = vpop.f32.mrb[0].mxu0
        %v1241 = vadd.f32 0.0, %v1240
        %v1242 = vpop.f32.mrb[0].mxu0
        %v1243 = vpop.f32.mrb[0].mxu0
        %v1244 = vadd.f32 0.0, %v1243
        %v1245 = vpop.f32.mrb[0].mxu0
        %1246 = vmatprep.mubr.bf16.mxu0 0
        %1247 = vmatmul.mubr.bf16.gmra.mrb[0].mxu0 %v1078
        %v1248 = vpop.f32.mrb[0].mxu0
        %v1249 = vadd.f32 0.0, %v1248
        %v1250 = vpop.f32.mrb[0].mxu0
        %v1251 = vpop.f32.mrb[0].mxu0
        %v1252 = vadd.f32 0.0, %v1251
        %v1253 = vpop.f32.mrb[0].mxu0
        %1254 = vmatprep.mubr.bf16.mxu0 0
        %1255 = vmatmul.mubr.bf16.gmra.mrb[0].mxu0 %v1100
        %v1256 = vpop.f32.mrb[0].mxu0
        %v1257 = vadd.f32 0.0, %v1256
        %v1258 = vpop.f32.mrb[0].mxu0
        %v1259 = vpop.f32.mrb[0].mxu0
        %v1260 = vadd.f32 0.0, %v1259
        %v1261 = vpop.f32.mrb[0].mxu0
        %1262 = vdwg.mxu0
        %v1263 = vadd.f32 %v955, %v1201
        %v1264 = vadd.f32 %v958, %v1204
        %v1265 = vadd.f32 %v963, %v1209
        %v1266 = vadd.f32 %v966, %v1212
        %v1267 = vadd.f32 %v971, %v1217
        %v1268 = vadd.f32 %v974, %v1220
        %v1269 = vadd.f32 %v979, %v1225
        %v1270 = vadd.f32 %v982, %v1228
        %v1271 = vadd.f32 %v987, %v1233
        %v1272 = vadd.f32 %v990, %v1236
        %v1273 = vadd.f32 %v995, %v1241
        %v1274 = vadd.f32 %v998, %v1244
        %v1275 = vadd.f32 %v1003, %v1249
        %v1276 = vadd.f32 %v1006, %v1252
        %v1277 = vadd.f32 %v1011, %v1257
        %v1278 = vadd.f32 %v1014, %v1260
        %v1279 = vld [vmem:[%s3] sm:$0x1]
        %v1281 = vlaneseq
        %v1282 = vshrl.u32 %v1281, 7
        %v1283 = vsub.s32 0, %v1282
        %v1284 = vrot.slane %v1279, %v1283
        %v1286 = vmul.f32 %v1263, %v1284
        %v1287 = vmul.f32 %v1264, %v1284
        %v1288 = vmul.f32 %v1265, %v1284
        %v1289 = vmul.f32 %v1266, %v1284
        %v1290 = vmul.f32 %v1267, %v1284
        %v1291 = vmul.f32 %v1268, %v1284
        %v1292 = vmul.f32 %v1269, %v1284
        %v1293 = vmul.f32 %v1270, %v1284
        %v1294 = vmul.f32 %v1271, %v1284
        %v1295 = vmul.f32 %v1272, %v1284
        %v1296 = vmul.f32 %v1273, %v1284
        %v1297 = vmul.f32 %v1274, %v1284
        %v1298 = vmul.f32 %v1275, %v1284
        %v1299 = vmul.f32 %v1276, %v1284
        %v1300 = vmul.f32 %v1277, %v1284
        %v1301 = vmul.f32 %v1278, %v1284
        %v1302 = vld [vmem:[%s4] sm:$0x1]
        %v1304 = vlaneseq
        %v1305 = vshrl.u32 %v1304, 7
        %v1306 = vsub.s32 0, %v1305
        %v1307 = vrot.slane %v1302, %v1306
        %v1309 = vadd.f32 %v1286, %v1307
        %v1310 = vadd.f32 %v1287, %v1307
        %v1311 = vadd.f32 %v1288, %v1307
        %v1312 = vadd.f32 %v1289, %v1307
        %v1313 = vadd.f32 %v1290, %v1307
        %v1314 = vadd.f32 %v1291, %v1307
        %v1315 = vadd.f32 %v1292, %v1307
        %v1316 = vadd.f32 %v1293, %v1307
        %v1317 = vadd.f32 %v1294, %v1307
        %v1318 = vadd.f32 %v1295, %v1307
        %v1319 = vadd.f32 %v1296, %v1307
        %v1320 = vadd.f32 %v1297, %v1307
        %v1321 = vadd.f32 %v1298, %v1307
        %v1322 = vadd.f32 %v1299, %v1307
        %v1323 = vadd.f32 %v1300, %v1307
        %v1324 = vadd.f32 %v1301, %v1307
        %1325 = vxpose.xlu0.b32.start [1/16] %v1309, 128
        %1326 = vxpose.xlu0.b32.cont [2/16] %v1310, 128
        %1327 = vxpose.xlu0.b32.cont [3/16] %v1311, 128
        %1328 = vxpose.xlu0.b32.cont [4/16] %v1312, 128
        %1329 = vxpose.xlu0.b32.cont [5/16] %v1313, 128
        %1330 = vxpose.xlu0.b32.cont [6/16] %v1314, 128
        %1331 = vxpose.xlu0.b32.cont [7/16] %v1315, 128
        %1332 = vxpose.xlu0.b32.cont [8/16] %v1316, 128
        %1333 = vxpose.xlu0.b32.cont [9/16] %v1317, 128
        %1334 = vxpose.xlu0.b32.cont [10/16] %v1318, 128
        %1335 = vxpose.xlu0.b32.cont [11/16] %v1319, 128
        %1336 = vxpose.xlu0.b32.cont [12/16] %v1320, 128
        %1337 = vxpose.xlu0.b32.cont [13/16] %v1321, 128
        %1338 = vxpose.xlu0.b32.cont [14/16] %v1322, 128
        %1339 = vxpose.xlu0.b32.cont [15/16] %v1323, 128
        %1340 = vxpose.xlu0.b32.end [16/16] %v1324, 128
        %v1341 = vpop.trf.xlu0
        %v1342 = vpop.trf.xlu0
        %v1343 = vpop.trf.xlu0
        %v1344 = vpop.trf.xlu0
        %v1345 = vpop.trf.xlu0
        %v1346 = vpop.trf.xlu0
        %v1347 = vpop.trf.xlu0
        %v1348 = vpop.trf.xlu0
        %v1349 = vpop.trf.xlu0
        %v1350 = vpop.trf.xlu0
        %v1351 = vpop.trf.xlu0
        %v1352 = vpop.trf.xlu0
        %v1353 = vpop.trf.xlu0
        %v1354 = vpop.trf.xlu0
        %v1355 = vpop.trf.xlu0
        %v1356 = vpop.trf.xlu0
        %1357 = vst [vmem:[%s563] sm:$0xff] %v1341
        %1358 = vst [vmem:[%s563 + $0x8] sm:$0xff] %v1342
        %1359 = vst [vmem:[%s563 + $0x10] sm:$0xff] %v1343
        %1360 = vst [vmem:[%s563 + $0x18] sm:$0xff] %v1344
        %1361 = vst [vmem:[%s563 + $0x20] sm:$0xff] %v1345
        %1362 = vst [vmem:[%s563 + $0x28] sm:$0xff] %v1346
        %1363 = vst [vmem:[%s563 + $0x30] sm:$0xff] %v1347
        %1364 = vst [vmem:[%s563 + $0x38] sm:$0xff] %v1348
        %1365 = vst [vmem:[%s563 + $0x40] sm:$0xff] %v1349
        %1366 = vst [vmem:[%s563 + $0x48] sm:$0xff] %v1350
        %1367 = vst [vmem:[%s563 + $0x50] sm:$0xff] %v1351
        %1368 = vst [vmem:[%s563 + $0x58] sm:$0xff] %v1352
        %1369 = vst [vmem:[%s563 + $0x60] sm:$0xff] %v1353
        %1370 = vst [vmem:[%s563 + $0x68] sm:$0xff] %v1354
        %1371 = vst [vmem:[%s563 + $0x70] sm:$0xff] %v1355
        %1372 = vst [vmem:[%s563 + $0x78] sm:$0xff] %v1356
        %p1373 = scmp.lt.s32.totalorder %s20, 1
        %s1374 = scalar_select %p1373, %s20, 1
        %p1375 = scmp.lt.s32.totalorder %s21, 0
        %s1376 = scalar_select %p1375, %s21, 0
        %s1377 = smul.addr %s1374, 16
        %s1378 = sadd.s32 %s1376, %s1377
        %s1379 = smul.addr %s1378, 8
        %s1380 = scalar_lea.vmem %s5, %s1379
        // Predicated region
        $region103: #{basic_block_forward.3} parent=97 // pred_check
          %p1381 = pneg %p167
        $region104: #{basic_block_forward.3} parent=97 // pred_check_branch
          %1383 = sbr.rel (%p1381) target = $region106
        $region105: #{basic_block_forward.3} parent=97 // pred_region
          _
        $region106: #{basic_block_forward.3} parent=97 // pred_fallthru
          _
      $region98: #{basic_block_forward.3} parent=5 // pred_fallthru
        _
      %p1384 = scmp.le.s32.totalorder 2, %s11
      // Predicated region
      $region107: #{basic_block_forward.3} parent=5 // pred_check
        %p1385 = pneg %p1384
      $region108: #{basic_block_forward.3} parent=5 // pred_check_branch
        %1387 = sbr.rel (%p1385) target = $region110
      $region109: #{basic_block_forward.3} parent=5 // pred_region
        %s1388 = ssub.s32 %s11, 2
        // Predicated region
        $region111: #{basic_block_forward.3} parent=109 // pred_check
          %p1389 = pneg %p173
        $region112: #{basic_block_forward.3} parent=109 // pred_check_branch
          %1391 = sbr.rel (%p1389) target = $region114
        $region113: #{basic_block_forward.3} parent=109 // pred_region
          %p1392 = scmp.lt.s32.totalorder %s22, 1
          %s1393 = scalar_select %p1392, %s22, 1
          %p1394 = scmp.lt.s32.totalorder %s23, 0
          %s1395 = scalar_select %p1394, %s23, 0
          %s1396 = smul.addr %s1393, 16
          %s1397 = sadd.s32 %s1395, %s1396
          %s1398 = smul.addr %s1397, 8
          %s1399 = scalar_lea.vmem %s5, %s1398
        $region114: #{basic_block_forward.3} parent=109 // pred_fallthru
          _
      $region110: #{basic_block_forward.3} parent=5 // pred_fallthru
        _
    $region6: #{basic_block_forward.3} parent=1 // loop_footer
      %s15 = sadd.s32 1, %s11
    $region7: #{basic_block_forward.3} parent=1 // loop_footer_branch
      %10 = sbr.rel target = $region3
    $region8: #{basic_block_forward.3} parent=1 // loop_exit
      _

// kernel: basic_block_forward.2
$region0: #{basic_block_forward.2}
  #allocation0 [shape = 'u32[]', space=smem, size = 0x4, offset = 0x4, fixed_abs, tag = 'smem constant byte address 0x4 - core index']
  #allocation1 [shape = 'u32[144,128]{1,0:T(1,128)}', space=vmem, size = 0x12000, scoped, tag = 'internal scratch']
  %s0 = inlined_call_operand.vmem [shape: bf16[2,2,144,128], index: 0, kind: input, shape index: {}]
  %s1 = inlined_call_operand.vmem [shape: bf16[2,1,32,128], index: 1, kind: input, shape index: {}]
  %s2 = inlined_call_operand.vmem [shape: bf16[3,128,128], index: 2, kind: input, shape index: {}]
  %s3 = inlined_call_operand.vmem [shape: f32[2,1,1,128], index: 3, kind: output, shape index: {0}]
  %s4 = inlined_call_operand.vmem [shape: f32[2,1,1,128], index: 4, kind: output, shape index: {1}]
  %5 = xla_tuple %s3, %s4
  %s6 = sld [smem:[#allocation0]]
  $region119: #{basic_block_forward.2} parent=0
    _
  %s8 = ssub.s32 1, %s6
  %s9 = scalar_select 0, %s8, %s6
  $region1: #{basic_block_forward.2} parent=0
    #allocation2 [shape = 'u8[131072]{0}', space=vmem, size = 0x20000, scoped, tag = 'input window, operand 0']
    loop: start=0, step=1, limit=4
    $region2: #{basic_block_forward.2} parent=1 // loop_pre_header
      _
    $region3: #{basic_block_forward.2} parent=1 // loop_header
      %s11 = sphi 0, %s15
      %p12 = scmp.ge.s32.totalorder %s11, 4
      %s18 = sphi 0, %s30
      %s19 = sphi 0, %s26
      %s20 = sphi 0, %s18
      %s21 = sphi 0, %s19
      %s22 = sphi 0, %s20
      %s23 = sphi 0, %s21
      %s35 = sphi 0, %s37
      %s38 = sphi 0, %s35
      %s39 = sphi 0, %s38
      %s55 = sphi 0, %s39
      %s63 = sphi 0, %s65
      %s66 = sphi 0, %s63
      %s67 = sphi 0, %s66
      %s83 = sphi 0, %s67
      %s87 = sphi 0, %s87
      %s89 = sphi 0, %s87
      %s90 = sphi 0, %s89
      %s104 = sphi 0, %s90
      %s112 = sphi 0, %s114
      %s115 = sphi 0, %s112
      %s116 = sphi 0, %s115
      %s132 = sphi 0, %s116
      %s140 = sphi 0, %s142
      %s143 = sphi 0, %s140
      %s144 = sphi 0, %s143
      %s160 = sphi 0, %s144
    $region4: #{basic_block_forward.2} parent=1 // loop_header_branch
      %14 = sbr.rel (%p12) target = $region8
    $region5: #{basic_block_forward.2} parent=1 // loop_body
      %s16 = ssub.s32 %s11, 1
      %s17 = ssub.s32 %s11, 2
      %s24 = sadd.s32 1, %s19
      %p25 = scmp.ge.s32.totalorder %s24, 1
      %s26 = scalar_select %p25, 0, %s24
      %s27 = sadd.s32 1, %s18
      %s28 = scalar_select %p25, %s27, %s18
      %p29 = scmp.ge.s32.totalorder %s28, 2
      %s30 = scalar_select %p29, 0, %s28
      %s31 = ssub.s32 %s18, %s30
      %s32 = ssub.s32 %s19, %s26
      %s33 = sor.u32 %s31, %s32
      %p34 = scmp.eq.s32.totalorder %s33, 0
      %s36 = sadd.s32 %s35, 1
      %s37 = scalar_select %p34, %s35, %s36
      %p40 = pneg %p34
      %p41 = scmp.eq.s32.totalorder %s11, 1
      %p42 = por %p40, %p41
      %p43 = scmp.ne.s32.totalorder %s35, %s38
      %p44 = scmp.eq.s32.totalorder %s11, 0
      %p45 = por %p43, %p44
      %p46 = scmp.ne.s32.totalorder %s35, %s38
      %p47 = scmp.eq.s32.totalorder %s16, 1
      %p48 = por %p46, %p47
      %p49 = scmp.ne.s32.totalorder %s38, %s39
      %p50 = scmp.eq.s32.totalorder %s16, 0
      %p51 = por %p49, %p50
      %p52 = scmp.ne.s32.totalorder %s38, %s39
      %p53 = scmp.eq.s32.totalorder %s17, 1
      %p54 = por %p52, %p53
      %p56 = scmp.ne.s32.totalorder %s39, %s55
      %p57 = scmp.eq.s32.totalorder %s17, 0
      %p58 = por %p56, %p57
      %s59 = ssub.s32 %s18, %s30
      %s60 = ssub.s32 %s19, %s26
      %s61 = sor.u32 %s59, %s60
      %p62 = scmp.eq.s32.totalorder %s61, 0
      %s64 = sadd.s32 %s63, 1
      %s65 = scalar_select %p62, %s63, %s64
      %p68 = pneg %p62
      %p69 = scmp.eq.s32.totalorder %s11, 1
      %p70 = por %p68, %p69
      %p71 = scmp.ne.s32.totalorder %s63, %s66
      %p72 = scmp.eq.s32.totalorder %s11, 0
      %p73 = por %p71, %p72
      %p74 = scmp.ne.s32.totalorder %s63, %s66
      %p75 = scmp.eq.s32.totalorder %s16, 1
      %p76 = por %p74, %p75
      %p77 = scmp.ne.s32.totalorder %s66, %s67
      %p78 = scmp.eq.s32.totalorder %s16, 0
      %p79 = por %p77, %p78
      %p80 = scmp.ne.s32.totalorder %s66, %s67
      %p81 = scmp.eq.s32.totalorder %s17, 1
      %p82 = por %p80, %p81
      %p84 = scmp.ne.s32.totalorder %s67, %s83
      %p85 = scmp.eq.s32.totalorder %s17, 0
      %p86 = por %p84, %p85
      %s88 = sadd.s32 %s87, 1
      %p91 = scmp.eq.s32.totalorder %s11, 1
      %p92 = scmp.ne.s32.totalorder %s87, %s89
      %p93 = scmp.eq.s32.totalorder %s11, 0
      %p94 = por %p92, %p93
      %p95 = scmp.ne.s32.totalorder %s87, %s89
      %p96 = scmp.eq.s32.totalorder %s16, 1
      %p97 = por %p95, %p96
      %p98 = scmp.ne.s32.totalorder %s89, %s90
      %p99 = scmp.eq.s32.totalorder %s16, 0
      %p100 = por %p98, %p99
      %p101 = scmp.ne.s32.totalorder %s89, %s90
      %p102 = scmp.eq.s32.totalorder %s17, 1
      %p103 = por %p101, %p102
      %p105 = scmp.ne.s32.totalorder %s90, %s104
      %p106 = scmp.eq.s32.totalorder %s17, 0
      %p107 = por %p105, %p106
      %s108 = ssub.s32 %s18, %s30
      %s109 = ssub.s32 %s19, %s26
      %s110 = sor.u32 %s108, %s109
      %p111 = scmp.eq.s32.totalorder %s110, 0
      %s113 = sadd.s32 %s112, 1
      %s114 = scalar_select %p111, %s112, %s113
      %p117 = pneg %p111
      %p118 = scmp.eq.s32.totalorder %s11, 1
      %p119 = por %p117, %p118
      %p120 = scmp.ne.s32.totalorder %s112, %s115
      %p121 = scmp.eq.s32.totalorder %s11, 0
      %p122 = por %p120, %p121
      %p123 = scmp.ne.s32.totalorder %s112, %s115
      %p124 = scmp.eq.s32.totalorder %s16, 1
      %p125 = por %p123, %p124
      %p126 = scmp.ne.s32.totalorder %s115, %s116
      %p127 = scmp.eq.s32.totalorder %s16, 0
      %p128 = por %p126, %p127
      %p129 = scmp.ne.s32.totalorder %s115, %s116
      %p130 = scmp.eq.s32.totalorder %s17, 1
      %p131 = por %p129, %p130
      %p133 = scmp.ne.s32.totalorder %s116, %s132
      %p134 = scmp.eq.s32.totalorder %s17, 0
      %p135 = por %p133, %p134
      %s136 = ssub.s32 %s18, %s30
      %s137 = ssub.s32 %s19, %s26
      %s138 = sor.u32 %s136, %s137
      %p139 = scmp.eq.s32.totalorder %s138, 0
      %s141 = sadd.s32 %s140, 1
      %s142 = scalar_select %p139, %s140, %s141
      %p145 = pneg %p139
      %p146 = scmp.eq.s32.totalorder %s11, 1
      %p147 = por %p145, %p146
      %p148 = scmp.ne.s32.totalorder %s140, %s143
      %p149 = scmp.eq.s32.totalorder %s11, 0
      %p150 = por %p148, %p149
      %p151 = scmp.ne.s32.totalorder %s140, %s143
      %p152 = scmp.eq.s32.totalorder %s16, 1
      %p153 = por %p151, %p152
      %p154 = scmp.ne.s32.totalorder %s143, %s144
      %p155 = scmp.eq.s32.totalorder %s16, 0
      %p156 = por %p154, %p155
      %p157 = scmp.ne.s32.totalorder %s143, %s144
      %p158 = scmp.eq.s32.totalorder %s17, 1
      %p159 = por %p157, %p158
      %p161 = scmp.ne.s32.totalorder %s144, %s160
      %p162 = scmp.eq.s32.totalorder %s17, 0
      %p163 = por %p161, %p162
      %p164 = scmp.le.s32.totalorder 1, %s11
      %p165 = scmp.lt.s32.totalorder %s11, 3
      %p166 = pnand %p164, %p165
      %p167 = pneg %p166
      // Predicated region
      $region9: #{basic_block_forward.2} parent=5 // pred_check
        _
      $region10: #{basic_block_forward.2} parent=5 // pred_check_branch
        %169 = sbr.rel (%p166) target = $region12
      $region11: #{basic_block_forward.2} parent=5 // pred_region
        %s170 = ssub.s32 %s11, 1
        // Predicated region
        $region13: #{basic_block_forward.2} parent=11 // pred_check
          %p171 = pneg %p100
        $region14: #{basic_block_forward.2} parent=11 // pred_check_branch
          %173 = sbr.rel (%p171) target = $region16
        $region15: #{basic_block_forward.2} parent=11 // pred_region
          _
        $region16: #{basic_block_forward.2} parent=11 // pred_fallthru
          _
      $region12: #{basic_block_forward.2} parent=5 // pred_fallthru
        _
      %p174 = scmp.lt.s32.totalorder %s11, 2
      // Predicated region
      $region17: #{basic_block_forward.2} parent=5 // pred_check
        %p175 = pneg %p174
      $region18: #{basic_block_forward.2} parent=5 // pred_check_branch
        %177 = sbr.rel (%p175) target = $region20
      $region19: #{basic_block_forward.2} parent=5 // pred_region
        // Predicated region
        $region21: #{basic_block_forward.2} parent=19 // pred_check
          %p178 = pneg %p45
        $region22: #{basic_block_forward.2} parent=19 // pred_check_branch
          %180 = sbr.rel (%p178) target = $region24
        $region23: #{basic_block_forward.2} parent=19 // pred_region
          %s181 = sand.u32 %s35, 1
          %s182 = sand.u32 %s35, 1
          %s183 = smul.addr %s182, 128
          %s184 = scalar_lea.vmem [#allocation2], %s183
          %s185 = smul.u32 16, %s19
          %s186 = ssub.s32 18, %s185
          %p187 = scmp.lt.s32.totalorder %s186, 16
          %s188 = scalar_select %p187, %s186, 16
          %s189 = smul.u32 128, %s188
          %p190 = scmp.ne.s32.totalorder 0, %s189
          %s191 = smul.addr %s18, 36
          %s192 = sadd.s32 %s185, %s191
          %s193 = smul.addr %s192, 4
          %s194 = scalar_lea.vmem %s0, %s193
          // Predicated region
          $region25: #{basic_block_forward.2} parent=23 // pred_check
            %p195 = pneg %p190
          $region26: #{basic_block_forward.2} parent=23 // pred_check_branch
            %197 = sbr.rel (%p195) target = $region28
          $region27: #{basic_block_forward.2} parent=23 // pred_region
            // Predicated region
            $region29: #{basic_block_forward.2} parent=27 // pred_check
              _
            $region30: #{basic_block_forward.2} parent=27 // pred_check_branch
              %199 = sbr.rel target = $region32
            $region31: #{basic_block_forward.2} parent=27 // pred_region
              // Predicated region
              $region51: #{basic_block_forward.2} parent=31 // pred_check
                _
              $region52: #{basic_block_forward.2} parent=31 // pred_check_branch
                %312 = sbr.rel (0) target = $region54
              $region53: #{basic_block_forward.2} parent=31 // pred_region
                %s313 = sshrl.u32 %s188, 4
                // While loop
                $region55: #{basic_block_forward.2} parent=53 // loop_pre_header
                  _
                $region56: #{basic_block_forward.2} parent=53 // loop_header
                  %s315 = sphi 0, %s317
                  %p316 = scmp.ge.s32.totalorder %s315, %s313
                  %s320 = sphi 0, %s325
                  %s321 = sphi %s194, %s328
                  %s322 = sphi %s184, %s329
                $region57: #{basic_block_forward.2} parent=53 // loop_header_branch
                  %319 = sbr.rel (%p316) target = $region61
                $region58: #{basic_block_forward.2} parent=53 // loop_body
                  %s323 = sadd.s32 1, %s320
                  %p324 = scmp.ge.s32.totalorder %s323, %s313
                  %s325 = scalar_select %p324, 0, %s323
                  %s326 = smul.u32 %s325, 64
                  %s327 = smul.u32 %s325, 64
                  %s328 = scalar_lea.vmem %s194, %s326
                  %s329 = scalar_lea.vmem %s184, %s327 [#allocation2]
                $region59: #{basic_block_forward.2} parent=53 // loop_footer
                  %s317 = sadd.s32 %s315, 1
                $region60: #{basic_block_forward.2} parent=53 // loop_footer_branch
                  %314 = sbr.rel target = $region56
                $region61: #{basic_block_forward.2} parent=53 // loop_exit
                  _
                %s330 = sshrl.u32 %s188, 4
                %s331 = sand.u32 %s188, 15
                %s332 = smul.u32 %s330, 16
                %s333 = smul.u32 4, %s332
                %s334 = scalar_lea.vmem %s194, %s333
                %s335 = smul.u32 4, %s332
                %s336 = scalar_lea.vmem %s184, %s335 [#allocation2]
                // While loop
                $region62: #{basic_block_forward.2} parent=53 // loop_pre_header
                  _
                $region63: #{basic_block_forward.2} parent=53 // loop_header
                  %s338 = sphi 0, %s340
                  %p339 = scmp.ge.s32.totalorder %s338, %s331
                  %s343 = sphi 0, %s348
                  %s344 = sphi %s334, %s351
                  %s345 = sphi %s336, %s352
                $region64: #{basic_block_forward.2} parent=53 // loop_header_branch
                  %342 = sbr.rel (%p339) target = $region68
                $region65: #{basic_block_forward.2} parent=53 // loop_body
                  %s346 = sadd.s32 1, %s343
                  %p347 = scmp.ge.s32.totalorder %s346, %s331
                  %s348 = scalar_select %p347, 0, %s346
                  %s349 = smul.u32 %s348, 4
                  %s350 = smul.u32 %s348, 4
                  %s351 = scalar_lea.vmem %s334, %s349
                  %s352 = scalar_lea.vmem %s336, %s350 [#allocation2]
                $region66: #{basic_block_forward.2} parent=53 // loop_footer
                  %s340 = sadd.s32 %s338, 1
                $region67: #{basic_block_forward.2} parent=53 // loop_footer_branch
                  %337 = sbr.rel target = $region63
                $region68: #{basic_block_forward.2} parent=53 // loop_exit
                  _
                %s354 = sshrl.u32 %s188, 4
                // While loop
                $region69: #{basic_block_forward.2} parent=53 // loop_pre_header
                  _
                $region70: #{basic_block_forward.2} parent=53 // loop_header
                  %s356 = sphi 0, %s358
                  %p357 = scmp.ge.s32.totalorder %s356, %s354
                  %s361 = sphi 0, %s430
                  %s362 = sphi %s194, %s433
                  %s363 = sphi %s184, %s434
                $region71: #{basic_block_forward.2} parent=53 // loop_header_branch
                  %360 = sbr.rel (%p357) target = $region75
                $region72: #{basic_block_forward.2} parent=53 // loop_body
                  %v364 = vld [vmem:[%s362] sm:$0xf]
                  %365 = vst [vmem:[%s363] sm:$0xf] %v364
                  %v366 = vld [vmem:[%s362 + $0x4] sm:$0xf]
                  %367 = vst [vmem:[%s363 + $0x4] sm:$0xf] %v366
                  %v368 = vld [vmem:[%s362 + $0x8] sm:$0xf]
                  %369 = vst [vmem:[%s363 + $0x8] sm:$0xf] %v368
                  %v370 = vld [vmem:[%s362 + $0xc] sm:$0xf]
                  %371 = vst [vmem:[%s363 + $0xc] sm:$0xf] %v370
                  %v372 = vld [vmem:[%s362 + $0x10] sm:$0xf]
                  %373 = vst [vmem:[%s363 + $0x10] sm:$0xf] %v372
                  %v374 = vld [vmem:[%s362 + $0x14] sm:$0xf]
                  %375 = vst [vmem:[%s363 + $0x14] sm:$0xf] %v374
                  %v376 = vld [vmem:[%s362 + $0x18] sm:$0xf]
                  %377 = vst [vmem:[%s363 + $0x18] sm:$0xf] %v376
                  %v378 = vld [vmem:[%s362 + $0x1c] sm:$0xf]
                  %379 = vst [vmem:[%s363 + $0x1c] sm:$0xf] %v378
                  %v380 = vld [vmem:[%s362 + $0x20] sm:$0xf]
                  %381 = vst [vmem:[%s363 + $0x20] sm:$0xf] %v380
                  %v382 = vld [vmem:[%s362 + $0x24] sm:$0xf]
                  %383 = vst [vmem:[%s363 + $0x24] sm:$0xf] %v382
                  %v384 = vld [vmem:[%s362 + $0x28] sm:$0xf]
                  %385 = vst [vmem:[%s363 + $0x28] sm:$0xf] %v384
                  %v386 = vld [vmem:[%s362 + $0x2c] sm:$0xf]
                  %387 = vst [vmem:[%s363 + $0x2c] sm:$0xf] %v386
                  %v388 = vld [vmem:[%s362 + $0x30] sm:$0xf]
                  %389 = vst [vmem:[%s363 + $0x30] sm:$0xf] %v388
                  %v390 = vld [vmem:[%s362 + $0x34] sm:$0xf]
                  %391 = vst [vmem:[%s363 + $0x34] sm:$0xf] %v390
                  %v392 = vld [vmem:[%s362 + $0x38] sm:$0xf]
                  %393 = vst [vmem:[%s363 + $0x38] sm:$0xf] %v392
                  %v394 = vld [vmem:[%s362 + $0x3c] sm:$0xf]
                  %395 = vst [vmem:[%s363 + $0x3c] sm:$0xf] %v394
                  %v396 = vld [vmem:[%s362 + $0x48] sm:$0xf]
                  %397 = vst [vmem:[%s363 + $0x40] sm:$0xf] %v396
                  %v398 = vld [vmem:[%s362 + $0x4c] sm:$0xf]
                  %399 = vst [vmem:[%s363 + $0x44] sm:$0xf] %v398
                  %v400 = vld [vmem:[%s362 + $0x50] sm:$0xf]
                  %401 = vst [vmem:[%s363 + $0x48] sm:$0xf] %v400
                  %v402 = vld [vmem:[%s362 + $0x54] sm:$0xf]
                  %403 = vst [vmem:[%s363 + $0x4c] sm:$0xf] %v402
                  %v404 = vld [vmem:[%s362 + $0x58] sm:$0xf]
                  %405 = vst [vmem:[%s363 + $0x50] sm:$0xf] %v404
                  %v406 = vld [vmem:[%s362 + $0x5c] sm:$0xf]
                  %407 = vst [vmem:[%s363 + $0x54] sm:$0xf] %v406
                  %v408 = vld [vmem:[%s362 + $0x60] sm:$0xf]
                  %409 = vst [vmem:[%s363 + $0x58] sm:$0xf] %v408
                  %v410 = vld [vmem:[%s362 + $0x64] sm:$0xf]
                  %411 = vst [vmem:[%s363 + $0x5c] sm:$0xf] %v410
                  %v412 = vld [vmem:[%s362 + $0x68] sm:$0xf]
                  %413 = vst [vmem:[%s363 + $0x60] sm:$0xf] %v412
                  %v414 = vld [vmem:[%s362 + $0x6c] sm:$0xf]
                  %415 = vst [vmem:[%s363 + $0x64] sm:$0xf] %v414
                  %v416 = vld [vmem:[%s362 + $0x70] sm:$0xf]
                  %417 = vst [vmem:[%s363 + $0x68] sm:$0xf] %v416
                  %v418 = vld [vmem:[%s362 + $0x74] sm:$0xf]
                  %419 = vst [vmem:[%s363 + $0x6c] sm:$0xf] %v418
                  %v420 = vld [vmem:[%s362 + $0x78] sm:$0xf]
                  %421 = vst [vmem:[%s363 + $0x70] sm:$0xf] %v420
                  %v422 = vld [vmem:[%s362 + $0x7c] sm:$0xf]
                  %423 = vst [vmem:[%s363 + $0x74] sm:$0xf] %v422
                  %v424 = vld [vmem:[%s362 + $0x80] sm:$0xf]
                  %425 = vst [vmem:[%s363 + $0x78] sm:$0xf] %v424
                  %v426 = vld [vmem:[%s362 + $0x84] sm:$0xf]
                  %427 = vst [vmem:[%s363 + $0x7c] sm:$0xf] %v426
                  %s428 = sadd.s32 1, %s361
                  %p429 = scmp.ge.s32.totalorder %s428, %s354
                  %s430 = scalar_select %p429, 0, %s428
                  %s431 = smul.u32 %s430, 64
                  %s432 = smul.u32 %s430, 64
                  %s433 = scalar_lea.vmem %s194, %s431
                  %s434 = scalar_lea.vmem %s184, %s432 [#allocation2]
                $region73: #{basic_block_forward.2} parent=53 // loop_footer
                  %s358 = sadd.s32 %s356, 1
                $region74: #{basic_block_forward.2} parent=53 // loop_footer_branch
                  %355 = sbr.rel target = $region70
                $region75: #{basic_block_forward.2} parent=53 // loop_exit
                  _
                %s435 = sshrl.u32 %s188, 4
                %s436 = sand.u32 %s188, 15
                %s437 = smul.u32 %s435, 16
                %s438 = smul.u32 4, %s437
                %s439 = scalar_lea.vmem %s194, %s438
                %s440 = smul.u32 4, %s437
                %s441 = scalar_lea.vmem %s184, %s440 [#allocation2]
                // While loop
                $region76: #{basic_block_forward.2} parent=53 // loop_pre_header
                  _
                $region77: #{basic_block_forward.2} parent=53 // loop_header
                  %s443 = sphi 0, %s445
                  %p444 = scmp.ge.s32.totalorder %s443, %s436
                  %s448 = sphi 0, %s457
                  %s449 = sphi %s439, %s460
                  %s450 = sphi %s441, %s461
                $region78: #{basic_block_forward.2} parent=53 // loop_header_branch
                  %447 = sbr.rel (%p444) target = $region82
                $region79: #{basic_block_forward.2} parent=53 // loop_body
                  %v451 = vld [vmem:[%s449] sm:$0xf]
                  %452 = vst [vmem:[%s450] sm:$0xf] %v451
                  %v453 = vld [vmem:[%s449 + $0x48] sm:$0xf]
                  %454 = vst [vmem:[%s450 + $0x40] sm:$0xf] %v453
                  %s455 = sadd.s32 1, %s448
                  %p456 = scmp.ge.s32.totalorder %s455, %s436
                  %s457 = scalar_select %p456, 0, %s455
                  %s458 = smul.u32 %s457, 4
                  %s459 = smul.u32 %s457, 4
                  %s460 = scalar_lea.vmem %s439, %s458
                  %s461 = scalar_lea.vmem %s441, %s459 [#allocation2]
                $region80: #{basic_block_forward.2} parent=53 // loop_footer
                  %s445 = sadd.s32 %s443, 1
                $region81: #{basic_block_forward.2} parent=53 // loop_footer_branch
                  %442 = sbr.rel target = $region77
                $region82: #{basic_block_forward.2} parent=53 // loop_exit
                  _
              $region54: #{basic_block_forward.2} parent=31 // pred_fallthru
                _
            $region32: #{basic_block_forward.2} parent=27 // pred_fallthru
              _
            // Predicated region
            $region33: #{basic_block_forward.2} parent=27 // pred_check
              _
            $region34: #{basic_block_forward.2} parent=27 // pred_check_branch
              %201 = sbr.rel (0) target = $region36
            $region35: #{basic_block_forward.2} parent=27 // pred_region
              %s203 = sshrl.u32 %s188, 4
              // While loop
              $region37: #{basic_block_forward.2} parent=35 // loop_pre_header
                _
              $region38: #{basic_block_forward.2} parent=35 // loop_header
                %s205 = sphi 0, %s207
                %p206 = scmp.ge.s32.totalorder %s205, %s203
                %s210 = sphi 0, %s279
                %s211 = sphi %s194, %s282
                %s212 = sphi %s184, %s283
              $region39: #{basic_block_forward.2} parent=35 // loop_header_branch
                %209 = sbr.rel (%p206) target = $region43
              $region40: #{basic_block_forward.2} parent=35 // loop_body
                %v213 = vld [vmem:[%s211] sm:$0xf]
                %214 = vst [vmem:[%s212] sm:$0xf] %v213
                %v215 = vld [vmem:[%s211 + $0x4] sm:$0xf]
                %216 = vst [vmem:[%s212 + $0x4] sm:$0xf] %v215
                %v217 = vld [vmem:[%s211 + $0x8] sm:$0xf]
                %218 = vst [vmem:[%s212 + $0x8] sm:$0xf] %v217
                %v219 = vld [vmem:[%s211 + $0xc] sm:$0xf]
                %220 = vst [vmem:[%s212 + $0xc] sm:$0xf] %v219
                %v221 = vld [vmem:[%s211 + $0x10] sm:$0xf]
                %222 = vst [vmem:[%s212 + $0x10] sm:$0xf] %v221
                %v223 = vld [vmem:[%s211 + $0x14] sm:$0xf]
                %224 = vst [vmem:[%s212 + $0x14] sm:$0xf] %v223
                %v225 = vld [vmem:[%s211 + $0x18] sm:$0xf]
                %226 = vst [vmem:[%s212 + $0x18] sm:$0xf] %v225
                %v227 = vld [vmem:[%s211 + $0x1c] sm:$0xf]
                %228 = vst [vmem:[%s212 + $0x1c] sm:$0xf] %v227
                %v229 = vld [vmem:[%s211 + $0x20] sm:$0xf]
                %230 = vst [vmem:[%s212 + $0x20] sm:$0xf] %v229
                %v231 = vld [vmem:[%s211 + $0x24] sm:$0xf]
                %232 = vst [vmem:[%s212 + $0x24] sm:$0xf] %v231
                %v233 = vld [vmem:[%s211 + $0x28] sm:$0xf]
                %234 = vst [vmem:[%s212 + $0x28] sm:$0xf] %v233
                %v235 = vld [vmem:[%s211 + $0x2c] sm:$0xf]
                %236 = vst [vmem:[%s212 + $0x2c] sm:$0xf] %v235
                %v237 = vld [vmem:[%s211 + $0x30] sm:$0xf]
                %238 = vst [vmem:[%s212 + $0x30] sm:$0xf] %v237
                %v239 = vld [vmem:[%s211 + $0x34] sm:$0xf]
                %240 = vst [vmem:[%s212 + $0x34] sm:$0xf] %v239
                %v241 = vld [vmem:[%s211 + $0x38] sm:$0xf]
                %242 = vst [vmem:[%s212 + $0x38] sm:$0xf] %v241
                %v243 = vld [vmem:[%s211 + $0x3c] sm:$0xf]
                %244 = vst [vmem:[%s212 + $0x3c] sm:$0xf] %v243
                %v245 = vld [vmem:[%s211 + $0x48] sm:$0xf]
                %246 = vst [vmem:[%s212 + $0x40] sm:$0xf] %v245
                %v247 = vld [vmem:[%s211 + $0x4c] sm:$0xf]
                %248 = vst [vmem:[%s212 + $0x44] sm:$0xf] %v247
                %v249 = vld [vmem:[%s211 + $0x50] sm:$0xf]
                %250 = vst [vmem:[%s212 + $0x48] sm:$0xf] %v249
                %v251 = vld [vmem:[%s211 + $0x54] sm:$0xf]
                %252 = vst [vmem:[%s212 + $0x4c] sm:$0xf] %v251
                %v253 = vld [vmem:[%s211 + $0x58] sm:$0xf]
                %254 = vst [vmem:[%s212 + $0x50] sm:$0xf] %v253
                %v255 = vld [vmem:[%s211 + $0x5c] sm:$0xf]
                %256 = vst [vmem:[%s212 + $0x54] sm:$0xf] %v255
                %v257 = vld [vmem:[%s211 + $0x60] sm:$0xf]
                %258 = vst [vmem:[%s212 + $0x58] sm:$0xf] %v257
                %v259 = vld [vmem:[%s211 + $0x64] sm:$0xf]
                %260 = vst [vmem:[%s212 + $0x5c] sm:$0xf] %v259
                %v261 = vld [vmem:[%s211 + $0x68] sm:$0xf]
                %262 = vst [vmem:[%s212 + $0x60] sm:$0xf] %v261
                %v263 = vld [vmem:[%s211 + $0x6c] sm:$0xf]
                %264 = vst [vmem:[%s212 + $0x64] sm:$0xf] %v263
                %v265 = vld [vmem:[%s211 + $0x70] sm:$0xf]
                %266 = vst [vmem:[%s212 + $0x68] sm:$0xf] %v265
                %v267 = vld [vmem:[%s211 + $0x74] sm:$0xf]
                %268 = vst [vmem:[%s212 + $0x6c] sm:$0xf] %v267
                %v269 = vld [vmem:[%s211 + $0x78] sm:$0xf]
                %270 = vst [vmem:[%s212 + $0x70] sm:$0xf] %v269
                %v271 = vld [vmem:[%s211 + $0x7c] sm:$0xf]
                %272 = vst [vmem:[%s212 + $0x74] sm:$0xf] %v271
                %v273 = vld [vmem:[%s211 + $0x80] sm:$0xf]
                %274 = vst [vmem:[%s212 + $0x78] sm:$0xf] %v273
                %v275 = vld [vmem:[%s211 + $0x84] sm:$0xf]
                %276 = vst [vmem:[%s212 + $0x7c] sm:$0xf] %v275
                %s277 = sadd.s32 1, %s210
                %p278 = scmp.ge.s32.totalorder %s277, %s203
                %s279 = scalar_select %p278, 0, %s277
                %s280 = smul.u32 %s279, 64
                %s281 = smul.u32 %s279, 64
                %s282 = scalar_lea.vmem %s194, %s280
                %s283 = scalar_lea.vmem %s184, %s281 [#allocation2]
              $region41: #{basic_block_forward.2} parent=35 // loop_footer
                %s207 = sadd.s32 %s205, 1
              $region42: #{basic_block_forward.2} parent=35 // loop_footer_branch
                %204 = sbr.rel target = $region38
              $region43: #{basic_block_forward.2} parent=35 // loop_exit
                _
              %s284 = sshrl.u32 %s188, 4
              %s285 = sand.u32 %s188, 15
              %s286 = smul.u32 %s284, 16
              %s287 = smul.u32 4, %s286
              %s288 = scalar_lea.vmem %s194, %s287
              %s289 = smul.u32 4, %s286
              %s290 = scalar_lea.vmem %s184, %s289 [#allocation2]
              // While loop
              $region44: #{basic_block_forward.2} parent=35 // loop_pre_header
                _
              $region45: #{basic_block_forward.2} parent=35 // loop_header
                %s292 = sphi 0, %s294
                %p293 = scmp.ge.s32.totalorder %s292, %s285
                %s297 = sphi 0, %s306
                %s298 = sphi %s288, %s309
                %s299 = sphi %s290, %s310
              $region46: #{basic_block_forward.2} parent=35 // loop_header_branch
                %296 = sbr.rel (%p293) target = $region50
              $region47: #{basic_block_forward.2} parent=35 // loop_body
                %v300 = vld [vmem:[%s298] sm:$0xf]
                %301 = vst [vmem:[%s299] sm:$0xf] %v300
                %v302 = vld [vmem:[%s298 + $0x48] sm:$0xf]
                %303 = vst [vmem:[%s299 + $0x40] sm:$0xf] %v302
                %s304 = sadd.s32 1, %s297
                %p305 = scmp.ge.s32.totalorder %s304, %s285
                %s306 = scalar_select %p305, 0, %s304
                %s307 = smul.u32 %s306, 4
                %s308 = smul.u32 %s306, 4
                %s309 = scalar_lea.vmem %s288, %s307
                %s310 = scalar_lea.vmem %s290, %s308 [#allocation2]
              $region48: #{basic_block_forward.2} parent=35 // loop_footer
                %s294 = sadd.s32 %s292, 1
              $region49: #{basic_block_forward.2} parent=35 // loop_footer_branch
                %291 = sbr.rel target = $region45
              $region50: #{basic_block_forward.2} parent=35 // loop_exit
                _
            $region36: #{basic_block_forward.2} parent=27 // pred_fallthru
              _
          $region28: #{basic_block_forward.2} parent=23 // pred_fallthru
            _
          %462 = vnop
        $region24: #{basic_block_forward.2} parent=19 // pred_fallthru
          _
        // Predicated region
        $region83: #{basic_block_forward.2} parent=19 // pred_check
          %p463 = pneg %p73
        $region84: #{basic_block_forward.2} parent=19 // pred_check_branch
          %465 = sbr.rel (%p463) target = $region86
        $region85: #{basic_block_forward.2} parent=19 // pred_region
          %p466 = scmp.lt.s32.totalorder %s18, 1
          %s467 = scalar_select %p466, %s18, 1
          %p468 = scmp.lt.s32.totalorder %s19, 0
          %s469 = scalar_select %p468, %s19, 0
          %s470 = smul.addr %s469, 4
          %s471 = smul.addr %s467, 4
          %s472 = sadd.s32 %s470, %s471
          %s473 = smul.addr %s472, 4
          %s474 = scalar_lea.vmem %s1, %s473
        $region86: #{basic_block_forward.2} parent=19 // pred_fallthru
          _
      $region20: #{basic_block_forward.2} parent=5 // pred_fallthru
        _
      %p475 = scmp.le.s32.totalorder 1, %s11
      %p476 = scmp.lt.s32.totalorder %s11, 3
      %p477 = pnand %p475, %p476
      %p478 = pneg %p477
      // Predicated region
      $region87: #{basic_block_forward.2} parent=5 // pred_check
        _
      $region88: #{basic_block_forward.2} parent=5 // pred_check_branch
        %480 = sbr.rel (%p477) target = $region90
      $region89: #{basic_block_forward.2} parent=5 // pred_region
        %s481 = ssub.s32 %s11, 1
        %s482 = sand.u32 %s38, 1
        %s483 = sand.u32 %s38, 1
        %s484 = smul.addr %s483, 128
        %s485 = scalar_lea.vmem [#allocation2], %s484
        // Predicated region
        $region91: #{basic_block_forward.2} parent=89 // pred_check
          %p486 = pneg %p51
        $region92: #{basic_block_forward.2} parent=89 // pred_check_branch
          %488 = sbr.rel (%p486) target = $region94
        $region93: #{basic_block_forward.2} parent=89 // pred_region
          _
        $region94: #{basic_block_forward.2} parent=89 // pred_fallthru
          _
        %s489 = sand.u32 %s38, 1
        %s490 = sand.u32 %s38, 1
        %s491 = smul.addr %s490, 128
        %s492 = scalar_lea.vmem [#allocation2], %s491
        %p493 = pneg %p51
        %p494 = pneg %p48
        %p495 = scmp.lt.s32.totalorder %s20, 1
        %s496 = scalar_select %p495, %s20, 1
        %p497 = scmp.lt.s32.totalorder %s21, 0
        %s498 = scalar_select %p497, %s21, 0
        %s499 = smul.addr %s498, 4
        %s500 = smul.addr %s496, 4
        %s501 = sadd.s32 %s499, %s500
        %s502 = smul.addr %s501, 4
        %s503 = scalar_lea.vmem %s1, %s502
        %p504 = pneg %p79
        %p505 = pneg %p76
        %p506 = pneg %p100
        %p507 = pneg %p97
        %p508 = pneg %p128
        %p509 = pneg %p125
        %p510 = scmp.lt.s32.totalorder %s20, 1
        %s511 = scalar_select %p510, %s20, 1
        %p512 = scmp.lt.s32.totalorder %s21, 0
        %s513 = scalar_select %p512, %s21, 0
        %s514 = sadd.s32 %s513, %s511
        %s515 = scalar_lea.vmem %s3, %s514
        %p516 = pneg %p156
        %p517 = pneg %p153
        %p518 = scmp.lt.s32.totalorder %s20, 1
        %s519 = scalar_select %p518, %s20, 1
        %p520 = scmp.lt.s32.totalorder %s21, 0
        %s521 = scalar_select %p520, %s21, 0
        %s522 = sadd.s32 %s521, %s519
        %s523 = scalar_lea.vmem %s4, %s522
        %s524 = smul.u32 16, %s21
        %s525 = ssub.s32 18, %s524
        %p526 = scmp.lt.s32.totalorder %s525, 16
        %s527 = scalar_select %p526, %s525, 16
        %s528 = smul.u32 128, %s527
        %p529 = scmp.lt.s32.totalorder %s20, 1
        %s530 = scalar_select %p529, %s20, 1
        %p531 = scmp.lt.s32.totalorder %s21, 0
        %s532 = scalar_select %p531, %s21, 0
        %s533 = smul.addr %s532, 4
        %s534 = smul.addr %s530, 4
        %s535 = sadd.s32 %s533, %s534
        %s536 = smul.addr %s535, 4
        %s537 = scalar_lea.vmem %s1, %s536
        %p538 = scmp.lt.s32.totalorder %s20, 1
        %s539 = scalar_select %p538, %s20, 1
        %p540 = scmp.lt.s32.totalorder %s21, 0
        %s541 = scalar_select %p540, %s21, 0
        %s542 = sadd.s32 %s541, %s539
        %s543 = scalar_lea.vmem %s3, %s542
        %p544 = scmp.lt.s32.totalorder %s20, 1
        %s545 = scalar_select %p544, %s20, 1
        %p546 = scmp.lt.s32.totalorder %s21, 0
        %s547 = scalar_select %p546, %s21, 0
        %s548 = sadd.s32 %s547, %s545
        %s549 = scalar_lea.vmem %s4, %s548
        %v551 = vld [vmem:[%s485] sm:$0xf]
        %v552 = vld [vmem:[%s485 + $0x4] sm:$0xf]
        %v553 = vld [vmem:[%s485 + $0x8] sm:$0xf]
        %v554 = vld [vmem:[%s485 + $0xc] sm:$0xf]
        %v555 = vld [vmem:[%s485 + $0x10] sm:$0xf]
        %v556 = vld [vmem:[%s485 + $0x14] sm:$0xf]
        %v557 = vld [vmem:[%s485 + $0x18] sm:$0xf]
        %v558 = vld [vmem:[%s485 + $0x1c] sm:$0xf]
        %v559 = vld [vmem:[%s485 + $0x20] sm:$0xf]
        %v560 = vld [vmem:[%s485 + $0x24] sm:$0xf]
        %v561 = vld [vmem:[%s485 + $0x28] sm:$0xf]
        %v562 = vld [vmem:[%s485 + $0x2c] sm:$0xf]
        %v563 = vld [vmem:[%s485 + $0x30] sm:$0xf]
        %v564 = vld [vmem:[%s485 + $0x34] sm:$0xf]
        %v565 = vld [vmem:[%s485 + $0x38] sm:$0xf]
        %v566 = vld [vmem:[%s485 + $0x3c] sm:$0xf]
        %v567 = vld [vmem:[%s2] sm:$0xf]
        %v568 = vld [vmem:[%s2 + $0x4] sm:$0xf]
        %v569 = vld [vmem:[%s2 + $0x8] sm:$0xf]
        %v570 = vld [vmem:[%s2 + $0xc] sm:$0xf]
        %v571 = vld [vmem:[%s2 + $0x10] sm:$0xf]
        %v572 = vld [vmem:[%s2 + $0x14] sm:$0xf]
        %v573 = vld [vmem:[%s2 + $0x18] sm:$0xf]
        %v574 = vld [vmem:[%s2 + $0x1c] sm:$0xf]
        %v575 = vld [vmem:[%s2 + $0x20] sm:$0xf]
        %v576 = vld [vmem:[%s2 + $0x24] sm:$0xf]
        %v577 = vld [vmem:[%s2 + $0x28] sm:$0xf]
        %v578 = vld [vmem:[%s2 + $0x2c] sm:$0xf]
        %v579 = vld [vmem:[%s2 + $0x30] sm:$0xf]
        %v580 = vld [vmem:[%s2 + $0x34] sm:$0xf]
        %v581 = vld [vmem:[%s2 + $0x38] sm:$0xf]
        %v582 = vld [vmem:[%s2 + $0x3c] sm:$0xf]
        %s583 = scalar_lea.vmem %s485, 64 [#allocation2]
        %v584 = vld [vmem:[%s583] sm:$0xf]
        %v585 = vld [vmem:[%s583 + $0x4] sm:$0xf]
        %v586 = vld [vmem:[%s583 + $0x8] sm:$0xf]
        %v587 = vld [vmem:[%s583 + $0xc] sm:$0xf]
        %v588 = vld [vmem:[%s583 + $0x10] sm:$0xf]
        %v589 = vld [vmem:[%s583 + $0x14] sm:$0xf]
        %v590 = vld [vmem:[%s583 + $0x18] sm:$0xf]
        %v591 = vld [vmem:[%s583 + $0x1c] sm:$0xf]
        %v592 = vld [vmem:[%s583 + $0x20] sm:$0xf]
        %v593 = vld [vmem:[%s583 + $0x24] sm:$0xf]
        %v594 = vld [vmem:[%s583 + $0x28] sm:$0xf]
        %v595 = vld [vmem:[%s583 + $0x2c] sm:$0xf]
        %v596 = vld [vmem:[%s583 + $0x30] sm:$0xf]
        %v597 = vld [vmem:[%s583 + $0x34] sm:$0xf]
        %v598 = vld [vmem:[%s583 + $0x38] sm:$0xf]
        %v599 = vld [vmem:[%s583 + $0x3c] sm:$0xf]
        %s600 = scalar_lea.vmem %s2, 64
        %v601 = vld [vmem:[%s600] sm:$0xf]
        %v602 = vld [vmem:[%s600 + $0x4] sm:$0xf]
        %v603 = vld [vmem:[%s600 + $0x8] sm:$0xf]
        %v604 = vld [vmem:[%s600 + $0xc] sm:$0xf]
        %v605 = vld [vmem:[%s600 + $0x10] sm:$0xf]
        %v606 = vld [vmem:[%s600 + $0x14] sm:$0xf]
        %v607 = vld [vmem:[%s600 + $0x18] sm:$0xf]
        %v608 = vld [vmem:[%s600 + $0x1c] sm:$0xf]
        %v609 = vld [vmem:[%s600 + $0x20] sm:$0xf]
        %v610 = vld [vmem:[%s600 + $0x24] sm:$0xf]
        %v611 = vld [vmem:[%s600 + $0x28] sm:$0xf]
        %v612 = vld [vmem:[%s600 + $0x2c] sm:$0xf]
        %v613 = vld [vmem:[%s600 + $0x30] sm:$0xf]
        %v614 = vld [vmem:[%s600 + $0x34] sm:$0xf]
        %v615 = vld [vmem:[%s600 + $0x38] sm:$0xf]
        %v616 = vld [vmem:[%s600 + $0x3c] sm:$0xf]
        %v633 = vunpack.c.l.b16 %v584
        %v634 = vunpack.c.l.b16 %v585
        %v635 = vunpack.c.l.b16 %v586
        %v636 = vunpack.c.l.b16 %v587
        %v637 = vunpack.c.l.b16 %v588
        %v638 = vunpack.c.l.b16 %v589
        %v639 = vunpack.c.l.b16 %v590
        %v640 = vunpack.c.l.b16 %v591
        %v641 = vunpack.c.l.b16 %v592
        %v642 = vunpack.c.l.b16 %v593
        %v643 = vunpack.c.l.b16 %v594
        %v644 = vunpack.c.l.b16 %v595
        %v645 = vunpack.c.l.b16 %v596
        %v646 = vunpack.c.l.b16 %v597
        %v647 = vunpack.c.l.b16 %v598
        %v648 = vunpack.c.l.b16 %v599
        %v649 = vpack.c.b16 %v634, %v633
        %v650 = vpack.c.b16 %v636, %v635
        %v651 = vpack.c.b16 %v638, %v637
        %v652 = vpack.c.b16 %v640, %v639
        %v653 = vpack.c.b16 %v642, %v641
        %v654 = vpack.c.b16 %v644, %v643
        %v655 = vpack.c.b16 %v646, %v645
        %v656 = vpack.c.b16 %v648, %v647
        %v681 = vunpack.c.l.b16 %v601
        %v682 = vunpack.c.l.b16 %v602
        %v683 = vunpack.c.l.b16 %v603
        %v684 = vunpack.c.l.b16 %v604
        %v685 = vunpack.c.l.b16 %v605
        %v686 = vunpack.c.l.b16 %v606
        %v687 = vunpack.c.l.b16 %v607
        %v688 = vunpack.c.l.b16 %v608
        %v689 = vunpack.c.l.b16 %v609
        %v690 = vunpack.c.l.b16 %v610
        %v691 = vunpack.c.l.b16 %v611
        %v692 = vunpack.c.l.b16 %v612
        %v693 = vunpack.c.l.b16 %v613
        %v694 = vunpack.c.l.b16 %v614
        %v695 = vunpack.c.l.b16 %v615
        %v696 = vunpack.c.l.b16 %v616
        %v697 = vpack.c.b16 %v682, %v681
        %v698 = vpack.c.b16 %v684, %v683
        %v699 = vpack.c.b16 %v686, %v685
        %v700 = vpack.c.b16 %v688, %v687
        %v701 = vpack.c.b16 %v690, %v689
        %v702 = vpack.c.b16 %v692, %v691
        %v703 = vpack.c.b16 %v694, %v693
        %v704 = vpack.c.b16 %v696, %v695
        %713 = vmatprep.subr.bf16.mxu0 0
        %714 = vmatpush1.bf16.msra.mxu0 %v697
        %715 = vmatprep.subr.bf16.mxu0 0
        %716 = vmatpush1.bf16.msra.mxu0 %v698
        %717 = vmatprep.subr.bf16.mxu0 0
        %718 = vmatpush1.bf16.msra.mxu0 %v699
        %719 = vmatprep.subr.bf16.mxu0 0
        %720 = vmatpush1.bf16.msra.mxu0 %v700
        %721 = vmatprep.subr.bf16.mxu0 0
        %722 = vmatpush1.bf16.msra.mxu0 %v701
        %723 = vmatprep.subr.bf16.mxu0 0
        %724 = vmatpush1.bf16.msra.mxu0 %v702
        %725 = vmatprep.subr.bf16.mxu0 0
        %726 = vmatpush1.bf16.msra.mxu0 %v703
        %727 = vmatprep.subr.bf16.mxu0 0
        %728 = vmatpush1.bf16.msra.mxu0 %v704
        %729 = vmatprep.subr.bf16.mxu0 0
        %730 = vmatpush1.bf16.msra.mxu0 0
        %731 = vmatprep.subr.bf16.mxu0 0
        %732 = vmatpush1.bf16.msra.mxu0 0
        %733 = vmatprep.subr.bf16.mxu0 0
        %734 = vmatpush1.bf16.msra.mxu0 0
        %735 = vmatprep.subr.bf16.mxu0 0
        %736 = vmatpush1.bf16.msra.mxu0 0
        %737 = vmatprep.subr.bf16.mxu0 0
        %738 = vmatpush1.bf16.msra.mxu0 0
        %739 = vmatprep.subr.bf16.mxu0 0
        %740 = vmatpush1.bf16.msra.mxu0 0
        %741 = vmatprep.subr.bf16.mxu0 0
        %742 = vmatpush1.bf16.msra.mxu0 0
        %743 = vmatprep.subr.bf16.mxu0 0
        %744 = vmatpush1.bf16.msra.mxu0 0
        %745 = vmatprep.mubr.bf16.mxu0 0
        %746 = vmatmul.mubr.bf16.gmra.mrb[0].mxu0 %v649
        %v747 = vpop.f32.mrb[0].mxu0
        %v748 = vadd.f32 0.0, %v747
        %v749 = vpop.f32.mrb[0].mxu0
        %v750 = vpop.f32.mrb[0].mxu0
        %v751 = vadd.f32 0.0, %v750
        %v752 = vpop.f32.mrb[0].mxu0
        %753 = vmatprep.mubr.bf16.mxu0 0
        %754 = vmatmul.mubr.bf16.gmra.mrb[0].mxu0 %v650
        %v755 = vpop.f32.mrb[0].mxu0
        %v756 = vadd.f32 0.0, %v755
        %v757 = vpop.f32.mrb[0].mxu0
        %v758 = vpop.f32.mrb[0].mxu0
        %v759 = vadd.f32 0.0, %v758
        %v760 = vpop.f32.mrb[0].mxu0
        %761 = vmatprep.mubr.bf16.mxu0 0
        %762 = vmatmul.mubr.bf16.gmra.mrb[0].mxu0 %v651
        %v763 = vpop.f32.mrb[0].mxu0
        %v764 = vadd.f32 0.0, %v763
        %v765 = vpop.f32.mrb[0].mxu0
        %v766 = vpop.f32.mrb[0].mxu0
        %v767 = vadd.f32 0.0, %v766
        %v768 = vpop.f32.mrb[0].mxu0
        %769 = vmatprep.mubr.bf16.mxu0 0
        %770 = vmatmul.mubr.bf16.gmra.mrb[0].mxu0 %v652
        %v771 = vpop.f32.mrb[0].mxu0
        %v772 = vadd.f32 0.0, %v771
        %v773 = vpop.f32.mrb[0].mxu0
        %v774 = vpop.f32.mrb[0].mxu0
        %v775 = vadd.f32 0.0, %v774
        %v776 = vpop.f32.mrb[0].mxu0
        %777 = vmatprep.mubr.bf16.mxu0 0
        %778 = vmatmul.mubr.bf16.gmra.mrb[0].mxu0 %v653
        %v779 = vpop.f32.mrb[0].mxu0
        %v780 = vadd.f32 0.0, %v779
        %v781 = vpop.f32.mrb[0].mxu0
        %v782 = vpop.f32.mrb[0].mxu0
        %v783 = vadd.f32 0.0, %v782
        %v784 = vpop.f32.mrb[0].mxu0
        %785 = vmatprep.mubr.bf16.mxu0 0
        %786 = vmatmul.mubr.bf16.gmra.mrb[0].mxu0 %v654
        %v787 = vpop.f32.mrb[0].mxu0
        %v788 = vadd.f32 0.0, %v787
        %v789 = vpop.f32.mrb[0].mxu0
        %v790 = vpop.f32.mrb[0].mxu0
        %v791 = vadd.f32 0.0, %v790
        %v792 = vpop.f32.mrb[0].mxu0
        %793 = vmatprep.mubr.bf16.mxu0 0
        %794 = vmatmul.mubr.bf16.gmra.mrb[0].mxu0 %v655
        %v795 = vpop.f32.mrb[0].mxu0
        %v796 = vadd.f32 0.0, %v795
        %v797 = vpop.f32.mrb[0].mxu0
        %v798 = vpop.f32.mrb[0].mxu0
        %v799 = vadd.f32 0.0, %v798
        %v800 = vpop.f32.mrb[0].mxu0
        %801 = vmatprep.mubr.bf16.mxu0 0
        %802 = vmatmul.mubr.bf16.gmra.mrb[0].mxu0 %v656
        %v803 = vpop.f32.mrb[0].mxu0
        %v804 = vadd.f32 0.0, %v803
        %v805 = vpop.f32.mrb[0].mxu0
        %v806 = vpop.f32.mrb[0].mxu0
        %v807 = vadd.f32 0.0, %v806
        %v808 = vpop.f32.mrb[0].mxu0
        %809 = vdwg.mxu0
        %v826 = vunpack.c.l.b16 %v551
        %v827 = vunpack.c.l.b16 %v552
        %v828 = vunpack.c.l.b16 %v553
        %v829 = vunpack.c.l.b16 %v554
        %v830 = vunpack.c.l.b16 %v555
        %v831 = vunpack.c.l.b16 %v556
        %v832 = vunpack.c.l.b16 %v557
        %v833 = vunpack.c.l.b16 %v558
        %v834 = vunpack.c.l.b16 %v559
        %v835 = vunpack.c.l.b16 %v560
        %v836 = vunpack.c.l.b16 %v561
        %v837 = vunpack.c.l.b16 %v562
        %v838 = vunpack.c.l.b16 %v563
        %v839 = vunpack.c.l.b16 %v564
        %v840 = vunpack.c.l.b16 %v565
        %v841 = vunpack.c.l.b16 %v566
        %v842 = vpack.c.b16 %v827, %v826
        %v843 = vpack.c.b16 %v829, %v828
        %v844 = vpack.c.b16 %v831, %v830
        %v845 = vpack.c.b16 %v833, %v832
        %v846 = vpack.c.b16 %v835, %v834
        %v847 = vpack.c.b16 %v837, %v836
        %v848 = vpack.c.b16 %v839, %v838
        %v849 = vpack.c.b16 %v841, %v840
        %v874 = vunpack.c.l.b16 %v567
        %v875 = vunpack.c.l.b16 %v568
        %v876 = vunpack.c.l.b16 %v569
        %v877 = vunpack.c.l.b16 %v570
        %v878 = vunpack.c.l.b16 %v571
        %v879 = vunpack.c.l.b16 %v572
        %v880 = vunpack.c.l.b16 %v573
        %v881 = vunpack.c.l.b16 %v574
        %v882 = vunpack.c.l.b16 %v575
        %v883 = vunpack.c.l.b16 %v576
        %v884 = vunpack.c.l.b16 %v577
        %v885 = vunpack.c.l.b16 %v578
        %v886 = vunpack.c.l.b16 %v579
        %v887 = vunpack.c.l.b16 %v580
        %v888 = vunpack.c.l.b16 %v581
        %v889 = vunpack.c.l.b16 %v582
        %v890 = vpack.c.b16 %v875, %v874
        %v891 = vpack.c.b16 %v877, %v876
        %v892 = vpack.c.b16 %v879, %v878
        %v893 = vpack.c.b16 %v881, %v880
        %v894 = vpack.c.b16 %v883, %v882
        %v895 = vpack.c.b16 %v885, %v884
        %v896 = vpack.c.b16 %v887, %v886
        %v897 = vpack.c.b16 %v889, %v888
        %906 = vmatprep.subr.bf16.mxu0 0
        %907 = vmatpush1.bf16.msra.mxu0 %v890
        %908 = vmatprep.subr.bf16.mxu0 0
        %909 = vmatpush1.bf16.msra.mxu0 %v891
        %910 = vmatprep.subr.bf16.mxu0 0
        %911 = vmatpush1.bf16.msra.mxu0 %v892
        %912 = vmatprep.subr.bf16.mxu0 0
        %913 = vmatpush1.bf16.msra.mxu0 %v893
        %914 = vmatprep.subr.bf16.mxu0 0
        %915 = vmatpush1.bf16.msra.mxu0 %v894
        %916 = vmatprep.subr.bf16.mxu0 0
        %917 = vmatpush1.bf16.msra.mxu0 %v895
        %918 = vmatprep.subr.bf16.mxu0 0
        %919 = vmatpush1.bf16.msra.mxu0 %v896
        %920 = vmatprep.subr.bf16.mxu0 0
        %921 = vmatpush1.bf16.msra.mxu0 %v897
        %922 = vmatprep.subr.bf16.mxu0 0
        %923 = vmatpush1.bf16.msra.mxu0 0
        %924 = vmatprep.subr.bf16.mxu0 0
        %925 = vmatpush1.bf16.msra.mxu0 0
        %926 = vmatprep.subr.bf16.mxu0 0
        %927 = vmatpush1.bf16.msra.mxu0 0
        %928 = vmatprep.subr.bf16.mxu0 0
        %929 = vmatpush1.bf16.msra.mxu0 0
        %930 = vmatprep.subr.bf16.mxu0 0
        %931 = vmatpush1.bf16.msra.mxu0 0
        %932 = vmatprep.subr.bf16.mxu0 0
        %933 = vmatpush1.bf16.msra.mxu0 0
        %934 = vmatprep.subr.bf16.mxu0 0
        %935 = vmatpush1.bf16.msra.mxu0 0
        %936 = vmatprep.subr.bf16.mxu0 0
        %937 = vmatpush1.bf16.msra.mxu0 0
        %938 = vmatprep.mubr.bf16.mxu0 0
        %939 = vmatmul.mubr.bf16.gmra.mrb[0].mxu0 %v842
        %v940 = vpop.f32.mrb[0].mxu0
        %v941 = vadd.f32 %v748, %v940
        %v942 = vpop.f32.mrb[0].mxu0
        %v943 = vpop.f32.mrb[0].mxu0
        %v944 = vadd.f32 %v751, %v943
        %v945 = vpop.f32.mrb[0].mxu0
        %946 = vmatprep.mubr.bf16.mxu0 0
        %947 = vmatmul.mubr.bf16.gmra.mrb[0].mxu0 %v843
        %v948 = vpop.f32.mrb[0].mxu0
        %v949 = vadd.f32 %v756, %v948
        %v950 = vpop.f32.mrb[0].mxu0
        %v951 = vpop.f32.mrb[0].mxu0
        %v952 = vadd.f32 %v759, %v951
        %v953 = vpop.f32.mrb[0].mxu0
        %954 = vmatprep.mubr.bf16.mxu0 0
        %955 = vmatmul.mubr.bf16.gmra.mrb[0].mxu0 %v844
        %v956 = vpop.f32.mrb[0].mxu0
        %v957 = vadd.f32 %v764, %v956
        %v958 = vpop.f32.mrb[0].mxu0
        %v959 = vpop.f32.mrb[0].mxu0
        %v960 = vadd.f32 %v767, %v959
        %v961 = vpop.f32.mrb[0].mxu0
        %962 = vmatprep.mubr.bf16.mxu0 0
        %963 = vmatmul.mubr.bf16.gmra.mrb[0].mxu0 %v845
        %v964 = vpop.f32.mrb[0].mxu0
        %v965 = vadd.f32 %v772, %v964
        %v966 = vpop.f32.mrb[0].mxu0
        %v967 = vpop.f32.mrb[0].mxu0
        %v968 = vadd.f32 %v775, %v967
        %v969 = vpop.f32.mrb[0].mxu0
        %970 = vmatprep.mubr.bf16.mxu0 0
        %971 = vmatmul.mubr.bf16.gmra.mrb[0].mxu0 %v846
        %v972 = vpop.f32.mrb[0].mxu0
        %v973 = vadd.f32 %v780, %v972
        %v974 = vpop.f32.mrb[0].mxu0
        %v975 = vpop.f32.mrb[0].mxu0
        %v976 = vadd.f32 %v783, %v975
        %v977 = vpop.f32.mrb[0].mxu0
        %978 = vmatprep.mubr.bf16.mxu0 0
        %979 = vmatmul.mubr.bf16.gmra.mrb[0].mxu0 %v847
        %v980 = vpop.f32.mrb[0].mxu0
        %v981 = vadd.f32 %v788, %v980
        %v982 = vpop.f32.mrb[0].mxu0
        %v983 = vpop.f32.mrb[0].mxu0
        %v984 = vadd.f32 %v791, %v983
        %v985 = vpop.f32.mrb[0].mxu0
        %986 = vmatprep.mubr.bf16.mxu0 0
        %987 = vmatmul.mubr.bf16.gmra.mrb[0].mxu0 %v848
        %v988 = vpop.f32.mrb[0].mxu0
        %v989 = vadd.f32 %v796, %v988
        %v990 = vpop.f32.mrb[0].mxu0
        %v991 = vpop.f32.mrb[0].mxu0
        %v992 = vadd.f32 %v799, %v991
        %v993 = vpop.f32.mrb[0].mxu0
        %994 = vmatprep.mubr.bf16.mxu0 0
        %995 = vmatmul.mubr.bf16.gmra.mrb[0].mxu0 %v849
        %v996 = vpop.f32.mrb[0].mxu0
        %v997 = vadd.f32 %v804, %v996
        %v998 = vpop.f32.mrb[0].mxu0
        %v999 = vpop.f32.mrb[0].mxu0
        %v1000 = vadd.f32 %v807, %v999
        %v1001 = vpop.f32.mrb[0].mxu0
        %1002 = vdwg.mxu0
        %v1003 = vld [vmem:[%s537] sm:$0x1]
        %vm1004 = vsmask.f32 7424
        %v1006 = vshrl.u32 %v842, 16
        %v1008 = vshll.u32 %v842, 16
        %v1010 = vrot.slane %v1008, 1
        %v1011 = vor.u32 %v1006, %v1010
        %v1013 = vshll.u32 %v843, 16
        %v1015 = vrot.slane %v1013, 1
        %v1016 = vsel %vm1004, %v1011, %v1015
        %v1017 = vshrl.u32 %v843, 16
        %v1019 = vor.u32 %v1017, %v1015
        %v1021 = vshll.u32 %v844, 16
        %v1023 = vrot.slane %v1021, 1
        %v1024 = vsel %vm1004, %v1019, %v1023
        %v1025 = vshrl.u32 %v844, 16
        %v1027 = vor.u32 %v1025, %v1023
        %v1029 = vshll.u32 %v845, 16
        %v1031 = vrot.slane %v1029, 1
        %v1032 = vsel %vm1004, %v1027, %v1031
        %v1033 = vshrl.u32 %v845, 16
        %v1035 = vor.u32 %v1033, %v1031
        %v1037 = vshll.u32 %v846, 16
        %v1039 = vrot.slane %v1037, 1
        %v1040 = vsel %vm1004, %v1035, %v1039
        %v1041 = vshrl.u32 %v846, 16
        %v1043 = vor.u32 %v1041, %v1039
        %v1045 = vshll.u32 %v847, 16
        %v1047 = vrot.slane %v1045, 1
        %v1048 = vsel %vm1004, %v1043, %v1047
        %v1049 = vshrl.u32 %v847, 16
        %v1051 = vor.u32 %v1049, %v1047
        %v1053 = vshll.u32 %v848, 16
        %v1055 = vrot.slane %v1053, 1
        %v1056 = vsel %vm1004, %v1051, %v1055
        %v1057 = vshrl.u32 %v848, 16
        %v1059 = vor.u32 %v1057, %v1055
        %v1061 = vshll.u32 %v849, 16
        %v1063 = vrot.slane %v1061, 1
        %v1064 = vsel %vm1004, %v1059, %v1063
        %v1065 = vshrl.u32 %v849, 16
        %v1067 = vor.u32 %v1065, %v1063
        %v1077 = vunpack.c.l.b16 %v1003
        %v1078 = vpack.c.b16 %v1077, %v1077
        %v1080 = vshll.u32 %v1078, 16
        %v1082 = vrot.slane %v1080, 1
        %vm1084 = vcmask 1047552
        %vm1085 = vmand %vm1084, %vm1004
        %v1086 = vsel %vm1085, %v1067, %v1082
        %s1087 = scalar_lea.vmem %s2, 128
        %v1088 = vld [vmem:[%s1087] sm:$0xf]
        %v1089 = vld [vmem:[%s1087 + $0x4] sm:$0xf]
        %v1090 = vld [vmem:[%s1087 + $0x8] sm:$0xf]
        %v1091 = vld [vmem:[%s1087 + $0xc] sm:$0xf]
        %v1092 = vld [vmem:[%s1087 + $0x10] sm:$0xf]
        %v1093 = vld [vmem:[%s1087 + $0x14] sm:$0xf]
        %v1094 = vld [vmem:[%s1087 + $0x18] sm:$0xf]
        %v1095 = vld [vmem:[%s1087 + $0x1c] sm:$0xf]
        %v1096 = vld [vmem:[%s1087 + $0x20] sm:$0xf]
        %v1097 = vld [vmem:[%s1087 + $0x24] sm:$0xf]
        %v1098 = vld [vmem:[%s1087 + $0x28] sm:$0xf]
        %v1099 = vld [vmem:[%s1087 + $0x2c] sm:$0xf]
        %v1100 = vld [vmem:[%s1087 + $0x30] sm:$0xf]
        %v1101 = vld [vmem:[%s1087 + $0x34] sm:$0xf]
        %v1102 = vld [vmem:[%s1087 + $0x38] sm:$0xf]
        %v1103 = vld [vmem:[%s1087 + $0x3c] sm:$0xf]
        %v1120 = vunpack.c.l.b16 %v1088
        %v1121 = vunpack.c.l.b16 %v1089
        %v1122 = vunpack.c.l.b16 %v1090
        %v1123 = vunpack.c.l.b16 %v1091
        %v1124 = vunpack.c.l.b16 %v1092
        %v1125 = vunpack.c.l.b16 %v1093
        %v1126 = vunpack.c.l.b16 %v1094
        %v1127 = vunpack.c.l.b16 %v1095
        %v1128 = vunpack.c.l.b16 %v1096
        %v1129 = vunpack.c.l.b16 %v1097
        %v1130 = vunpack.c.l.b16 %v1098
        %v1131 = vunpack.c.l.b16 %v1099
        %v1132 = vunpack.c.l.b16 %v1100
        %v1133 = vunpack.c.l.b16 %v1101
        %v1134 = vunpack.c.l.b16 %v1102
        %v1135 = vunpack.c.l.b16 %v1103
        %v1136 = vpack.c.b16 %v1121, %v1120
        %v1137 = vpack.c.b16 %v1123, %v1122
        %v1138 = vpack.c.b16 %v1125, %v1124
        %v1139 = vpack.c.b16 %v1127, %v1126
        %v1140 = vpack.c.b16 %v1129, %v1128
        %v1141 = vpack.c.b16 %v1131, %v1130
        %v1142 = vpack.c.b16 %v1133, %v1132
        %v1143 = vpack.c.b16 %v1135, %v1134
        %1152 = vmatprep.subr.bf16.mxu0 0
        %1153 = vmatpush1.bf16.msra.mxu0 %v1136
        %1154 = vmatprep.subr.bf16.mxu0 0
        %1155 = vmatpush1.bf16.msra.mxu0 %v1137
        %1156 = vmatprep.subr.bf16.mxu0 0
        %1157 = vmatpush1.bf16.msra.mxu0 %v1138
        %1158 = vmatprep.subr.bf16.mxu0 0
        %1159 = vmatpush1.bf16.msra.mxu0 %v1139
        %1160 = vmatprep.subr.bf16.mxu0 0
        %1161 = vmatpush1.bf16.msra.mxu0 %v1140
        %1162 = vmatprep.subr.bf16.mxu0 0
        %1163 = vmatpush1.bf16.msra.mxu0 %v1141
        %1164 = vmatprep.subr.bf16.mxu0 0
        %1165 = vmatpush1.bf16.msra.mxu0 %v1142
        %1166 = vmatprep.subr.bf16.mxu0 0
        %1167 = vmatpush1.bf16.msra.mxu0 %v1143
        %1168 = vmatprep.subr.bf16.mxu0 0
        %1169 = vmatpush1.bf16.msra.mxu0 0
        %1170 = vmatprep.subr.bf16.mxu0 0
        %1171 = vmatpush1.bf16.msra.mxu0 0
        %1172 = vmatprep.subr.bf16.mxu0 0
        %1173 = vmatpush1.bf16.msra.mxu0 0
        %1174 = vmatprep.subr.bf16.mxu0 0
        %1175 = vmatpush1.bf16.msra.mxu0 0
        %1176 = vmatprep.subr.bf16.mxu0 0
        %1177 = vmatpush1.bf16.msra.mxu0 0
        %1178 = vmatprep.subr.bf16.mxu0 0
        %1179 = vmatpush1.bf16.msra.mxu0 0
        %1180 = vmatprep.subr.bf16.mxu0 0
        %1181 = vmatpush1.bf16.msra.mxu0 0
        %1182 = vmatprep.subr.bf16.mxu0 0
        %1183 = vmatpush1.bf16.msra.mxu0 0
        %1184 = vmatprep.mubr.bf16.mxu0 0
        %1185 = vmatmul.mubr.bf16.gmra.mrb[0].mxu0 %v1016
        %v1186 = vpop.f32.mrb[0].mxu0
        %v1187 = vadd.f32 0.0, %v1186
        %v1188 = vpop.f32.mrb[0].mxu0
        %v1189 = vpop.f32.mrb[0].mxu0
        %v1190 = vadd.f32 0.0, %v1189
        %v1191 = vpop.f32.mrb[0].mxu0
        %1192 = vmatprep.mubr.bf16.mxu0 0
        %1193 = vmatmul.mubr.bf16.gmra.mrb[0].mxu0 %v1024
        %v1194 = vpop.f32.mrb[0].mxu0
        %v1195 = vadd.f32 0.0, %v1194
        %v1196 = vpop.f32.mrb[0].mxu0
        %v1197 = vpop.f32.mrb[0].mxu0
        %v1198 = vadd.f32 0.0, %v1197
        %v1199 = vpop.f32.mrb[0].mxu0
        %1200 = vmatprep.mubr.bf16.mxu0 0
        %1201 = vmatmul.mubr.bf16.gmra.mrb[0].mxu0 %v1032
        %v1202 = vpop.f32.mrb[0].mxu0
        %v1203 = vadd.f32 0.0, %v1202
        %v1204 = vpop.f32.mrb[0].mxu0
        %v1205 = vpop.f32.mrb[0].mxu0
        %v1206 = vadd.f32 0.0, %v1205
        %v1207 = vpop.f32.mrb[0].mxu0
        %1208 = vmatprep.mubr.bf16.mxu0 0
        %1209 = vmatmul.mubr.bf16.gmra.mrb[0].mxu0 %v1040
        %v1210 = vpop.f32.mrb[0].mxu0
        %v1211 = vadd.f32 0.0, %v1210
        %v1212 = vpop.f32.mrb[0].mxu0
        %v1213 = vpop.f32.mrb[0].mxu0
        %v1214 = vadd.f32 0.0, %v1213
        %v1215 = vpop.f32.mrb[0].mxu0
        %1216 = vmatprep.mubr.bf16.mxu0 0
        %1217 = vmatmul.mubr.bf16.gmra.mrb[0].mxu0 %v1048
        %v1218 = vpop.f32.mrb[0].mxu0
        %v1219 = vadd.f32 0.0, %v1218
        %v1220 = vpop.f32.mrb[0].mxu0
        %v1221 = vpop.f32.mrb[0].mxu0
        %v1222 = vadd.f32 0.0, %v1221
        %v1223 = vpop.f32.mrb[0].mxu0
        %1224 = vmatprep.mubr.bf16.mxu0 0
        %1225 = vmatmul.mubr.bf16.gmra.mrb[0].mxu0 %v1056
        %v1226 = vpop.f32.mrb[0].mxu0
        %v1227 = vadd.f32 0.0, %v1226
        %v1228 = vpop.f32.mrb[0].mxu0
        %v1229 = vpop.f32.mrb[0].mxu0
        %v1230 = vadd.f32 0.0, %v1229
        %v1231 = vpop.f32.mrb[0].mxu0
        %1232 = vmatprep.mubr.bf16.mxu0 0
        %1233 = vmatmul.mubr.bf16.gmra.mrb[0].mxu0 %v1064
        %v1234 = vpop.f32.mrb[0].mxu0
        %v1235 = vadd.f32 0.0, %v1234
        %v1236 = vpop.f32.mrb[0].mxu0
        %v1237 = vpop.f32.mrb[0].mxu0
        %v1238 = vadd.f32 0.0, %v1237
        %v1239 = vpop.f32.mrb[0].mxu0
        %1240 = vmatprep.mubr.bf16.mxu0 0
        %1241 = vmatmul.mubr.bf16.gmra.mrb[0].mxu0 %v1086
        %v1242 = vpop.f32.mrb[0].mxu0
        %v1243 = vadd.f32 0.0, %v1242
        %v1244 = vpop.f32.mrb[0].mxu0
        %v1245 = vpop.f32.mrb[0].mxu0
        %v1246 = vadd.f32 0.0, %v1245
        %v1247 = vpop.f32.mrb[0].mxu0
        %1248 = vdwg.mxu0
        %v1249 = vadd.f32 %v941, %v1187
        %v1250 = vadd.f32 %v944, %v1190
        %v1251 = vadd.f32 %v949, %v1195
        %v1252 = vadd.f32 %v952, %v1198
        %v1253 = vadd.f32 %v957, %v1203
        %v1254 = vadd.f32 %v960, %v1206
        %v1255 = vadd.f32 %v965, %v1211
        %v1256 = vadd.f32 %v968, %v1214
        %v1257 = vadd.f32 %v973, %v1219
        %v1258 = vadd.f32 %v976, %v1222
        %v1259 = vadd.f32 %v981, %v1227
        %v1260 = vadd.f32 %v984, %v1230
        %v1261 = vadd.f32 %v989, %v1235
        %v1262 = vadd.f32 %v992, %v1238
        %v1263 = vadd.f32 %v997, %v1243
        %v1264 = vadd.f32 %v1000, %v1246
        %v1265 = vadd.f32 %v1249, %v1250
        %v1266 = vadd.f32 %v1265, %v1251
        %v1267 = vadd.f32 %v1266, %v1252
        %v1268 = vadd.f32 %v1267, %v1253
        %v1269 = vadd.f32 %v1268, %v1254
        %v1270 = vadd.f32 %v1269, %v1255
        %v1271 = vadd.f32 %v1270, %v1256
        %v1272 = vadd.f32 %v1271, %v1257
        %v1273 = vadd.f32 %v1272, %v1258
        %v1274 = vadd.f32 %v1273, %v1259
        %v1275 = vadd.f32 %v1274, %v1260
        %v1276 = vadd.f32 %v1275, %v1261
        %v1277 = vadd.f32 %v1276, %v1262
        %v1278 = vadd.f32 %v1277, %v1263
        %v1279 = vadd.f32 %v1278, %v1264
        %v1280 = vrot.slane %v1279, 4
        %v1281 = vadd.f32 %v1279, %v1280
        %v1282 = vrot.slane %v1281, 2
        %v1283 = vadd.f32 %v1281, %v1282
        %v1284 = vrot.slane %v1283, 1
        %v1285 = vadd.f32 %v1283, %v1284
        %1286 = vst [vmem:[%s543] sm:$0x1] %v1285
        %v1287 = vmul.f32 %v1249, %v1249
        %v1288 = vmul.f32 %v1250, %v1250
        %v1289 = vmul.f32 %v1251, %v1251
        %v1290 = vmul.f32 %v1252, %v1252
        %v1291 = vmul.f32 %v1253, %v1253
        %v1292 = vmul.f32 %v1254, %v1254
        %v1293 = vmul.f32 %v1255, %v1255
        %v1294 = vmul.f32 %v1256, %v1256
        %v1295 = vmul.f32 %v1257, %v1257
        %v1296 = vmul.f32 %v1258, %v1258
        %v1297 = vmul.f32 %v1259, %v1259
        %v1298 = vmul.f32 %v1260, %v1260
        %v1299 = vmul.f32 %v1261, %v1261
        %v1300 = vmul.f32 %v1262, %v1262
        %v1301 = vmul.f32 %v1263, %v1263
        %v1302 = vmul.f32 %v1264, %v1264
        %v1303 = vadd.f32 %v1287, %v1288
        %v1304 = vadd.f32 %v1303, %v1289
        %v1305 = vadd.f32 %v1304, %v1290
        %v1306 = vadd.f32 %v1305, %v1291
        %v1307 = vadd.f32 %v1306, %v1292
        %v1308 = vadd.f32 %v1307, %v1293
        %v1309 = vadd.f32 %v1308, %v1294
        %v1310 = vadd.f32 %v1309, %v1295
        %v1311 = vadd.f32 %v1310, %v1296
        %v1312 = vadd.f32 %v1311, %v1297
        %v1313 = vadd.f32 %v1312, %v1298
        %v1314 = vadd.f32 %v1313, %v1299
        %v1315 = vadd.f32 %v1314, %v1300
        %v1316 = vadd.f32 %v1315, %v1301
        %v1317 = vadd.f32 %v1316, %v1302
        %v1318 = vrot.slane %v1317, 4
        %v1319 = vadd.f32 %v1317, %v1318
        %v1320 = vrot.slane %v1319, 2
        %v1321 = vadd.f32 %v1319, %v1320
        %v1322 = vrot.slane %v1321, 1
        %v1323 = vadd.f32 %v1321, %v1322
        %1324 = vst [vmem:[%s549] sm:$0x1] %v1323
        %p1325 = scmp.eq.s32.totalorder %s21, 0
        // Predicated region
        $region95: #{basic_block_forward.2} parent=89 // pred_check
          %p1326 = pneg %p1325
        $region96: #{basic_block_forward.2} parent=89 // pred_check_branch
          %1328 = sbr.rel (%p1326) target = $region98
        $region97: #{basic_block_forward.2} parent=89 // pred_region
          %v1329 = vlaneseq
          %v1330 = vshrl.u32 %v1329, 7
          %v1331 = vadd.s32 %v1330, 8
          %v1332 = vadd.s32 %v1330, 16
          %v1333 = vadd.s32 %v1330, 24
          %v1334 = vadd.s32 %v1330, 32
          %v1335 = vadd.s32 %v1330, 40
          %v1336 = vadd.s32 %v1330, 48
          %v1337 = vadd.s32 %v1330, 56
          %v1338 = vadd.s32 %v1330, 64
          %v1339 = vadd.s32 %v1330, 72
          %v1340 = vadd.s32 %v1330, 80
          %v1341 = vadd.s32 %v1330, 88
          %v1342 = vadd.s32 %v1330, 96
          %v1343 = vadd.s32 %v1330, 104
          %v1344 = vadd.s32 %v1330, 112
          %v1345 = vadd.s32 %v1330, 120
          %vm1346 = vcmp.lt.s32.totalorder %v1330, 8
          %vm1347 = vcmp.lt.s32.totalorder %v1331, 8
          %vm1348 = vcmp.lt.s32.totalorder %v1332, 8
          %vm1349 = vcmp.lt.s32.totalorder %v1333, 8
          %vm1350 = vcmp.lt.s32.totalorder %v1334, 8
          %vm1351 = vcmp.lt.s32.totalorder %v1335, 8
          %vm1352 = vcmp.lt.s32.totalorder %v1336, 8
          %vm1353 = vcmp.lt.s32.totalorder %v1337, 8
          %vm1354 = vcmp.lt.s32.totalorder %v1338, 8
          %vm1355 = vcmp.lt.s32.totalorder %v1339, 8
          %vm1356 = vcmp.lt.s32.totalorder %v1340, 8
          %vm1357 = vcmp.lt.s32.totalorder %v1341, 8
          %vm1358 = vcmp.lt.s32.totalorder %v1342, 8
          %vm1359 = vcmp.lt.s32.totalorder %v1343, 8
          %vm1360 = vcmp.lt.s32.totalorder %v1344, 8
          %vm1361 = vcmp.lt.s32.totalorder %v1345, 8
          %v1362 = vsel %vm1346, 1, 0
          %v1363 = vsel %vm1347, 1, 0
          %v1364 = vsel %vm1348, 1, 0
          %v1365 = vsel %vm1349, 1, 0
          %v1366 = vsel %vm1350, 1, 0
          %v1367 = vsel %vm1351, 1, 0
          %v1368 = vsel %vm1352, 1, 0
          %v1369 = vsel %vm1353, 1, 0
          %v1370 = vsel %vm1354, 1, 0
          %v1371 = vsel %vm1355, 1, 0
          %v1372 = vsel %vm1356, 1, 0
          %v1373 = vsel %vm1357, 1, 0
          %v1374 = vsel %vm1358, 1, 0
          %v1375 = vsel %vm1359, 1, 0
          %v1376 = vsel %vm1360, 1, 0
          %v1377 = vsel %vm1361, 1, 0
          %vm1378 = vcmp.eq.s32.totalorder %v1362, 1
          %vm1379 = vcmp.eq.s32.totalorder %v1363, 1
          %vm1380 = vcmp.eq.s32.totalorder %v1364, 1
          %vm1381 = vcmp.eq.s32.totalorder %v1365, 1
          %vm1382 = vcmp.eq.s32.totalorder %v1366, 1
          %vm1383 = vcmp.eq.s32.totalorder %v1367, 1
          %vm1384 = vcmp.eq.s32.totalorder %v1368, 1
          %vm1385 = vcmp.eq.s32.totalorder %v1369, 1
          %vm1386 = vcmp.eq.s32.totalorder %v1370, 1
          %vm1387 = vcmp.eq.s32.totalorder %v1371, 1
          %vm1388 = vcmp.eq.s32.totalorder %v1372, 1
          %vm1389 = vcmp.eq.s32.totalorder %v1373, 1
          %vm1390 = vcmp.eq.s32.totalorder %v1374, 1
          %vm1391 = vcmp.eq.s32.totalorder %v1375, 1
          %vm1392 = vcmp.eq.s32.totalorder %v1376, 1
          %vm1393 = vcmp.eq.s32.totalorder %v1377, 1
          %v1394 = vsel %vm1378, %v1249, 0.0
          %v1395 = vsel %vm1379, %v1250, 0.0
          %v1396 = vsel %vm1380, %v1251, 0.0
          %v1397 = vsel %vm1381, %v1252, 0.0
          %v1398 = vsel %vm1382, %v1253, 0.0
          %v1399 = vsel %vm1383, %v1254, 0.0
          %v1400 = vsel %vm1384, %v1255, 0.0
          %v1401 = vsel %vm1385, %v1256, 0.0
          %v1402 = vsel %vm1386, %v1257, 0.0
          %v1403 = vsel %vm1387, %v1258, 0.0
          %v1404 = vsel %vm1388, %v1259, 0.0
          %v1405 = vsel %vm1389, %v1260, 0.0
          %v1406 = vsel %vm1390, %v1261, 0.0
          %v1407 = vsel %vm1391, %v1262, 0.0
          %v1408 = vsel %vm1392, %v1263, 0.0
          %v1409 = vsel %vm1393, %v1264, 0.0
          %v1410 = vadd.f32 %v1394, %v1395
          %v1411 = vadd.f32 %v1410, %v1396
          %v1412 = vadd.f32 %v1411, %v1397
          %v1413 = vadd.f32 %v1412, %v1398
          %v1414 = vadd.f32 %v1413, %v1399
          %v1415 = vadd.f32 %v1414, %v1400
          %v1416 = vadd.f32 %v1415, %v1401
          %v1417 = vadd.f32 %v1416, %v1402
          %v1418 = vadd.f32 %v1417, %v1403
          %v1419 = vadd.f32 %v1418, %v1404
          %v1420 = vadd.f32 %v1419, %v1405
          %v1421 = vadd.f32 %v1420, %v1406
          %v1422 = vadd.f32 %v1421, %v1407
          %v1423 = vadd.f32 %v1422, %v1408
          %v1424 = vadd.f32 %v1423, %v1409
          %v1425 = vrot.slane %v1424, 4
          %v1426 = vadd.f32 %v1424, %v1425
          %v1427 = vrot.slane %v1426, 2
          %v1428 = vadd.f32 %v1426, %v1427
          %v1429 = vrot.slane %v1428, 1
          %v1430 = vadd.f32 %v1428, %v1429
          %1431 = vst [vmem:[%s543] sm:$0x1] %v1430
          %v1432 = vmul.f32 %v1394, %v1394
          %v1433 = vmul.f32 %v1395, %v1395
          %v1434 = vmul.f32 %v1396, %v1396
          %v1435 = vmul.f32 %v1397, %v1397
          %v1436 = vmul.f32 %v1398, %v1398
          %v1437 = vmul.f32 %v1399, %v1399
          %v1438 = vmul.f32 %v1400, %v1400
          %v1439 = vmul.f32 %v1401, %v1401
          %v1440 = vmul.f32 %v1402, %v1402
          %v1441 = vmul.f32 %v1403, %v1403
          %v1442 = vmul.f32 %v1404, %v1404
          %v1443 = vmul.f32 %v1405, %v1405
          %v1444 = vmul.f32 %v1406, %v1406
          %v1445 = vmul.f32 %v1407, %v1407
          %v1446 = vmul.f32 %v1408, %v1408
          %v1447 = vmul.f32 %v1409, %v1409
          %v1448 = vadd.f32 %v1432, %v1433
          %v1449 = vadd.f32 %v1448, %v1434
          %v1450 = vadd.f32 %v1449, %v1435
          %v1451 = vadd.f32 %v1450, %v1436
          %v1452 = vadd.f32 %v1451, %v1437
          %v1453 = vadd.f32 %v1452, %v1438
          %v1454 = vadd.f32 %v1453, %v1439
          %v1455 = vadd.f32 %v1454, %v1440
          %v1456 = vadd.f32 %v1455, %v1441
          %v1457 = vadd.f32 %v1456, %v1442
          %v1458 = vadd.f32 %v1457, %v1443
          %v1459 = vadd.f32 %v1458, %v1444
          %v1460 = vadd.f32 %v1459, %v1445
          %v1461 = vadd.f32 %v1460, %v1446
          %v1462 = vadd.f32 %v1461, %v1447
          %v1463 = vrot.slane %v1462, 4
          %v1464 = vadd.f32 %v1462, %v1463
          %v1465 = vrot.slane %v1464, 2
          %v1466 = vadd.f32 %v1464, %v1465
          %v1467 = vrot.slane %v1466, 1
          %v1468 = vadd.f32 %v1466, %v1467
          %1469 = vst [vmem:[%s549] sm:$0x1] %v1468
        $region98: #{basic_block_forward.2} parent=89 // pred_fallthru
          _
        %p1470 = scmp.lt.s32.totalorder %s20, 1
        %s1471 = scalar_select %p1470, %s20, 1
        %p1472 = scmp.lt.s32.totalorder %s21, 0
        %s1473 = scalar_select %p1472, %s21, 0
        %s1474 = sadd.s32 %s1473, %s1471
        %s1475 = scalar_lea.vmem %s3, %s1474
        %p1476 = scmp.lt.s32.totalorder %s20, 1
        %s1477 = scalar_select %p1476, %s20, 1
        %p1478 = scmp.lt.s32.totalorder %s21, 0
        %s1479 = scalar_select %p1478, %s21, 0
        %s1480 = sadd.s32 %s1479, %s1477
        %s1481 = scalar_lea.vmem %s4, %s1480
        // Predicated region
        $region99: #{basic_block_forward.2} parent=89 // pred_check
          %p1482 = pneg %p125
        $region100: #{basic_block_forward.2} parent=89 // pred_check_branch
          %1484 = sbr.rel (%p1482) target = $region102
        $region101: #{basic_block_forward.2} parent=89 // pred_region
          _
        $region102: #{basic_block_forward.2} parent=89 // pred_fallthru
          _
        // Predicated region
        $region103: #{basic_block_forward.2} parent=89 // pred_check
          %p1485 = pneg %p153
        $region104: #{basic_block_forward.2} parent=89 // pred_check_branch
          %1487 = sbr.rel (%p1485) target = $region106
        $region105: #{basic_block_forward.2} parent=89 // pred_region
          _
        $region106: #{basic_block_forward.2} parent=89 // pred_fallthru
          _
      $region90: #{basic_block_forward.2} parent=5 // pred_fallthru
        _
      %p1488 = scmp.le.s32.totalorder 2, %s11
      // Predicated region
      $region107: #{basic_block_forward.2} parent=5 // pred_check
        %p1489 = pneg %p1488
      $region108: #{basic_block_forward.2} parent=5 // pred_check_branch
        %1491 = sbr.rel (%p1489) target = $region110
      $region109: #{basic_block_forward.2} parent=5 // pred_region
        %s1492 = ssub.s32 %s11, 2
        // Predicated region
        $region111: #{basic_block_forward.2} parent=109 // pred_check
          %p1493 = pneg %p131
        $region112: #{basic_block_forward.2} parent=109 // pred_check_branch
          %1495 = sbr.rel (%p1493) target = $region114
        $region113: #{basic_block_forward.2} parent=109 // pred_region
          %p1496 = scmp.lt.s32.totalorder %s22, 1
          %s1497 = scalar_select %p1496, %s22, 1
          %p1498 = scmp.lt.s32.totalorder %s23, 0
          %s1499 = scalar_select %p1498, %s23, 0
          %s1500 = sadd.s32 %s1499, %s1497
          %s1501 = scalar_lea.vmem %s3, %s1500
        $region114: #{basic_block_forward.2} parent=109 // pred_fallthru
          _
        // Predicated region
        $region115: #{basic_block_forward.2} parent=109 // pred_check
          %p1502 = pneg %p159
        $region116: #{basic_block_forward.2} parent=109 // pred_check_branch
          %1504 = sbr.rel (%p1502) target = $region118
        $region117: #{basic_block_forward.2} parent=109 // pred_region
          %p1505 = scmp.lt.s32.totalorder %s22, 1
          %s1506 = scalar_select %p1505, %s22, 1
          %p1507 = scmp.lt.s32.totalorder %s23, 0
          %s1508 = scalar_select %p1507, %s23, 0
          %s1509 = sadd.s32 %s1508, %s1506
          %s1510 = scalar_lea.vmem %s4, %s1509
        $region118: #{basic_block_forward.2} parent=109 // pred_fallthru
          _
      $region110: #{basic_block_forward.2} parent=5 // pred_fallthru
        _
    $region6: #{basic_block_forward.2} parent=1 // loop_footer
      %s15 = sadd.s32 1, %s11
    $region7: #{basic_block_forward.2} parent=1 // loop_footer_branch
      %10 = sbr.rel target = $region3
    $region8: #{basic_block_forward.2} parent=1 // loop_exit
      _

</llo_original>
